<compile_context>
chip_gen: v7x
topology: tpu7x:2x2x1
jax: 0.10.0
libtpu: 0.0.40
codegen_flags: <defaults>
</compile_context>

<pallas_src>
import jax
import jax.numpy as jnp
import numpy as np
from jax import lax
from jax.experimental import pallas as pl
from jax.experimental.pallas import tpu as pltpu

FEATURE_DIM = 32
NUM_SITE_TYPES = 10
H1, H2 = 64, 32          # hidden channel widths of the detector convs
K1, K2, K3 = 7, 5, 3     # kernel sizes
P1, P2, P3 = 3, 2, 1     # "same" paddings


def _detector_kernel(x_ref, w1_ref, b1_ref, w2_ref, b2_ref, w3_ref, b3_ref,
                     out_ref):
    # x_ref  : (Bblk, L + 2*P1, D)     pre-padded input rows (NWC)
    # w1_ref : (K1*D, T*H1)            conv1 weights, fused over taps+detectors
    # w2_ref : (K2*T*H1, T*H2)         conv2, block-diagonal over detectors
    # w3_ref : (K3*T*H2, T)            conv3, block-diagonal over detectors
    # b*_ref : (1, T*H1) / (1, T*H2) / (1, T)   biases (always f32)
    # out_ref: (Bblk, L, T)
    Bblk, L, T = out_ref.shape
    D = x_ref.shape[2]

    def mm(a, w_ref):
        w = w_ref[...]
        # bf16 operands (if use_bf16) with f32 accumulation on the MXU.
        return jnp.dot(a.astype(w.dtype), w, preferred_element_type=jnp.float32)

    xb = x_ref[...]                                           # (Bblk, L+2*P1, D)

    # ---- Conv1d(D -> 64, k=7, pad=3) + ReLU, fused over taps & detectors ----
    x_cols = jnp.concatenate([xb[:, k:k + L, :] for k in range(K1)], axis=2)
    x_cols = x_cols.reshape(Bblk * L, K1 * D)                 # (Bblk*L, 224)
    h1 = jnp.maximum(mm(x_cols, w1_ref) + b1_ref[...], 0.0)   # (Bblk*L, T*H1)

    # ---- Conv1d(64 -> 32, k=5, pad=2) + ReLU, block-diagonal over detectors --
    h1 = h1.reshape(Bblk, L, T * H1)
    zp1 = jnp.zeros((Bblk, P2, T * H1), jnp.float32)
    h1p = jnp.concatenate([zp1, h1, zp1], axis=1)             # (Bblk, L+2*P2, T*H1)
    z2 = jnp.concatenate([h1p[:, k:k + L, :] for k in range(K2)], axis=2)
    z2 = z2.reshape(Bblk * L, K2 * T * H1)                    # (Bblk*L, 3200)
    h2 = jnp.maximum(mm(z2, w2_ref) + b2_ref[...], 0.0)       # (Bblk*L, T*H2)

    # ---- Conv1d(32 -> 1, k=3, pad=1) + Sigmoid, block-diag -> full (L,T) tile
    h2 = h2.reshape(Bblk, L, T * H2)
    zp2 = jnp.zeros((Bblk, P3, T * H2), jnp.float32)
    h2p = jnp.concatenate([zp2, h2, zp2], axis=1)             # (Bblk, L+2*P3, T*H2)
    z3 = jnp.concatenate([h2p[:, k:k + L, :] for k in range(K3)], axis=2)
    z3 = z3.reshape(Bblk * L, K3 * T * H2)                    # (Bblk*L, 960)
    logits = mm(z3, w3_ref) + b3_ref[...]                     # (Bblk*L, T)

    # Single bulk store of the whole (Bblk, L, T) tile.
    out_ref[...] = jax.nn.sigmoid(logits).reshape(Bblk, L, T).astype(out_ref.dtype)


def functional_site_detector(x, params, *, batch_block=8, use_bf16=False):
    """x: (B, L, D) float32 -> (B, L, T) float32 per-residue site probabilities."""
    B, L, D = x.shape
    T = params["w1"].shape[0]

    # Batch rows per grid step: largest divisor of B that is <= batch_block
    # (amortizes per-grid-step overhead without partial blocks).
    bb = min(batch_block, B)
    while B % bb:
        bb -= 1

    x_pad = jnp.pad(x, ((0, 0), (P1, P1), (0, 0)))            # seq zero-pad for conv1
    Lp = L + 2 * P1

    # ---- matmul-ready, lane-dense weight layouts (built once in the wrapper) ----
    eye = jnp.eye(T, dtype=jnp.float32)
    # conv1: column k*D+d -> output column t*H1+h
    w1 = jnp.transpose(params["w1"], (1, 2, 0, 3)).reshape(K1 * D, T * H1)
    # conv2: block-diagonal over detectors; row k*T*H1 + t*H1 + c, col t*H2 + o
    w2 = jnp.einsum("tkco,tu->ktcuo", params["w2"], eye).reshape(K2 * T * H1, T * H2)
    # conv3: block-diagonal; drop the trailing Cout=1 axis; row k*T*H2 + t*H2 + c, col t
    w3 = jnp.einsum("tkc,tu->ktcu", params["w3"][..., 0], eye).reshape(K3 * T * H2, T)
    b1 = params["b1"].reshape(1, T * H1).astype(jnp.float32)
    b2 = params["b2"].reshape(1, T * H2).astype(jnp.float32)
    b3 = params["b3"].reshape(1, T).astype(jnp.float32)

    mm_dtype = jnp.bfloat16 if use_bf16 else jnp.float32      # bf16 MXU for v6e/v7x
    w1, w2, w3 = (w.astype(mm_dtype) for w in (w1, w2, w3))

    return pl.pallas_call(
        _detector_kernel,
        out_shape=jax.ShapeDtypeStruct((B, L, T), jnp.float32),
        grid_spec=pltpu.PrefetchScalarGridSpec(
            num_scalar_prefetch=0,
            grid=(B // bb,),
            in_specs=[
                pl.BlockSpec((bb, Lp, D), lambda i: (i, 0, 0)),
                pl.BlockSpec((K1 * D, T * H1), lambda i: (0, 0)),
                pl.BlockSpec((1, T * H1), lambda i: (0, 0)),
                pl.BlockSpec((K2 * T * H1, T * H2), lambda i: (0, 0)),
                pl.BlockSpec((1, T * H2), lambda i: (0, 0)),
                pl.BlockSpec((K3 * T * H2, T), lambda i: (0, 0)),
                pl.BlockSpec((1, T), lambda i: (0, 0)),
            ],
            out_specs=pl.BlockSpec((bb, L, T), lambda i: (i, 0, 0)),
        ),
        compiler_params=pltpu.CompilerParams(
            dimension_semantics=("parallel",),                # megacore-shard batch (v7x)
            vmem_limit_bytes=32 * 1024 * 1024),               # fits v7x's smaller VMEM
    )(x_pad, w1, b1, w2, b2, w3, b3)


def reference(x, params):
    """Pure-JAX reference mirroring the PyTorch forward (NCW convs)."""
    T = params["w1"].shape[0]
    xt = jnp.transpose(x, (0, 2, 1))  # (B, D, L)
    outs = []
    dn = ("NCH", "OIH", "NCH")
    for t in range(T):
        w1 = jnp.transpose(params["w1"][t], (2, 1, 0))  # (H1, D, K1) torch layout
        w2 = jnp.transpose(params["w2"][t], (2, 1, 0))
        w3 = jnp.transpose(params["w3"][t], (2, 1, 0))
        h = lax.conv_general_dilated(xt, w1, (1,), ((P1, P1),), dimension_numbers=dn)
        h = jax.nn.relu(h + params["b1"][t][None, :, None])
        h = lax.conv_general_dilated(h, w2, (1,), ((P2, P2),), dimension_numbers=dn)
        h = jax.nn.relu(h + params["b2"][t][None, :, None])
        h = lax.conv_general_dilated(h, w3, (1,), ((P3, P3),), dimension_numbers=dn)
        h = jax.nn.sigmoid(h + params["b3"][t][None, :, None])
        outs.append(h)  # (B, 1, L)
    sites = jnp.concatenate(outs, axis=1)  # (B, T, L)
    return jnp.transpose(sites, (0, 2, 1))  # (B, L, T)


if __name__ == "__main__":
    key = jax.random.PRNGKey(0)
    B, L, D, T = 2, 8, FEATURE_DIM, NUM_SITE_TYPES
    ks = jax.random.split(key, 7)

    # Deterministic synthetic parameters (tap-major conv layout: (T, K, Cin, Cout)).
    params = {
        "w1": jax.random.normal(ks[0], (T, K1, D, H1), jnp.float32) * 0.05,
        "b1": jax.random.normal(ks[1], (T, H1), jnp.float32) * 0.05,
        "w2": jax.random.normal(ks[2], (T, K2, H1, H2), jnp.float32) * 0.05,
        "b2": jax.random.normal(ks[3], (T, H2), jnp.float32) * 0.05,
        "w3": jax.random.normal(ks[4], (T, K3, H2, 1), jnp.float32) * 0.05,
        "b3": jax.random.normal(ks[5], (T, 1), jnp.float32) * 0.05,
    }
    x = jax.random.normal(ks[6], (B, L, D), jnp.float32)

    ref = jax.block_until_ready(reference(x, params))

    # f32 path (default): matches the torch/JAX reference tightly.
    out = jax.block_until_ready(functional_site_detector(x, params))
    assert out.shape == (B, L, T)
    np.testing.assert_allclose(np.asarray(out), np.asarray(ref), rtol=1e-5, atol=1e-5)

    # bf16-MXU path recommended for v6e/v7x (f32 accumulation); relaxed tolerance.
    out_bf16 = jax.block_until_ready(functional_site_detector(x, params, use_bf16=True))
    np.testing.assert_allclose(np.asarray(out_bf16), np.asarray(ref), rtol=5e-2, atol=5e-2)

    print("KERNEL_OK")
</pallas_src>

<mosaic_0001>
module attributes {stable_mosaic.version = 11 : i64} {
  func.func @_detector_kernel(%arg0: i32, %arg1: memref<2x14x32xf32, #tpu.memory_space<vmem>>, %arg2: memref<224x640xf32, #tpu.memory_space<vmem>>, %arg3: memref<1x640xf32, #tpu.memory_space<vmem>>, %arg4: memref<3200x320xf32, #tpu.memory_space<vmem>>, %arg5: memref<1x320xf32, #tpu.memory_space<vmem>>, %arg6: memref<960x10xf32, #tpu.memory_space<vmem>>, %arg7: memref<1x10xf32, #tpu.memory_space<vmem>>, %arg8: memref<2x8x10xf32, #tpu.memory_space<vmem>>) attributes {dimension_semantics = [#tpu.dimension_semantics<parallel>], iteration_bounds = array<i64: 1>, scalar_prefetch = 0 : i64, scratch_operands = 0 : i64, tpu.core_type = #tpu.core_type<tc>, window_params = [{transform_indices = @transform_0, window_bounds = array<i64: 2, 14, 32>}, {pipeline_mode = #tpu.pipeline_mode<synchronous>, transform_indices = @transform_1, window_bounds = array<i64: 224, 640>}, {pipeline_mode = #tpu.pipeline_mode<synchronous>, transform_indices = @transform_2, window_bounds = array<i64: 1, 640>}, {pipeline_mode = #tpu.pipeline_mode<synchronous>, transform_indices = @transform_3, window_bounds = array<i64: 3200, 320>}, {pipeline_mode = #tpu.pipeline_mode<synchronous>, transform_indices = @transform_4, window_bounds = array<i64: 1, 320>}, {pipeline_mode = #tpu.pipeline_mode<synchronous>, transform_indices = @transform_5, window_bounds = array<i64: 960, 10>}, {pipeline_mode = #tpu.pipeline_mode<synchronous>, transform_indices = @transform_6, window_bounds = array<i64: 1, 10>}, {transform_indices = @transform_7, window_bounds = array<i64: 2, 8, 10>}]} {
    %c0 = arith.constant 0 : index
    %c0_0 = arith.constant 0 : index
    %c0_1 = arith.constant 0 : index
    %0 = vector.load %arg1[%c0, %c0_0, %c0_1] : memref<2x14x32xf32, #tpu.memory_space<vmem>>, vector<2x14x32xf32>
    %1 = vector.extract_strided_slice %0 {offsets = [0, 0, 0], sizes = [2, 8, 32], strides = [1, 1, 1]} : vector<2x14x32xf32> to vector<2x8x32xf32>
    %2 = vector.extract_strided_slice %0 {offsets = [0, 1, 0], sizes = [2, 8, 32], strides = [1, 1, 1]} : vector<2x14x32xf32> to vector<2x8x32xf32>
    %3 = vector.extract_strided_slice %0 {offsets = [0, 2, 0], sizes = [2, 8, 32], strides = [1, 1, 1]} : vector<2x14x32xf32> to vector<2x8x32xf32>
    %4 = vector.extract_strided_slice %0 {offsets = [0, 3, 0], sizes = [2, 8, 32], strides = [1, 1, 1]} : vector<2x14x32xf32> to vector<2x8x32xf32>
    %5 = vector.extract_strided_slice %0 {offsets = [0, 4, 0], sizes = [2, 8, 32], strides = [1, 1, 1]} : vector<2x14x32xf32> to vector<2x8x32xf32>
    %6 = vector.extract_strided_slice %0 {offsets = [0, 5, 0], sizes = [2, 8, 32], strides = [1, 1, 1]} : vector<2x14x32xf32> to vector<2x8x32xf32>
    %7 = vector.extract_strided_slice %0 {offsets = [0, 6, 0], sizes = [2, 8, 32], strides = [1, 1, 1]} : vector<2x14x32xf32> to vector<2x8x32xf32>
    %8 = tpu.concatenate %1, %2, %3, %4, %5, %6, %7 in 2 : vector<2x8x32xf32>, vector<2x8x32xf32>, vector<2x8x32xf32>, vector<2x8x32xf32>, vector<2x8x32xf32>, vector<2x8x32xf32>, vector<2x8x32xf32> -> vector<2x8x224xf32>
    %9 = vector.shape_cast %8 : vector<2x8x224xf32> to vector<16x224xf32>
    %c0_2 = arith.constant 0 : index
    %c0_3 = arith.constant 0 : index
    %10 = vector.load %arg2[%c0_2, %c0_3] : memref<224x640xf32, #tpu.memory_space<vmem>>, vector<224x640xf32>
    %cst = arith.constant dense<0.000000e+00> : vector<16x640xf32>
    %11 = tpu.matmul %9, %10, %cst {dimension_numbers = #tpu.dot_dimension_numbers<[1], [0], [0], [1], [0, 0, 1, 1], [], []>} : vector<16x224xf32>, vector<224x640xf32>, vector<16x640xf32> -> vector<16x640xf32>
    %c0_4 = arith.constant 0 : index
    %c0_5 = arith.constant 0 : index
    %12 = vector.load %arg3[%c0_4, %c0_5] : memref<1x640xf32, #tpu.memory_space<vmem>>, vector<1x640xf32>
    %13 = vector.broadcast %12 : vector<1x640xf32> to vector<16x640xf32>
    %14 = arith.addf %11, %13 : vector<16x640xf32>
    %cst_6 = arith.constant 0.000000e+00 : f32
    %15 = vector.broadcast %cst_6 : f32 to vector<16x640xf32>
    %16 = arith.maximumf %14, %15 : vector<16x640xf32>
    %17 = vector.shape_cast %16 : vector<16x640xf32> to vector<2x8x640xf32>
    %cst_7 = arith.constant 0.000000e+00 : f32
    %18 = vector.broadcast %cst_7 : f32 to vector<2x2x640xf32>
    %19 = tpu.concatenate %18, %17, %18 in 1 : vector<2x2x640xf32>, vector<2x8x640xf32>, vector<2x2x640xf32> -> vector<2x12x640xf32>
    %20 = vector.extract_strided_slice %19 {offsets = [0, 0, 0], sizes = [2, 8, 640], strides = [1, 1, 1]} : vector<2x12x640xf32> to vector<2x8x640xf32>
    %21 = vector.extract_strided_slice %19 {offsets = [0, 1, 0], sizes = [2, 8, 640], strides = [1, 1, 1]} : vector<2x12x640xf32> to vector<2x8x640xf32>
    %22 = vector.extract_strided_slice %19 {offsets = [0, 2, 0], sizes = [2, 8, 640], strides = [1, 1, 1]} : vector<2x12x640xf32> to vector<2x8x640xf32>
    %23 = vector.extract_strided_slice %19 {offsets = [0, 3, 0], sizes = [2, 8, 640], strides = [1, 1, 1]} : vector<2x12x640xf32> to vector<2x8x640xf32>
    %24 = vector.extract_strided_slice %19 {offsets = [0, 4, 0], sizes = [2, 8, 640], strides = [1, 1, 1]} : vector<2x12x640xf32> to vector<2x8x640xf32>
    %25 = tpu.concatenate %20, %21, %22, %23, %24 in 2 : vector<2x8x640xf32>, vector<2x8x640xf32>, vector<2x8x640xf32>, vector<2x8x640xf32>, vector<2x8x640xf32> -> vector<2x8x3200xf32>
    %26 = vector.shape_cast %25 : vector<2x8x3200xf32> to vector<16x3200xf32>
    %c0_8 = arith.constant 0 : index
    %c0_9 = arith.constant 0 : index
    %27 = vector.load %arg4[%c0_8, %c0_9] : memref<3200x320xf32, #tpu.memory_space<vmem>>, vector<3200x320xf32>
    %cst_10 = arith.constant dense<0.000000e+00> : vector<16x320xf32>
    %28 = tpu.matmul %26, %27, %cst_10 {dimension_numbers = #tpu.dot_dimension_numbers<[1], [0], [0], [1], [0, 0, 1, 1], [], []>} : vector<16x3200xf32>, vector<3200x320xf32>, vector<16x320xf32> -> vector<16x320xf32>
    %c0_11 = arith.constant 0 : index
    %c0_12 = arith.constant 0 : index
    %29 = vector.load %arg5[%c0_11, %c0_12] : memref<1x320xf32, #tpu.memory_space<vmem>>, vector<1x320xf32>
    %30 = vector.broadcast %29 : vector<1x320xf32> to vector<16x320xf32>
    %31 = arith.addf %28, %30 : vector<16x320xf32>
    %cst_13 = arith.constant 0.000000e+00 : f32
    %32 = vector.broadcast %cst_13 : f32 to vector<16x320xf32>
    %33 = arith.maximumf %31, %32 : vector<16x320xf32>
    %34 = vector.shape_cast %33 : vector<16x320xf32> to vector<2x8x320xf32>
    %cst_14 = arith.constant 0.000000e+00 : f32
    %35 = vector.broadcast %cst_14 : f32 to vector<2x1x320xf32>
    %36 = tpu.concatenate %35, %34, %35 in 1 : vector<2x1x320xf32>, vector<2x8x320xf32>, vector<2x1x320xf32> -> vector<2x10x320xf32>
    %37 = vector.extract_strided_slice %36 {offsets = [0, 0, 0], sizes = [2, 8, 320], strides = [1, 1, 1]} : vector<2x10x320xf32> to vector<2x8x320xf32>
    %38 = vector.extract_strided_slice %36 {offsets = [0, 1, 0], sizes = [2, 8, 320], strides = [1, 1, 1]} : vector<2x10x320xf32> to vector<2x8x320xf32>
    %39 = vector.extract_strided_slice %36 {offsets = [0, 2, 0], sizes = [2, 8, 320], strides = [1, 1, 1]} : vector<2x10x320xf32> to vector<2x8x320xf32>
    %40 = tpu.concatenate %37, %38, %39 in 2 : vector<2x8x320xf32>, vector<2x8x320xf32>, vector<2x8x320xf32> -> vector<2x8x960xf32>
    %41 = vector.shape_cast %40 : vector<2x8x960xf32> to vector<16x960xf32>
    %c0_15 = arith.constant 0 : index
    %c0_16 = arith.constant 0 : index
    %42 = vector.load %arg6[%c0_15, %c0_16] : memref<960x10xf32, #tpu.memory_space<vmem>>, vector<960x10xf32>
    %cst_17 = arith.constant dense<0.000000e+00> : vector<16x10xf32>
    %43 = tpu.matmul %41, %42, %cst_17 {dimension_numbers = #tpu.dot_dimension_numbers<[1], [0], [0], [1], [0, 0, 1, 1], [], []>} : vector<16x960xf32>, vector<960x10xf32>, vector<16x10xf32> -> vector<16x10xf32>
    %c0_18 = arith.constant 0 : index
    %c0_19 = arith.constant 0 : index
    %44 = vector.load %arg7[%c0_18, %c0_19] : memref<1x10xf32, #tpu.memory_space<vmem>>, vector<1x10xf32>
    %45 = vector.broadcast %44 : vector<1x10xf32> to vector<16x10xf32>
    %46 = arith.addf %43, %45 : vector<16x10xf32>
    %47 = arith.negf %46 : vector<16x10xf32>
    %48 = math.exp %47 : vector<16x10xf32>
    %cst_20 = arith.constant 1.000000e+00 : f32
    %49 = vector.broadcast %cst_20 : f32 to vector<16x10xf32>
    %50 = arith.addf %49, %48 : vector<16x10xf32>
    %51 = arith.divf %49, %50 : vector<16x10xf32>
    %52 = vector.shape_cast %51 : vector<16x10xf32> to vector<2x8x10xf32>
    %c0_21 = arith.constant 0 : index
    %c0_22 = arith.constant 0 : index
    %c0_23 = arith.constant 0 : index
    %53 = vector.load %arg8[%c0_21, %c0_22, %c0_23] : memref<2x8x10xf32, #tpu.memory_space<vmem>>, vector<2x8x10xf32>
    tpu.vector_store %arg8[%c0_21, %c0_22, %c0_23], %52 {strides = array<i32>} : memref<2x8x10xf32, #tpu.memory_space<vmem>>, vector<2x8x10xf32>,
    return
  }
  func.func @transform_0(%arg0: i32) -> (i32, i32, i32) {
    %c0_i32 = arith.constant 0 : i32
    %c0_i32_0 = arith.constant 0 : i32
    %c0_i32_1 = arith.constant 0 : i32
    return %arg0, %c0_i32, %c0_i32_0 : i32, i32, i32
  }
  func.func @transform_1(%arg0: i32) -> (i32, i32) {
    %c0_i32 = arith.constant 0 : i32
    %c0_i32_0 = arith.constant 0 : i32
    %c0_i32_1 = arith.constant 0 : i32
    return %c0_i32, %c0_i32_0 : i32, i32
  }
  func.func @transform_2(%arg0: i32) -> (i32, i32) {
    %c0_i32 = arith.constant 0 : i32
    %c0_i32_0 = arith.constant 0 : i32
    %c0_i32_1 = arith.constant 0 : i32
    return %c0_i32, %c0_i32_0 : i32, i32
  }
  func.func @transform_3(%arg0: i32) -> (i32, i32) {
    %c0_i32 = arith.constant 0 : i32
    %c0_i32_0 = arith.constant 0 : i32
    %c0_i32_1 = arith.constant 0 : i32
    return %c0_i32, %c0_i32_0 : i32, i32
  }
  func.func @transform_4(%arg0: i32) -> (i32, i32) {
    %c0_i32 = arith.constant 0 : i32
    %c0_i32_0 = arith.constant 0 : i32
    %c0_i32_1 = arith.constant 0 : i32
    return %c0_i32, %c0_i32_0 : i32, i32
  }
  func.func @transform_5(%arg0: i32) -> (i32, i32) {
    %c0_i32 = arith.constant 0 : i32
    %c0_i32_0 = arith.constant 0 : i32
    %c0_i32_1 = arith.constant 0 : i32
    return %c0_i32, %c0_i32_0 : i32, i32
  }
  func.func @transform_6(%arg0: i32) -> (i32, i32) {
    %c0_i32 = arith.constant 0 : i32
    %c0_i32_0 = arith.constant 0 : i32
    %c0_i32_1 = arith.constant 0 : i32
    return %c0_i32, %c0_i32_0 : i32, i32
  }
  func.func @transform_7(%arg0: i32) -> (i32, i32, i32) {
    %c0_i32 = arith.constant 0 : i32
    %c0_i32_0 = arith.constant 0 : i32
    %c0_i32_1 = arith.constant 0 : i32
    return %arg0, %c0_i32, %c0_i32_0 : i32, i32, i32
  }
}

</mosaic_0001>

<llo_original>
// kernel: tpu_custom_call.1
$region0: #{tpu_custom_call.1}
  #allocation0 [shape = 'u32[]', space=smem, size = 0x4, offset = 0x4, fixed_abs, tag = 'smem constant byte address 0x4 - core index']
  #allocation1 [shape = 'u32[144,128]{1,0:T(1,128)}', space=vmem, size = 0x12000, scoped, tag = 'internal scratch']
  %s0 = inlined_call_operand.vmem [shape: f32[2,14,32], index: 0, kind: input, shape index: {}]
  %s1 = inlined_call_operand.vmem [shape: f32[224,640], index: 1, kind: input, shape index: {}]
  %s2 = inlined_call_operand.vmem [shape: f32[1,640], index: 2, kind: input, shape index: {}]
  %s3 = inlined_call_operand.vmem [shape: f32[3200,320], index: 3, kind: input, shape index: {}]
  %s4 = inlined_call_operand.vmem [shape: f32[1,320], index: 4, kind: input, shape index: {}]
  %s5 = inlined_call_operand.vmem [shape: f32[960,10], index: 5, kind: input, shape index: {}]
  %s6 = inlined_call_operand.vmem [shape: f32[1,10], index: 6, kind: input, shape index: {}]
  %s7 = inlined_call_operand.hbm [shape: f32[2,8,10], index: 7, kind: output, shape index: {}]
  %s8 = sld [smem:[#allocation0]]
  $region38: #{tpu_custom_call.1} parent=0
    _
  %s10 = ssub.s32 1, %s8
  %s11 = scalar_select 0, %s10, %s8
  $region1: #{tpu_custom_call.1} parent=0
    #allocation2 [shape = 'u8[8192]{0}', space=vmem, size = 0x2000, scoped, tag = 'output window, operand 0, single buffered']
    #allocation3 [shape = 's32[1]{0}', space=sflag, size = 0x4, scoped, tag = 'scoped memory for tpu_custom_call.1']
    %12 = vsyncpa [#allocation3], 0
    // Predicated region
    $region2: #{tpu_custom_call.1} parent=1 // pred_check
      _
    $region3: #{tpu_custom_call.1} parent=1 // pred_check_branch
      %14 = sbr.rel (0) target = $region5
    $region4: #{tpu_custom_call.1} parent=1 // pred_region
      _
    $region5: #{tpu_custom_call.1} parent=1 // pred_fallthru
      _
    // Predicated region
    $region6: #{tpu_custom_call.1} parent=1 // pred_check
      _
    $region7: #{tpu_custom_call.1} parent=1 // pred_check_branch
      %16 = sbr.rel (0) target = $region9
    $region8: #{tpu_custom_call.1} parent=1 // pred_region
      _
    $region9: #{tpu_custom_call.1} parent=1 // pred_fallthru
      _
    // Predicated region
    $region10: #{tpu_custom_call.1} parent=1 // pred_check
      _
    $region11: #{tpu_custom_call.1} parent=1 // pred_check_branch
      %18 = sbr.rel (0) target = $region13
    $region12: #{tpu_custom_call.1} parent=1 // pred_region
      _
    $region13: #{tpu_custom_call.1} parent=1 // pred_fallthru
      _
    // Predicated region
    $region14: #{tpu_custom_call.1} parent=1 // pred_check
      _
    $region15: #{tpu_custom_call.1} parent=1 // pred_check_branch
      %20 = sbr.rel (0) target = $region17
    $region16: #{tpu_custom_call.1} parent=1 // pred_region
      _
    $region17: #{tpu_custom_call.1} parent=1 // pred_fallthru
      _
    // Predicated region
    $region18: #{tpu_custom_call.1} parent=1 // pred_check
      _
    $region19: #{tpu_custom_call.1} parent=1 // pred_check_branch
      %22 = sbr.rel (0) target = $region21
    $region20: #{tpu_custom_call.1} parent=1 // pred_region
      _
    $region21: #{tpu_custom_call.1} parent=1 // pred_fallthru
      _
    // Predicated region
    $region22: #{tpu_custom_call.1} parent=1 // pred_check
      _
    $region23: #{tpu_custom_call.1} parent=1 // pred_check_branch
      %24 = sbr.rel (0) target = $region25
    $region24: #{tpu_custom_call.1} parent=1 // pred_region
      _
    $region25: #{tpu_custom_call.1} parent=1 // pred_fallthru
      _
    // Predicated region
    $region26: #{tpu_custom_call.1} parent=1 // pred_check
      _
    $region27: #{tpu_custom_call.1} parent=1 // pred_check_branch
      %26 = sbr.rel (0) target = $region29
    $region28: #{tpu_custom_call.1} parent=1 // pred_region
      _
    $region29: #{tpu_custom_call.1} parent=1 // pred_fallthru
      _
    %v27 = vld [vmem:[%s0] sm:$0xff]
    %v28 = vld [vmem:[%s0 + $0x8] sm:$0x3f]
    %v29 = vld [vmem:[%s0 + $0x10] sm:$0xff]
    %v30 = vld [vmem:[%s0 + $0x18] sm:$0x3f]
    %vm35 = vcmask 1046528
    %v36 = vrot.slane %v27, 1
    %v37 = vrot.slane %v28, 1
    %v38 = vsel %vm35, %v36, %v37
    %v39 = vrot.slane %v29, 1
    %v40 = vrot.slane %v30, 1
    %v41 = vsel %vm35, %v39, %v40
    %42 = vrot.lane.b32.xlu0 %v38, 32
    %v43 = vpop.permute.xlu0 %42
    %44 = vrot.lane.b32.xlu0 %v41, 32
    %v45 = vpop.permute.xlu0 %44
    %vm48 = vcmask 1045504
    %v49 = vrot.slane %v27, 2
    %v50 = vrot.slane %v28, 2
    %v51 = vsel %vm48, %v49, %v50
    %v52 = vrot.slane %v29, 2
    %v53 = vrot.slane %v30, 2
    %v54 = vsel %vm48, %v52, %v53
    %55 = vrot.lane.b32.xlu0 %v51, 64
    %v56 = vpop.permute.xlu0 %55
    %57 = vrot.lane.b32.xlu0 %v54, 64
    %v58 = vpop.permute.xlu0 %57
    %vm61 = vcmask 1044480
    %v62 = vrot.slane %v27, 3
    %v63 = vrot.slane %v28, 3
    %v64 = vsel %vm61, %v62, %v63
    %v65 = vrot.slane %v29, 3
    %v66 = vrot.slane %v30, 3
    %v67 = vsel %vm61, %v65, %v66
    %68 = vrot.lane.b32.xlu0 %v64, 96
    %v69 = vpop.permute.xlu0 %68
    %70 = vrot.lane.b32.xlu0 %v67, 96
    %v71 = vpop.permute.xlu0 %70
    %vm74 = vcmask 1043456
    %v75 = vrot.slane %v27, 4
    %v76 = vrot.slane %v28, 4
    %v77 = vsel %vm74, %v75, %v76
    %v78 = vrot.slane %v29, 4
    %v79 = vrot.slane %v30, 4
    %v80 = vsel %vm74, %v78, %v79
    %vm83 = vcmask 1042432
    %v84 = vrot.slane %v27, 5
    %v85 = vrot.slane %v28, 5
    %v86 = vsel %vm83, %v84, %v85
    %v87 = vrot.slane %v29, 5
    %v88 = vrot.slane %v30, 5
    %v89 = vsel %vm83, %v87, %v88
    %90 = vrot.lane.b32.xlu0 %v86, 32
    %v91 = vpop.permute.xlu0 %90
    %92 = vrot.lane.b32.xlu0 %v89, 32
    %v93 = vpop.permute.xlu0 %92
    %vm96 = vcmask 1041408
    %v97 = vrot.slane %v27, 6
    %v98 = vrot.slane %v28, 6
    %v99 = vsel %vm96, %v97, %v98
    %v100 = vrot.slane %v29, 6
    %v101 = vrot.slane %v30, 6
    %v102 = vsel %vm96, %v100, %v101
    %103 = vrot.lane.b32.xlu0 %v99, 64
    %v104 = vpop.permute.xlu0 %103
    %105 = vrot.lane.b32.xlu0 %v102, 64
    %v106 = vpop.permute.xlu0 %105
    %vm109 = vcmask 261120
    %v110 = vsel %vm109, %v27, %v43
    %v111 = vsel %vm109, %v29, %v45
    %vm112 = vcmask 523264
    %v113 = vsel %vm112, %v110, %v56
    %v114 = vsel %vm112, %v111, %v58
    %vm115 = vcmask 785408
    %v116 = vsel %vm115, %v113, %v69
    %v117 = vsel %vm115, %v114, %v71
    %v118 = vsel %vm109, %v77, %v91
    %v119 = vsel %vm109, %v80, %v93
    %v120 = vsel %vm112, %v118, %v104
    %v121 = vsel %vm112, %v119, %v106
    %v122 = vld [vmem:[%s1] sm:$0xff]
    %v123 = vld [vmem:[%s1 + $0x8] sm:$0xff]
    %v124 = vld [vmem:[%s1 + $0x10] sm:$0xff]
    %v125 = vld [vmem:[%s1 + $0x18] sm:$0xff]
    %v126 = vld [vmem:[%s1 + $0x20] sm:$0xff]
    %v127 = vld [vmem:[%s1 + $0x28] sm:$0xff]
    %v128 = vld [vmem:[%s1 + $0x30] sm:$0xff]
    %v129 = vld [vmem:[%s1 + $0x38] sm:$0xff]
    %v130 = vld [vmem:[%s1 + $0x40] sm:$0xff]
    %v131 = vld [vmem:[%s1 + $0x48] sm:$0xff]
    %v132 = vld [vmem:[%s1 + $0x50] sm:$0xff]
    %v133 = vld [vmem:[%s1 + $0x58] sm:$0xff]
    %v134 = vld [vmem:[%s1 + $0x60] sm:$0xff]
    %v135 = vld [vmem:[%s1 + $0x68] sm:$0xff]
    %v136 = vld [vmem:[%s1 + $0x70] sm:$0xff]
    %v137 = vld [vmem:[%s1 + $0x78] sm:$0xff]
    %v138 = vld [vmem:[%s1 + $0x80] sm:$0xff]
    %v139 = vld [vmem:[%s1 + $0x88] sm:$0xff]
    %v140 = vld [vmem:[%s1 + $0x90] sm:$0xff]
    %v141 = vld [vmem:[%s1 + $0x98] sm:$0xff]
    %v142 = vld [vmem:[%s1 + $0xa0] sm:$0xff]
    %v143 = vld [vmem:[%s1 + $0xa8] sm:$0xff]
    %v144 = vld [vmem:[%s1 + $0xb0] sm:$0xff]
    %v145 = vld [vmem:[%s1 + $0xb8] sm:$0xff]
    %v146 = vld [vmem:[%s1 + $0xc0] sm:$0xff]
    %v147 = vld [vmem:[%s1 + $0xc8] sm:$0xff]
    %v148 = vld [vmem:[%s1 + $0xd0] sm:$0xff]
    %v149 = vld [vmem:[%s1 + $0xd8] sm:$0xff]
    %v150 = vld [vmem:[%s1 + $0xe0] sm:$0xff]
    %v151 = vld [vmem:[%s1 + $0xe8] sm:$0xff]
    %v152 = vld [vmem:[%s1 + $0xf0] sm:$0xff]
    %v153 = vld [vmem:[%s1 + $0xf8] sm:$0xff]
    %v154 = vld [vmem:[%s1 + $0x100] sm:$0xff]
    %v155 = vld [vmem:[%s1 + $0x108] sm:$0xff]
    %v156 = vld [vmem:[%s1 + $0x110] sm:$0xff]
    %v157 = vld [vmem:[%s1 + $0x118] sm:$0xff]
    %v158 = vld [vmem:[%s1 + $0x120] sm:$0xff]
    %v159 = vld [vmem:[%s1 + $0x128] sm:$0xff]
    %v160 = vld [vmem:[%s1 + $0x130] sm:$0xff]
    %v161 = vld [vmem:[%s1 + $0x138] sm:$0xff]
    %v162 = vld [vmem:[%s1 + $0x140] sm:$0xff]
    %v163 = vld [vmem:[%s1 + $0x148] sm:$0xff]
    %v164 = vld [vmem:[%s1 + $0x150] sm:$0xff]
    %v165 = vld [vmem:[%s1 + $0x158] sm:$0xff]
    %v166 = vld [vmem:[%s1 + $0x160] sm:$0xff]
    %v167 = vld [vmem:[%s1 + $0x168] sm:$0xff]
    %v168 = vld [vmem:[%s1 + $0x170] sm:$0xff]
    %v169 = vld [vmem:[%s1 + $0x178] sm:$0xff]
    %v170 = vld [vmem:[%s1 + $0x180] sm:$0xff]
    %v171 = vld [vmem:[%s1 + $0x188] sm:$0xff]
    %v172 = vld [vmem:[%s1 + $0x190] sm:$0xff]
    %v173 = vld [vmem:[%s1 + $0x198] sm:$0xff]
    %v174 = vld [vmem:[%s1 + $0x1a0] sm:$0xff]
    %v175 = vld [vmem:[%s1 + $0x1a8] sm:$0xff]
    %v176 = vld [vmem:[%s1 + $0x1b0] sm:$0xff]
    %v177 = vld [vmem:[%s1 + $0x1b8] sm:$0xff]
    %v178 = vld [vmem:[%s1 + $0x1c0] sm:$0xff]
    %v179 = vld [vmem:[%s1 + $0x1c8] sm:$0xff]
    %v180 = vld [vmem:[%s1 + $0x1d0] sm:$0xff]
    %v181 = vld [vmem:[%s1 + $0x1d8] sm:$0xff]
    %v182 = vld [vmem:[%s1 + $0x1e0] sm:$0xff]
    %v183 = vld [vmem:[%s1 + $0x1e8] sm:$0xff]
    %v184 = vld [vmem:[%s1 + $0x1f0] sm:$0xff]
    %v185 = vld [vmem:[%s1 + $0x1f8] sm:$0xff]
    %v186 = vld [vmem:[%s1 + $0x200] sm:$0xff]
    %v187 = vld [vmem:[%s1 + $0x208] sm:$0xff]
    %v188 = vld [vmem:[%s1 + $0x210] sm:$0xff]
    %v189 = vld [vmem:[%s1 + $0x218] sm:$0xff]
    %v190 = vld [vmem:[%s1 + $0x220] sm:$0xff]
    %v191 = vld [vmem:[%s1 + $0x228] sm:$0xff]
    %v192 = vld [vmem:[%s1 + $0x230] sm:$0xff]
    %v193 = vld [vmem:[%s1 + $0x238] sm:$0xff]
    %v194 = vld [vmem:[%s1 + $0x240] sm:$0xff]
    %v195 = vld [vmem:[%s1 + $0x248] sm:$0xff]
    %v196 = vld [vmem:[%s1 + $0x250] sm:$0xff]
    %v197 = vld [vmem:[%s1 + $0x258] sm:$0xff]
    %v198 = vld [vmem:[%s1 + $0x260] sm:$0xff]
    %v199 = vld [vmem:[%s1 + $0x268] sm:$0xff]
    %v200 = vld [vmem:[%s1 + $0x270] sm:$0xff]
    %v201 = vld [vmem:[%s1 + $0x278] sm:$0xff]
    %v202 = vld [vmem:[%s1 + $0x280] sm:$0xff]
    %v203 = vld [vmem:[%s1 + $0x288] sm:$0xff]
    %v204 = vld [vmem:[%s1 + $0x290] sm:$0xff]
    %v205 = vld [vmem:[%s1 + $0x298] sm:$0xff]
    %v206 = vld [vmem:[%s1 + $0x2a0] sm:$0xff]
    %v207 = vld [vmem:[%s1 + $0x2a8] sm:$0xff]
    %v208 = vld [vmem:[%s1 + $0x2b0] sm:$0xff]
    %v209 = vld [vmem:[%s1 + $0x2b8] sm:$0xff]
    %v210 = vld [vmem:[%s1 + $0x2c0] sm:$0xff]
    %v211 = vld [vmem:[%s1 + $0x2c8] sm:$0xff]
    %v212 = vld [vmem:[%s1 + $0x2d0] sm:$0xff]
    %v213 = vld [vmem:[%s1 + $0x2d8] sm:$0xff]
    %v214 = vld [vmem:[%s1 + $0x2e0] sm:$0xff]
    %v215 = vld [vmem:[%s1 + $0x2e8] sm:$0xff]
    %v216 = vld [vmem:[%s1 + $0x2f0] sm:$0xff]
    %v217 = vld [vmem:[%s1 + $0x2f8] sm:$0xff]
    %v218 = vld [vmem:[%s1 + $0x300] sm:$0xff]
    %v219 = vld [vmem:[%s1 + $0x308] sm:$0xff]
    %v220 = vld [vmem:[%s1 + $0x310] sm:$0xff]
    %v221 = vld [vmem:[%s1 + $0x318] sm:$0xff]
    %v222 = vld [vmem:[%s1 + $0x320] sm:$0xff]
    %v223 = vld [vmem:[%s1 + $0x328] sm:$0xff]
    %v224 = vld [vmem:[%s1 + $0x330] sm:$0xff]
    %v225 = vld [vmem:[%s1 + $0x338] sm:$0xff]
    %v226 = vld [vmem:[%s1 + $0x340] sm:$0xff]
    %v227 = vld [vmem:[%s1 + $0x348] sm:$0xff]
    %v228 = vld [vmem:[%s1 + $0x350] sm:$0xff]
    %v229 = vld [vmem:[%s1 + $0x358] sm:$0xff]
    %v230 = vld [vmem:[%s1 + $0x360] sm:$0xff]
    %v231 = vld [vmem:[%s1 + $0x368] sm:$0xff]
    %v232 = vld [vmem:[%s1 + $0x370] sm:$0xff]
    %v233 = vld [vmem:[%s1 + $0x378] sm:$0xff]
    %v234 = vld [vmem:[%s1 + $0x380] sm:$0xff]
    %v235 = vld [vmem:[%s1 + $0x388] sm:$0xff]
    %v236 = vld [vmem:[%s1 + $0x390] sm:$0xff]
    %v237 = vld [vmem:[%s1 + $0x398] sm:$0xff]
    %v238 = vld [vmem:[%s1 + $0x3a0] sm:$0xff]
    %v239 = vld [vmem:[%s1 + $0x3a8] sm:$0xff]
    %v240 = vld [vmem:[%s1 + $0x3b0] sm:$0xff]
    %v241 = vld [vmem:[%s1 + $0x3b8] sm:$0xff]
    %v242 = vld [vmem:[%s1 + $0x3c0] sm:$0xff]
    %v243 = vld [vmem:[%s1 + $0x3c8] sm:$0xff]
    %v244 = vld [vmem:[%s1 + $0x3d0] sm:$0xff]
    %v245 = vld [vmem:[%s1 + $0x3d8] sm:$0xff]
    %v246 = vld [vmem:[%s1 + $0x3e0] sm:$0xff]
    %v247 = vld [vmem:[%s1 + $0x3e8] sm:$0xff]
    %v248 = vld [vmem:[%s1 + $0x3f0] sm:$0xff]
    %v249 = vld [vmem:[%s1 + $0x3f8] sm:$0xff]
    %v250 = vld [vmem:[%s1 + $0x400] sm:$0xff]
    %v251 = vld [vmem:[%s1 + $0x408] sm:$0xff]
    %v252 = vld [vmem:[%s1 + $0x410] sm:$0xff]
    %v253 = vld [vmem:[%s1 + $0x418] sm:$0xff]
    %v254 = vld [vmem:[%s1 + $0x420] sm:$0xff]
    %v255 = vld [vmem:[%s1 + $0x428] sm:$0xff]
    %v256 = vld [vmem:[%s1 + $0x430] sm:$0xff]
    %v257 = vld [vmem:[%s1 + $0x438] sm:$0xff]
    %v258 = vld [vmem:[%s1 + $0x440] sm:$0xff]
    %v259 = vld [vmem:[%s1 + $0x448] sm:$0xff]
    %v260 = vld [vmem:[%s1 + $0x450] sm:$0xff]
    %v261 = vld [vmem:[%s1 + $0x458] sm:$0xff]
    %v262 = vld [vmem:[%s2] sm:$0x1f]
    %v264 = vlaneseq
    %v265 = vshrl.u32 %v264, 7
    %v266 = vsub.s32 0, %v265
    %v267 = vrot.slane %v262, %v266
    %v268 = vlaneseq
    %v269 = vshrl.u32 %v268, 7
    %v270 = vsub.s32 1, %v269
    %v271 = vrot.slane %v262, %v270
    %v272 = vlaneseq
    %v273 = vshrl.u32 %v272, 7
    %v274 = vsub.s32 2, %v273
    %v275 = vrot.slane %v262, %v274
    %v276 = vlaneseq
    %v277 = vshrl.u32 %v276, 7
    %v278 = vsub.s32 3, %v277
    %v279 = vrot.slane %v262, %v278
    %v280 = vlaneseq
    %v281 = vshrl.u32 %v280, 7
    %v282 = vsub.s32 4, %v281
    %v283 = vrot.slane %v262, %v282
    %v290 = vsel %vm115, %v120, 0
    %v293 = vsel %vm115, %v121, 0
    %295 = vmatprep.subr.mxu0 %v123
    %296 = vmatpush1.msra.mxu0 %v122
    %297 = vmatprep.subr.mxu0 %v128
    %298 = vmatpush1.msra.mxu0 %v127
    %299 = vmatprep.subr.mxu0 %v133
    %300 = vmatpush1.msra.mxu0 %v132
    %301 = vmatprep.subr.mxu0 %v138
    %302 = vmatpush1.msra.mxu0 %v137
    %303 = vmatprep.subr.mxu0 %v143
    %304 = vmatpush1.msra.mxu0 %v142
    %305 = vmatprep.subr.mxu0 %v148
    %306 = vmatpush1.msra.mxu0 %v147
    %307 = vmatprep.subr.mxu0 %v153
    %308 = vmatpush1.msra.mxu0 %v152
    %309 = vmatprep.subr.mxu0 %v158
    %310 = vmatpush1.msra.mxu0 %v157
    %311 = vmatprep.subr.mxu0 %v163
    %312 = vmatpush1.msra.mxu0 %v162
    %313 = vmatprep.subr.mxu0 %v168
    %314 = vmatpush1.msra.mxu0 %v167
    %315 = vmatprep.subr.mxu0 %v173
    %316 = vmatpush1.msra.mxu0 %v172
    %317 = vmatprep.subr.mxu0 %v178
    %318 = vmatpush1.msra.mxu0 %v177
    %319 = vmatprep.subr.mxu0 %v183
    %320 = vmatpush1.msra.mxu0 %v182
    %321 = vmatprep.subr.mxu0 %v188
    %322 = vmatpush1.msra.mxu0 %v187
    %323 = vmatprep.subr.mxu0 %v193
    %324 = vmatpush1.msra.mxu0 %v192
    %325 = vmatprep.subr.mxu0 %v198
    %326 = vmatpush1.msra.mxu0 %v197
    %327 = vmatprep.subr.mxu0 %v203
    %328 = vmatpush1.msra.mxu0 %v202
    %329 = vmatprep.subr.mxu0 %v208
    %330 = vmatpush1.msra.mxu0 %v207
    %331 = vmatprep.subr.mxu0 %v213
    %332 = vmatpush1.msra.mxu0 %v212
    %333 = vmatprep.subr.mxu0 %v218
    %334 = vmatpush1.msra.mxu0 %v217
    %335 = vmatprep.subr.mxu0 %v223
    %336 = vmatpush1.msra.mxu0 %v222
    %337 = vmatprep.subr.mxu0 %v228
    %338 = vmatpush1.msra.mxu0 %v227
    %339 = vmatprep.subr.mxu0 %v233
    %340 = vmatpush1.msra.mxu0 %v232
    %341 = vmatprep.subr.mxu0 %v238
    %342 = vmatpush1.msra.mxu0 %v237
    %343 = vmatprep.subr.mxu0 %v243
    %344 = vmatpush1.msra.mxu0 %v242
    %345 = vmatprep.subr.mxu0 %v248
    %346 = vmatpush1.msra.mxu0 %v247
    %347 = vmatprep.subr.mxu0 %v253
    %348 = vmatpush1.msra.mxu0 %v252
    %349 = vmatprep.subr.mxu0 %v258
    %350 = vmatpush1.msra.mxu0 %v257
    %351 = vmatprep.subr.mxu0 0.0
    %352 = vmatpush1.msra.mxu0 0.0
    %353 = vmatprep.subr.mxu0 0.0
    %354 = vmatpush1.msra.mxu0 0.0
    %355 = vmatprep.subr.mxu0 0.0
    %356 = vmatpush1.msra.mxu0 0.0
    %357 = vmatprep.subr.mxu0 0.0
    %358 = vmatpush1.msra.mxu0 0.0
    %359 = vmatprep.mubr.f32.mxu0 %v290
    %360 = vmatmul.mubr.f32.gmra.mrb[0].mxu0 %v116
    %v361 = vpop.f32.mrb[0].mxu0
    %v362 = vadd.f32 %v267, %v361
    %v363 = vpop.f32.mrb[0].mxu0
    %v364 = vadd.f32 %v271, %v363
    %365 = vmatprep.mubr.f32.mxu0 %v293
    %366 = vmatmul.mubr.f32.gmra.mrb[0].mxu0 %v117
    %v367 = vpop.f32.mrb[0].mxu0
    %v368 = vadd.f32 %v267, %v367
    %v369 = vpop.f32.mrb[0].mxu0
    %v370 = vadd.f32 %v271, %v369
    %371 = vdwg.mxu0
    %372 = vmatprep.subr.mxu0 %v125
    %373 = vmatpush1.msra.mxu0 %v124
    %374 = vmatprep.subr.mxu0 %v130
    %375 = vmatpush1.msra.mxu0 %v129
    %376 = vmatprep.subr.mxu0 %v135
    %377 = vmatpush1.msra.mxu0 %v134
    %378 = vmatprep.subr.mxu0 %v140
    %379 = vmatpush1.msra.mxu0 %v139
    %380 = vmatprep.subr.mxu0 %v145
    %381 = vmatpush1.msra.mxu0 %v144
    %382 = vmatprep.subr.mxu0 %v150
    %383 = vmatpush1.msra.mxu0 %v149
    %384 = vmatprep.subr.mxu0 %v155
    %385 = vmatpush1.msra.mxu0 %v154
    %386 = vmatprep.subr.mxu0 %v160
    %387 = vmatpush1.msra.mxu0 %v159
    %388 = vmatprep.subr.mxu0 %v165
    %389 = vmatpush1.msra.mxu0 %v164
    %390 = vmatprep.subr.mxu0 %v170
    %391 = vmatpush1.msra.mxu0 %v169
    %392 = vmatprep.subr.mxu0 %v175
    %393 = vmatpush1.msra.mxu0 %v174
    %394 = vmatprep.subr.mxu0 %v180
    %395 = vmatpush1.msra.mxu0 %v179
    %396 = vmatprep.subr.mxu0 %v185
    %397 = vmatpush1.msra.mxu0 %v184
    %398 = vmatprep.subr.mxu0 %v190
    %399 = vmatpush1.msra.mxu0 %v189
    %400 = vmatprep.subr.mxu0 %v195
    %401 = vmatpush1.msra.mxu0 %v194
    %402 = vmatprep.subr.mxu0 %v200
    %403 = vmatpush1.msra.mxu0 %v199
    %404 = vmatprep.subr.mxu0 %v205
    %405 = vmatpush1.msra.mxu0 %v204
    %406 = vmatprep.subr.mxu0 %v210
    %407 = vmatpush1.msra.mxu0 %v209
    %408 = vmatprep.subr.mxu0 %v215
    %409 = vmatpush1.msra.mxu0 %v214
    %410 = vmatprep.subr.mxu0 %v220
    %411 = vmatpush1.msra.mxu0 %v219
    %412 = vmatprep.subr.mxu0 %v225
    %413 = vmatpush1.msra.mxu0 %v224
    %414 = vmatprep.subr.mxu0 %v230
    %415 = vmatpush1.msra.mxu0 %v229
    %416 = vmatprep.subr.mxu0 %v235
    %417 = vmatpush1.msra.mxu0 %v234
    %418 = vmatprep.subr.mxu0 %v240
    %419 = vmatpush1.msra.mxu0 %v239
    %420 = vmatprep.subr.mxu0 %v245
    %421 = vmatpush1.msra.mxu0 %v244
    %422 = vmatprep.subr.mxu0 %v250
    %423 = vmatpush1.msra.mxu0 %v249
    %424 = vmatprep.subr.mxu0 %v255
    %425 = vmatpush1.msra.mxu0 %v254
    %426 = vmatprep.subr.mxu0 %v260
    %427 = vmatpush1.msra.mxu0 %v259
    %428 = vmatprep.subr.mxu0 0.0
    %429 = vmatpush1.msra.mxu0 0.0
    %430 = vmatprep.subr.mxu0 0.0
    %431 = vmatpush1.msra.mxu0 0.0
    %432 = vmatprep.subr.mxu0 0.0
    %433 = vmatpush1.msra.mxu0 0.0
    %434 = vmatprep.subr.mxu0 0.0
    %435 = vmatpush1.msra.mxu0 0.0
    %436 = vmatprep.mubr.f32.mxu0 %v290
    %437 = vmatmul.mubr.f32.gmra.mrb[0].mxu0 %v116
    %v438 = vpop.f32.mrb[0].mxu0
    %v439 = vadd.f32 %v275, %v438
    %v440 = vpop.f32.mrb[0].mxu0
    %v441 = vadd.f32 %v279, %v440
    %442 = vmatprep.mubr.f32.mxu0 %v293
    %443 = vmatmul.mubr.f32.gmra.mrb[0].mxu0 %v117
    %v444 = vpop.f32.mrb[0].mxu0
    %v445 = vadd.f32 %v275, %v444
    %v446 = vpop.f32.mrb[0].mxu0
    %v447 = vadd.f32 %v279, %v446
    %448 = vdwg.mxu0
    %449 = vmatprep.subr.mxu0 0.0
    %450 = vmatpush1.msra.mxu0 %v126
    %451 = vmatprep.subr.mxu0 0.0
    %452 = vmatpush1.msra.mxu0 %v131
    %453 = vmatprep.subr.mxu0 0.0
    %454 = vmatpush1.msra.mxu0 %v136
    %455 = vmatprep.subr.mxu0 0.0
    %456 = vmatpush1.msra.mxu0 %v141
    %457 = vmatprep.subr.mxu0 0.0
    %458 = vmatpush1.msra.mxu0 %v146
    %459 = vmatprep.subr.mxu0 0.0
    %460 = vmatpush1.msra.mxu0 %v151
    %461 = vmatprep.subr.mxu0 0.0
    %462 = vmatpush1.msra.mxu0 %v156
    %463 = vmatprep.subr.mxu0 0.0
    %464 = vmatpush1.msra.mxu0 %v161
    %465 = vmatprep.subr.mxu0 0.0
    %466 = vmatpush1.msra.mxu0 %v166
    %467 = vmatprep.subr.mxu0 0.0
    %468 = vmatpush1.msra.mxu0 %v171
    %469 = vmatprep.subr.mxu0 0.0
    %470 = vmatpush1.msra.mxu0 %v176
    %471 = vmatprep.subr.mxu0 0.0
    %472 = vmatpush1.msra.mxu0 %v181
    %473 = vmatprep.subr.mxu0 0.0
    %474 = vmatpush1.msra.mxu0 %v186
    %475 = vmatprep.subr.mxu0 0.0
    %476 = vmatpush1.msra.mxu0 %v191
    %477 = vmatprep.subr.mxu0 0.0
    %478 = vmatpush1.msra.mxu0 %v196
    %479 = vmatprep.subr.mxu0 0.0
    %480 = vmatpush1.msra.mxu0 %v201
    %481 = vmatprep.subr.mxu0 0.0
    %482 = vmatpush1.msra.mxu0 %v206
    %483 = vmatprep.subr.mxu0 0.0
    %484 = vmatpush1.msra.mxu0 %v211
    %485 = vmatprep.subr.mxu0 0.0
    %486 = vmatpush1.msra.mxu0 %v216
    %487 = vmatprep.subr.mxu0 0.0
    %488 = vmatpush1.msra.mxu0 %v221
    %489 = vmatprep.subr.mxu0 0.0
    %490 = vmatpush1.msra.mxu0 %v226
    %491 = vmatprep.subr.mxu0 0.0
    %492 = vmatpush1.msra.mxu0 %v231
    %493 = vmatprep.subr.mxu0 0.0
    %494 = vmatpush1.msra.mxu0 %v236
    %495 = vmatprep.subr.mxu0 0.0
    %496 = vmatpush1.msra.mxu0 %v241
    %497 = vmatprep.subr.mxu0 0.0
    %498 = vmatpush1.msra.mxu0 %v246
    %499 = vmatprep.subr.mxu0 0.0
    %500 = vmatpush1.msra.mxu0 %v251
    %501 = vmatprep.subr.mxu0 0.0
    %502 = vmatpush1.msra.mxu0 %v256
    %503 = vmatprep.subr.mxu0 0.0
    %504 = vmatpush1.msra.mxu0 %v261
    %505 = vmatprep.subr.mxu0 0.0
    %506 = vmatpush1.msra.mxu0 0.0
    %507 = vmatprep.subr.mxu0 0.0
    %508 = vmatpush1.msra.mxu0 0.0
    %509 = vmatprep.subr.mxu0 0.0
    %510 = vmatpush1.msra.mxu0 0.0
    %511 = vmatprep.subr.mxu0 0.0
    %512 = vmatpush1.msra.mxu0 0.0
    %513 = vmatprep.mubr.f32.mxu0 %v290
    %514 = vmatmul.mubr.f32.gmra.mrb[0].mxu0 %v116
    %v515 = vpop.f32.mrb[0].mxu0
    %v516 = vadd.f32 %v283, %v515
    %v517 = vpop.f32.mrb[0].mxu0
    %518 = vmatprep.mubr.f32.mxu0 %v293
    %519 = vmatmul.mubr.f32.gmra.mrb[0].mxu0 %v117
    %v520 = vpop.f32.mrb[0].mxu0
    %v521 = vadd.f32 %v283, %v520
    %v522 = vpop.f32.mrb[0].mxu0
    %523 = vdwg.mxu0
    %v524 = vmax.f32 %v362, 0.0
    %v525 = vmax.f32 %v364, 0.0
    %v526 = vmax.f32 %v439, 0.0
    %v527 = vmax.f32 %v441, 0.0
    %v528 = vmax.f32 %v516, 0.0
    %v529 = vmax.f32 %v368, 0.0
    %v530 = vmax.f32 %v370, 0.0
    %v531 = vmax.f32 %v445, 0.0
    %v532 = vmax.f32 %v447, 0.0
    %v533 = vmax.f32 %v521, 0.0
    %v544 = vrot.slane %v524, 6
    %v545 = vrot.slane %v525, 6
    %v546 = vrot.slane %v526, 6
    %v547 = vrot.slane %v527, 6
    %v548 = vrot.slane %v528, 6
    %v549 = vrot.slane %v529, 6
    %v550 = vrot.slane %v530, 6
    %v551 = vrot.slane %v531, 6
    %v552 = vrot.slane %v532, 6
    %v553 = vrot.slane %v533, 6
    %v564 = vsel %vm96, 0.0, %v544
    %v565 = vsel %vm96, 0.0, %v545
    %v566 = vsel %vm96, 0.0, %v546
    %v567 = vsel %vm96, 0.0, %v547
    %v568 = vsel %vm96, 0.0, %v548
    %v569 = vsel %vm96, 0.0, %v549
    %v570 = vsel %vm96, 0.0, %v550
    %v571 = vsel %vm96, 0.0, %v551
    %v572 = vsel %vm96, 0.0, %v552
    %v573 = vsel %vm96, 0.0, %v553
    %v574 = vsel %vm96, %v544, 0.0
    %v575 = vsel %vm96, %v545, 0.0
    %v576 = vsel %vm96, %v546, 0.0
    %v577 = vsel %vm96, %v547, 0.0
    %v578 = vsel %vm96, %v548, 0.0
    %v579 = vsel %vm96, %v549, 0.0
    %v580 = vsel %vm96, %v550, 0.0
    %v581 = vsel %vm96, %v551, 0.0
    %v582 = vsel %vm96, %v552, 0.0
    %v583 = vsel %vm96, %v553, 0.0
    %v604 = vrot.slane %v564, 1
    %v605 = vrot.slane %v574, 1
    %v606 = vsel %vm35, %v604, %v605
    %v607 = vrot.slane %v565, 1
    %v608 = vrot.slane %v575, 1
    %v609 = vsel %vm35, %v607, %v608
    %v610 = vrot.slane %v566, 1
    %v611 = vrot.slane %v576, 1
    %v612 = vsel %vm35, %v610, %v611
    %v613 = vrot.slane %v567, 1
    %v614 = vrot.slane %v577, 1
    %v615 = vsel %vm35, %v613, %v614
    %v616 = vrot.slane %v568, 1
    %v617 = vrot.slane %v578, 1
    %v618 = vsel %vm35, %v616, %v617
    %v619 = vrot.slane %v569, 1
    %v620 = vrot.slane %v579, 1
    %v621 = vsel %vm35, %v619, %v620
    %v622 = vrot.slane %v570, 1
    %v623 = vrot.slane %v580, 1
    %v624 = vsel %vm35, %v622, %v623
    %v625 = vrot.slane %v571, 1
    %v626 = vrot.slane %v581, 1
    %v627 = vsel %vm35, %v625, %v626
    %v628 = vrot.slane %v572, 1
    %v629 = vrot.slane %v582, 1
    %v630 = vsel %vm35, %v628, %v629
    %v631 = vrot.slane %v573, 1
    %v632 = vrot.slane %v583, 1
    %v633 = vsel %vm35, %v631, %v632
    %v644 = vrot.slane %v564, 2
    %v645 = vrot.slane %v574, 2
    %v646 = vsel %vm48, %v644, %v645
    %v647 = vrot.slane %v565, 2
    %v648 = vrot.slane %v575, 2
    %v649 = vsel %vm48, %v647, %v648
    %v650 = vrot.slane %v566, 2
    %v651 = vrot.slane %v576, 2
    %v652 = vsel %vm48, %v650, %v651
    %v653 = vrot.slane %v567, 2
    %v654 = vrot.slane %v577, 2
    %v655 = vsel %vm48, %v653, %v654
    %v656 = vrot.slane %v568, 2
    %v657 = vrot.slane %v578, 2
    %v658 = vsel %vm48, %v656, %v657
    %v659 = vrot.slane %v569, 2
    %v660 = vrot.slane %v579, 2
    %v661 = vsel %vm48, %v659, %v660
    %v662 = vrot.slane %v570, 2
    %v663 = vrot.slane %v580, 2
    %v664 = vsel %vm48, %v662, %v663
    %v665 = vrot.slane %v571, 2
    %v666 = vrot.slane %v581, 2
    %v667 = vsel %vm48, %v665, %v666
    %v668 = vrot.slane %v572, 2
    %v669 = vrot.slane %v582, 2
    %v670 = vsel %vm48, %v668, %v669
    %v671 = vrot.slane %v573, 2
    %v672 = vrot.slane %v583, 2
    %v673 = vsel %vm48, %v671, %v672
    %v684 = vrot.slane %v564, 3
    %v685 = vrot.slane %v574, 3
    %v686 = vsel %vm61, %v684, %v685
    %v687 = vrot.slane %v565, 3
    %v688 = vrot.slane %v575, 3
    %v689 = vsel %vm61, %v687, %v688
    %v690 = vrot.slane %v566, 3
    %v691 = vrot.slane %v576, 3
    %v692 = vsel %vm61, %v690, %v691
    %v693 = vrot.slane %v567, 3
    %v694 = vrot.slane %v577, 3
    %v695 = vsel %vm61, %v693, %v694
    %v696 = vrot.slane %v568, 3
    %v697 = vrot.slane %v578, 3
    %v698 = vsel %vm61, %v696, %v697
    %v699 = vrot.slane %v569, 3
    %v700 = vrot.slane %v579, 3
    %v701 = vsel %vm61, %v699, %v700
    %v702 = vrot.slane %v570, 3
    %v703 = vrot.slane %v580, 3
    %v704 = vsel %vm61, %v702, %v703
    %v705 = vrot.slane %v571, 3
    %v706 = vrot.slane %v581, 3
    %v707 = vsel %vm61, %v705, %v706
    %v708 = vrot.slane %v572, 3
    %v709 = vrot.slane %v582, 3
    %v710 = vsel %vm61, %v708, %v709
    %v711 = vrot.slane %v573, 3
    %v712 = vrot.slane %v583, 3
    %v713 = vsel %vm61, %v711, %v712
    %v724 = vrot.slane %v564, 4
    %v725 = vrot.slane %v574, 4
    %v726 = vsel %vm74, %v724, %v725
    %v727 = vrot.slane %v565, 4
    %v728 = vrot.slane %v575, 4
    %v729 = vsel %vm74, %v727, %v728
    %v730 = vrot.slane %v566, 4
    %v731 = vrot.slane %v576, 4
    %v732 = vsel %vm74, %v730, %v731
    %v733 = vrot.slane %v567, 4
    %v734 = vrot.slane %v577, 4
    %v735 = vsel %vm74, %v733, %v734
    %v736 = vrot.slane %v568, 4
    %v737 = vrot.slane %v578, 4
    %v738 = vsel %vm74, %v736, %v737
    %v739 = vrot.slane %v569, 4
    %v740 = vrot.slane %v579, 4
    %v741 = vsel %vm74, %v739, %v740
    %v742 = vrot.slane %v570, 4
    %v743 = vrot.slane %v580, 4
    %v744 = vsel %vm74, %v742, %v743
    %v745 = vrot.slane %v571, 4
    %v746 = vrot.slane %v581, 4
    %v747 = vsel %vm74, %v745, %v746
    %v748 = vrot.slane %v572, 4
    %v749 = vrot.slane %v582, 4
    %v750 = vsel %vm74, %v748, %v749
    %v751 = vrot.slane %v573, 4
    %v752 = vrot.slane %v583, 4
    %v753 = vsel %vm74, %v751, %v752
    %v764 = vld [vmem:[%s3] sm:$0xff]
    %v765 = vld [vmem:[%s3 + $0x8] sm:$0xff]
    %v766 = vld [vmem:[%s3 + $0x10] sm:$0xff]
    %v767 = vld [vmem:[%s3 + $0x18] sm:$0xff]
    %v768 = vld [vmem:[%s3 + $0x20] sm:$0xff]
    %v769 = vld [vmem:[%s3 + $0x28] sm:$0xff]
    %v770 = vld [vmem:[%s3 + $0x30] sm:$0xff]
    %v771 = vld [vmem:[%s3 + $0x38] sm:$0xff]
    %v772 = vld [vmem:[%s3 + $0x40] sm:$0xff]
    %v773 = vld [vmem:[%s3 + $0x48] sm:$0xff]
    %v774 = vld [vmem:[%s3 + $0x50] sm:$0xff]
    %v775 = vld [vmem:[%s3 + $0x58] sm:$0xff]
    %v776 = vld [vmem:[%s3 + $0x60] sm:$0xff]
    %v777 = vld [vmem:[%s3 + $0x68] sm:$0xff]
    %v778 = vld [vmem:[%s3 + $0x70] sm:$0xff]
    %v779 = vld [vmem:[%s3 + $0x78] sm:$0xff]
    %v780 = vld [vmem:[%s3 + $0x80] sm:$0xff]
    %v781 = vld [vmem:[%s3 + $0x88] sm:$0xff]
    %v782 = vld [vmem:[%s3 + $0x90] sm:$0xff]
    %v783 = vld [vmem:[%s3 + $0x98] sm:$0xff]
    %v784 = vld [vmem:[%s3 + $0xa0] sm:$0xff]
    %v785 = vld [vmem:[%s3 + $0xa8] sm:$0xff]
    %v786 = vld [vmem:[%s3 + $0xb0] sm:$0xff]
    %v787 = vld [vmem:[%s3 + $0xb8] sm:$0xff]
    %v788 = vld [vmem:[%s3 + $0xc0] sm:$0xff]
    %v789 = vld [vmem:[%s3 + $0xc8] sm:$0xff]
    %v790 = vld [vmem:[%s3 + $0xd0] sm:$0xff]
    %v791 = vld [vmem:[%s3 + $0xd8] sm:$0xff]
    %v792 = vld [vmem:[%s3 + $0xe0] sm:$0xff]
    %v793 = vld [vmem:[%s3 + $0xe8] sm:$0xff]
    %v794 = vld [vmem:[%s3 + $0xf0] sm:$0xff]
    %v795 = vld [vmem:[%s3 + $0xf8] sm:$0xff]
    %v796 = vld [vmem:[%s3 + $0x100] sm:$0xff]
    %v797 = vld [vmem:[%s3 + $0x108] sm:$0xff]
    %v798 = vld [vmem:[%s3 + $0x110] sm:$0xff]
    %v799 = vld [vmem:[%s3 + $0x118] sm:$0xff]
    %v800 = vld [vmem:[%s3 + $0x120] sm:$0xff]
    %v801 = vld [vmem:[%s3 + $0x128] sm:$0xff]
    %v802 = vld [vmem:[%s3 + $0x130] sm:$0xff]
    %v803 = vld [vmem:[%s3 + $0x138] sm:$0xff]
    %v804 = vld [vmem:[%s3 + $0x140] sm:$0xff]
    %v805 = vld [vmem:[%s3 + $0x148] sm:$0xff]
    %v806 = vld [vmem:[%s3 + $0x150] sm:$0xff]
    %v807 = vld [vmem:[%s3 + $0x158] sm:$0xff]
    %v808 = vld [vmem:[%s3 + $0x160] sm:$0xff]
    %v809 = vld [vmem:[%s3 + $0x168] sm:$0xff]
    %v810 = vld [vmem:[%s3 + $0x170] sm:$0xff]
    %v811 = vld [vmem:[%s3 + $0x178] sm:$0xff]
    %v812 = vld [vmem:[%s3 + $0x180] sm:$0xff]
    %v813 = vld [vmem:[%s3 + $0x188] sm:$0xff]
    %v814 = vld [vmem:[%s3 + $0x190] sm:$0xff]
    %v815 = vld [vmem:[%s3 + $0x198] sm:$0xff]
    %v816 = vld [vmem:[%s3 + $0x1a0] sm:$0xff]
    %v817 = vld [vmem:[%s3 + $0x1a8] sm:$0xff]
    %v818 = vld [vmem:[%s3 + $0x1b0] sm:$0xff]
    %v819 = vld [vmem:[%s3 + $0x1b8] sm:$0xff]
    %v820 = vld [vmem:[%s3 + $0x1c0] sm:$0xff]
    %v821 = vld [vmem:[%s3 + $0x1c8] sm:$0xff]
    %v822 = vld [vmem:[%s3 + $0x1d0] sm:$0xff]
    %v823 = vld [vmem:[%s3 + $0x1d8] sm:$0xff]
    %v824 = vld [vmem:[%s3 + $0x1e0] sm:$0xff]
    %v825 = vld [vmem:[%s3 + $0x1e8] sm:$0xff]
    %v826 = vld [vmem:[%s3 + $0x1f0] sm:$0xff]
    %v827 = vld [vmem:[%s3 + $0x1f8] sm:$0xff]
    %v828 = vld [vmem:[%s3 + $0x200] sm:$0xff]
    %v829 = vld [vmem:[%s3 + $0x208] sm:$0xff]
    %v830 = vld [vmem:[%s3 + $0x210] sm:$0xff]
    %v831 = vld [vmem:[%s3 + $0x218] sm:$0xff]
    %v832 = vld [vmem:[%s3 + $0x220] sm:$0xff]
    %v833 = vld [vmem:[%s3 + $0x228] sm:$0xff]
    %v834 = vld [vmem:[%s3 + $0x230] sm:$0xff]
    %v835 = vld [vmem:[%s3 + $0x238] sm:$0xff]
    %v836 = vld [vmem:[%s3 + $0x240] sm:$0xff]
    %v837 = vld [vmem:[%s3 + $0x248] sm:$0xff]
    %v838 = vld [vmem:[%s3 + $0x250] sm:$0xff]
    %v839 = vld [vmem:[%s3 + $0x258] sm:$0xff]
    %v840 = vld [vmem:[%s3 + $0x260] sm:$0xff]
    %v841 = vld [vmem:[%s3 + $0x268] sm:$0xff]
    %v842 = vld [vmem:[%s3 + $0x270] sm:$0xff]
    %v843 = vld [vmem:[%s3 + $0x278] sm:$0xff]
    %v844 = vld [vmem:[%s3 + $0x280] sm:$0xff]
    %v845 = vld [vmem:[%s3 + $0x288] sm:$0xff]
    %v846 = vld [vmem:[%s3 + $0x290] sm:$0xff]
    %v847 = vld [vmem:[%s3 + $0x298] sm:$0xff]
    %v848 = vld [vmem:[%s3 + $0x2a0] sm:$0xff]
    %v849 = vld [vmem:[%s3 + $0x2a8] sm:$0xff]
    %v850 = vld [vmem:[%s3 + $0x2b0] sm:$0xff]
    %v851 = vld [vmem:[%s3 + $0x2b8] sm:$0xff]
    %v852 = vld [vmem:[%s3 + $0x2c0] sm:$0xff]
    %v853 = vld [vmem:[%s3 + $0x2c8] sm:$0xff]
    %v854 = vld [vmem:[%s3 + $0x2d0] sm:$0xff]
    %v855 = vld [vmem:[%s3 + $0x2d8] sm:$0xff]
    %v856 = vld [vmem:[%s3 + $0x2e0] sm:$0xff]
    %v857 = vld [vmem:[%s3 + $0x2e8] sm:$0xff]
    %v858 = vld [vmem:[%s3 + $0x2f0] sm:$0xff]
    %v859 = vld [vmem:[%s3 + $0x2f8] sm:$0xff]
    %v860 = vld [vmem:[%s3 + $0x300] sm:$0xff]
    %v861 = vld [vmem:[%s3 + $0x308] sm:$0xff]
    %v862 = vld [vmem:[%s3 + $0x310] sm:$0xff]
    %v863 = vld [vmem:[%s3 + $0x318] sm:$0xff]
    %v864 = vld [vmem:[%s3 + $0x320] sm:$0xff]
    %v865 = vld [vmem:[%s3 + $0x328] sm:$0xff]
    %v866 = vld [vmem:[%s3 + $0x330] sm:$0xff]
    %v867 = vld [vmem:[%s3 + $0x338] sm:$0xff]
    %v868 = vld [vmem:[%s3 + $0x340] sm:$0xff]
    %v869 = vld [vmem:[%s3 + $0x348] sm:$0xff]
    %v870 = vld [vmem:[%s3 + $0x350] sm:$0xff]
    %v871 = vld [vmem:[%s3 + $0x358] sm:$0xff]
    %v872 = vld [vmem:[%s3 + $0x360] sm:$0xff]
    %v873 = vld [vmem:[%s3 + $0x368] sm:$0xff]
    %v874 = vld [vmem:[%s3 + $0x370] sm:$0xff]
    %v875 = vld [vmem:[%s3 + $0x378] sm:$0xff]
    %v876 = vld [vmem:[%s3 + $0x380] sm:$0xff]
    %v877 = vld [vmem:[%s3 + $0x388] sm:$0xff]
    %v878 = vld [vmem:[%s3 + $0x390] sm:$0xff]
    %v879 = vld [vmem:[%s3 + $0x398] sm:$0xff]
    %v880 = vld [vmem:[%s3 + $0x3a0] sm:$0xff]
    %v881 = vld [vmem:[%s3 + $0x3a8] sm:$0xff]
    %v882 = vld [vmem:[%s3 + $0x3b0] sm:$0xff]
    %v883 = vld [vmem:[%s3 + $0x3b8] sm:$0xff]
    %v884 = vld [vmem:[%s3 + $0x3c0] sm:$0xff]
    %v885 = vld [vmem:[%s3 + $0x3c8] sm:$0xff]
    %v886 = vld [vmem:[%s3 + $0x3d0] sm:$0xff]
    %v887 = vld [vmem:[%s3 + $0x3d8] sm:$0xff]
    %v888 = vld [vmem:[%s3 + $0x3e0] sm:$0xff]
    %v889 = vld [vmem:[%s3 + $0x3e8] sm:$0xff]
    %v890 = vld [vmem:[%s3 + $0x3f0] sm:$0xff]
    %v891 = vld [vmem:[%s3 + $0x3f8] sm:$0xff]
    %v892 = vld [vmem:[%s3 + $0x400] sm:$0xff]
    %v893 = vld [vmem:[%s3 + $0x408] sm:$0xff]
    %v894 = vld [vmem:[%s3 + $0x410] sm:$0xff]
    %v895 = vld [vmem:[%s3 + $0x418] sm:$0xff]
    %v896 = vld [vmem:[%s3 + $0x420] sm:$0xff]
    %v897 = vld [vmem:[%s3 + $0x428] sm:$0xff]
    %v898 = vld [vmem:[%s3 + $0x430] sm:$0xff]
    %v899 = vld [vmem:[%s3 + $0x438] sm:$0xff]
    %v900 = vld [vmem:[%s3 + $0x440] sm:$0xff]
    %v901 = vld [vmem:[%s3 + $0x448] sm:$0xff]
    %v902 = vld [vmem:[%s3 + $0x450] sm:$0xff]
    %v903 = vld [vmem:[%s3 + $0x458] sm:$0xff]
    %v904 = vld [vmem:[%s3 + $0x460] sm:$0xff]
    %v905 = vld [vmem:[%s3 + $0x468] sm:$0xff]
    %v906 = vld [vmem:[%s3 + $0x470] sm:$0xff]
    %v907 = vld [vmem:[%s3 + $0x478] sm:$0xff]
    %v908 = vld [vmem:[%s3 + $0x480] sm:$0xff]
    %v909 = vld [vmem:[%s3 + $0x488] sm:$0xff]
    %v910 = vld [vmem:[%s3 + $0x490] sm:$0xff]
    %v911 = vld [vmem:[%s3 + $0x498] sm:$0xff]
    %v912 = vld [vmem:[%s3 + $0x4a0] sm:$0xff]
    %v913 = vld [vmem:[%s3 + $0x4a8] sm:$0xff]
    %v914 = vld [vmem:[%s3 + $0x4b0] sm:$0xff]
    %v915 = vld [vmem:[%s3 + $0x4b8] sm:$0xff]
    %v916 = vld [vmem:[%s3 + $0x4c0] sm:$0xff]
    %v917 = vld [vmem:[%s3 + $0x4c8] sm:$0xff]
    %v918 = vld [vmem:[%s3 + $0x4d0] sm:$0xff]
    %v919 = vld [vmem:[%s3 + $0x4d8] sm:$0xff]
    %v920 = vld [vmem:[%s3 + $0x4e0] sm:$0xff]
    %v921 = vld [vmem:[%s3 + $0x4e8] sm:$0xff]
    %v922 = vld [vmem:[%s3 + $0x4f0] sm:$0xff]
    %v923 = vld [vmem:[%s3 + $0x4f8] sm:$0xff]
    %v924 = vld [vmem:[%s3 + $0x500] sm:$0xff]
    %v925 = vld [vmem:[%s3 + $0x508] sm:$0xff]
    %v926 = vld [vmem:[%s3 + $0x510] sm:$0xff]
    %v927 = vld [vmem:[%s3 + $0x518] sm:$0xff]
    %v928 = vld [vmem:[%s3 + $0x520] sm:$0xff]
    %v929 = vld [vmem:[%s3 + $0x528] sm:$0xff]
    %v930 = vld [vmem:[%s3 + $0x530] sm:$0xff]
    %v931 = vld [vmem:[%s3 + $0x538] sm:$0xff]
    %v932 = vld [vmem:[%s3 + $0x540] sm:$0xff]
    %v933 = vld [vmem:[%s3 + $0x548] sm:$0xff]
    %v934 = vld [vmem:[%s3 + $0x550] sm:$0xff]
    %v935 = vld [vmem:[%s3 + $0x558] sm:$0xff]
    %v936 = vld [vmem:[%s3 + $0x560] sm:$0xff]
    %v937 = vld [vmem:[%s3 + $0x568] sm:$0xff]
    %v938 = vld [vmem:[%s3 + $0x570] sm:$0xff]
    %v939 = vld [vmem:[%s3 + $0x578] sm:$0xff]
    %v940 = vld [vmem:[%s3 + $0x580] sm:$0xff]
    %v941 = vld [vmem:[%s3 + $0x588] sm:$0xff]
    %v942 = vld [vmem:[%s3 + $0x590] sm:$0xff]
    %v943 = vld [vmem:[%s3 + $0x598] sm:$0xff]
    %v944 = vld [vmem:[%s3 + $0x5a0] sm:$0xff]
    %v945 = vld [vmem:[%s3 + $0x5a8] sm:$0xff]
    %v946 = vld [vmem:[%s3 + $0x5b0] sm:$0xff]
    %v947 = vld [vmem:[%s3 + $0x5b8] sm:$0xff]
    %v948 = vld [vmem:[%s3 + $0x5c0] sm:$0xff]
    %v949 = vld [vmem:[%s3 + $0x5c8] sm:$0xff]
    %v950 = vld [vmem:[%s3 + $0x5d0] sm:$0xff]
    %v951 = vld [vmem:[%s3 + $0x5d8] sm:$0xff]
    %v952 = vld [vmem:[%s3 + $0x5e0] sm:$0xff]
    %v953 = vld [vmem:[%s3 + $0x5e8] sm:$0xff]
    %v954 = vld [vmem:[%s3 + $0x5f0] sm:$0xff]
    %v955 = vld [vmem:[%s3 + $0x5f8] sm:$0xff]
    %v956 = vld [vmem:[%s3 + $0x600] sm:$0xff]
    %v957 = vld [vmem:[%s3 + $0x608] sm:$0xff]
    %v958 = vld [vmem:[%s3 + $0x610] sm:$0xff]
    %v959 = vld [vmem:[%s3 + $0x618] sm:$0xff]
    %v960 = vld [vmem:[%s3 + $0x620] sm:$0xff]
    %v961 = vld [vmem:[%s3 + $0x628] sm:$0xff]
    %v962 = vld [vmem:[%s3 + $0x630] sm:$0xff]
    %v963 = vld [vmem:[%s3 + $0x638] sm:$0xff]
    %v964 = vld [vmem:[%s3 + $0x640] sm:$0xff]
    %v965 = vld [vmem:[%s3 + $0x648] sm:$0xff]
    %v966 = vld [vmem:[%s3 + $0x650] sm:$0xff]
    %v967 = vld [vmem:[%s3 + $0x658] sm:$0xff]
    %v968 = vld [vmem:[%s3 + $0x660] sm:$0xff]
    %v969 = vld [vmem:[%s3 + $0x668] sm:$0xff]
    %v970 = vld [vmem:[%s3 + $0x670] sm:$0xff]
    %v971 = vld [vmem:[%s3 + $0x678] sm:$0xff]
    %v972 = vld [vmem:[%s3 + $0x680] sm:$0xff]
    %v973 = vld [vmem:[%s3 + $0x688] sm:$0xff]
    %v974 = vld [vmem:[%s3 + $0x690] sm:$0xff]
    %v975 = vld [vmem:[%s3 + $0x698] sm:$0xff]
    %v976 = vld [vmem:[%s3 + $0x6a0] sm:$0xff]
    %v977 = vld [vmem:[%s3 + $0x6a8] sm:$0xff]
    %v978 = vld [vmem:[%s3 + $0x6b0] sm:$0xff]
    %v979 = vld [vmem:[%s3 + $0x6b8] sm:$0xff]
    %v980 = vld [vmem:[%s3 + $0x6c0] sm:$0xff]
    %v981 = vld [vmem:[%s3 + $0x6c8] sm:$0xff]
    %v982 = vld [vmem:[%s3 + $0x6d0] sm:$0xff]
    %v983 = vld [vmem:[%s3 + $0x6d8] sm:$0xff]
    %v984 = vld [vmem:[%s3 + $0x6e0] sm:$0xff]
    %v985 = vld [vmem:[%s3 + $0x6e8] sm:$0xff]
    %v986 = vld [vmem:[%s3 + $0x6f0] sm:$0xff]
    %v987 = vld [vmem:[%s3 + $0x6f8] sm:$0xff]
    %v988 = vld [vmem:[%s3 + $0x700] sm:$0xff]
    %v989 = vld [vmem:[%s3 + $0x708] sm:$0xff]
    %v990 = vld [vmem:[%s3 + $0x710] sm:$0xff]
    %v991 = vld [vmem:[%s3 + $0x718] sm:$0xff]
    %v992 = vld [vmem:[%s3 + $0x720] sm:$0xff]
    %v993 = vld [vmem:[%s3 + $0x728] sm:$0xff]
    %v994 = vld [vmem:[%s3 + $0x730] sm:$0xff]
    %v995 = vld [vmem:[%s3 + $0x738] sm:$0xff]
    %v996 = vld [vmem:[%s3 + $0x740] sm:$0xff]
    %v997 = vld [vmem:[%s3 + $0x748] sm:$0xff]
    %v998 = vld [vmem:[%s3 + $0x750] sm:$0xff]
    %v999 = vld [vmem:[%s3 + $0x758] sm:$0xff]
    %v1000 = vld [vmem:[%s3 + $0x760] sm:$0xff]
    %v1001 = vld [vmem:[%s3 + $0x768] sm:$0xff]
    %v1002 = vld [vmem:[%s3 + $0x770] sm:$0xff]
    %v1003 = vld [vmem:[%s3 + $0x778] sm:$0xff]
    %v1004 = vld [vmem:[%s3 + $0x780] sm:$0xff]
    %v1005 = vld [vmem:[%s3 + $0x788] sm:$0xff]
    %v1006 = vld [vmem:[%s3 + $0x790] sm:$0xff]
    %v1007 = vld [vmem:[%s3 + $0x798] sm:$0xff]
    %v1008 = vld [vmem:[%s3 + $0x7a0] sm:$0xff]
    %v1009 = vld [vmem:[%s3 + $0x7a8] sm:$0xff]
    %v1010 = vld [vmem:[%s3 + $0x7b0] sm:$0xff]
    %v1011 = vld [vmem:[%s3 + $0x7b8] sm:$0xff]
    %v1012 = vld [vmem:[%s3 + $0x7c0] sm:$0xff]
    %v1013 = vld [vmem:[%s3 + $0x7c8] sm:$0xff]
    %v1014 = vld [vmem:[%s3 + $0x7d0] sm:$0xff]
    %v1015 = vld [vmem:[%s3 + $0x7d8] sm:$0xff]
    %v1016 = vld [vmem:[%s3 + $0x7e0] sm:$0xff]
    %v1017 = vld [vmem:[%s3 + $0x7e8] sm:$0xff]
    %v1018 = vld [vmem:[%s3 + $0x7f0] sm:$0xff]
    %v1019 = vld [vmem:[%s3 + $0x7f8] sm:$0xff]
    %v1020 = vld [vmem:[%s3 + $0x800] sm:$0xff]
    %v1021 = vld [vmem:[%s3 + $0x808] sm:$0xff]
    %v1022 = vld [vmem:[%s3 + $0x810] sm:$0xff]
    %v1023 = vld [vmem:[%s3 + $0x818] sm:$0xff]
    %v1024 = vld [vmem:[%s3 + $0x820] sm:$0xff]
    %v1025 = vld [vmem:[%s3 + $0x828] sm:$0xff]
    %v1026 = vld [vmem:[%s3 + $0x830] sm:$0xff]
    %v1027 = vld [vmem:[%s3 + $0x838] sm:$0xff]
    %v1028 = vld [vmem:[%s3 + $0x840] sm:$0xff]
    %v1029 = vld [vmem:[%s3 + $0x848] sm:$0xff]
    %v1030 = vld [vmem:[%s3 + $0x850] sm:$0xff]
    %v1031 = vld [vmem:[%s3 + $0x858] sm:$0xff]
    %v1032 = vld [vmem:[%s3 + $0x860] sm:$0xff]
    %v1033 = vld [vmem:[%s3 + $0x868] sm:$0xff]
    %v1034 = vld [vmem:[%s3 + $0x870] sm:$0xff]
    %v1035 = vld [vmem:[%s3 + $0x878] sm:$0xff]
    %v1036 = vld [vmem:[%s3 + $0x880] sm:$0xff]
    %v1037 = vld [vmem:[%s3 + $0x888] sm:$0xff]
    %v1038 = vld [vmem:[%s3 + $0x890] sm:$0xff]
    %v1039 = vld [vmem:[%s3 + $0x898] sm:$0xff]
    %v1040 = vld [vmem:[%s3 + $0x8a0] sm:$0xff]
    %v1041 = vld [vmem:[%s3 + $0x8a8] sm:$0xff]
    %v1042 = vld [vmem:[%s3 + $0x8b0] sm:$0xff]
    %v1043 = vld [vmem:[%s3 + $0x8b8] sm:$0xff]
    %v1044 = vld [vmem:[%s3 + $0x8c0] sm:$0xff]
    %v1045 = vld [vmem:[%s3 + $0x8c8] sm:$0xff]
    %v1046 = vld [vmem:[%s3 + $0x8d0] sm:$0xff]
    %v1047 = vld [vmem:[%s3 + $0x8d8] sm:$0xff]
    %v1048 = vld [vmem:[%s3 + $0x8e0] sm:$0xff]
    %v1049 = vld [vmem:[%s3 + $0x8e8] sm:$0xff]
    %v1050 = vld [vmem:[%s3 + $0x8f0] sm:$0xff]
    %v1051 = vld [vmem:[%s3 + $0x8f8] sm:$0xff]
    %v1052 = vld [vmem:[%s3 + $0x900] sm:$0xff]
    %v1053 = vld [vmem:[%s3 + $0x908] sm:$0xff]
    %v1054 = vld [vmem:[%s3 + $0x910] sm:$0xff]
    %v1055 = vld [vmem:[%s3 + $0x918] sm:$0xff]
    %v1056 = vld [vmem:[%s3 + $0x920] sm:$0xff]
    %v1057 = vld [vmem:[%s3 + $0x928] sm:$0xff]
    %v1058 = vld [vmem:[%s3 + $0x930] sm:$0xff]
    %v1059 = vld [vmem:[%s3 + $0x938] sm:$0xff]
    %v1060 = vld [vmem:[%s3 + $0x940] sm:$0xff]
    %v1061 = vld [vmem:[%s3 + $0x948] sm:$0xff]
    %v1062 = vld [vmem:[%s3 + $0x950] sm:$0xff]
    %v1063 = vld [vmem:[%s3 + $0x958] sm:$0xff]
    %v1064 = vld [vmem:[%s3 + $0x960] sm:$0xff]
    %v1065 = vld [vmem:[%s3 + $0x968] sm:$0xff]
    %v1066 = vld [vmem:[%s3 + $0x970] sm:$0xff]
    %v1067 = vld [vmem:[%s3 + $0x978] sm:$0xff]
    %v1068 = vld [vmem:[%s3 + $0x980] sm:$0xff]
    %v1069 = vld [vmem:[%s3 + $0x988] sm:$0xff]
    %v1070 = vld [vmem:[%s3 + $0x990] sm:$0xff]
    %v1071 = vld [vmem:[%s3 + $0x998] sm:$0xff]
    %v1072 = vld [vmem:[%s3 + $0x9a0] sm:$0xff]
    %v1073 = vld [vmem:[%s3 + $0x9a8] sm:$0xff]
    %v1074 = vld [vmem:[%s3 + $0x9b0] sm:$0xff]
    %v1075 = vld [vmem:[%s3 + $0x9b8] sm:$0xff]
    %v1076 = vld [vmem:[%s3 + $0x9c0] sm:$0xff]
    %v1077 = vld [vmem:[%s3 + $0x9c8] sm:$0xff]
    %v1078 = vld [vmem:[%s3 + $0x9d0] sm:$0xff]
    %v1079 = vld [vmem:[%s3 + $0x9d8] sm:$0xff]
    %v1080 = vld [vmem:[%s3 + $0x9e0] sm:$0xff]
    %v1081 = vld [vmem:[%s3 + $0x9e8] sm:$0xff]
    %v1082 = vld [vmem:[%s3 + $0x9f0] sm:$0xff]
    %v1083 = vld [vmem:[%s3 + $0x9f8] sm:$0xff]
    %v1084 = vld [vmem:[%s3 + $0xa00] sm:$0xff]
    %v1085 = vld [vmem:[%s3 + $0xa08] sm:$0xff]
    %v1086 = vld [vmem:[%s3 + $0xa10] sm:$0xff]
    %v1087 = vld [vmem:[%s3 + $0xa18] sm:$0xff]
    %v1088 = vld [vmem:[%s3 + $0xa20] sm:$0xff]
    %v1089 = vld [vmem:[%s3 + $0xa28] sm:$0xff]
    %v1090 = vld [vmem:[%s3 + $0xa30] sm:$0xff]
    %v1091 = vld [vmem:[%s3 + $0xa38] sm:$0xff]
    %v1092 = vld [vmem:[%s3 + $0xa40] sm:$0xff]
    %v1093 = vld [vmem:[%s3 + $0xa48] sm:$0xff]
    %v1094 = vld [vmem:[%s3 + $0xa50] sm:$0xff]
    %v1095 = vld [vmem:[%s3 + $0xa58] sm:$0xff]
    %v1096 = vld [vmem:[%s3 + $0xa60] sm:$0xff]
    %v1097 = vld [vmem:[%s3 + $0xa68] sm:$0xff]
    %v1098 = vld [vmem:[%s3 + $0xa70] sm:$0xff]
    %v1099 = vld [vmem:[%s3 + $0xa78] sm:$0xff]
    %v1100 = vld [vmem:[%s3 + $0xa80] sm:$0xff]
    %v1101 = vld [vmem:[%s3 + $0xa88] sm:$0xff]
    %v1102 = vld [vmem:[%s3 + $0xa90] sm:$0xff]
    %v1103 = vld [vmem:[%s3 + $0xa98] sm:$0xff]
    %v1104 = vld [vmem:[%s3 + $0xaa0] sm:$0xff]
    %v1105 = vld [vmem:[%s3 + $0xaa8] sm:$0xff]
    %v1106 = vld [vmem:[%s3 + $0xab0] sm:$0xff]
    %v1107 = vld [vmem:[%s3 + $0xab8] sm:$0xff]
    %v1108 = vld [vmem:[%s3 + $0xac0] sm:$0xff]
    %v1109 = vld [vmem:[%s3 + $0xac8] sm:$0xff]
    %v1110 = vld [vmem:[%s3 + $0xad0] sm:$0xff]
    %v1111 = vld [vmem:[%s3 + $0xad8] sm:$0xff]
    %v1112 = vld [vmem:[%s3 + $0xae0] sm:$0xff]
    %v1113 = vld [vmem:[%s3 + $0xae8] sm:$0xff]
    %v1114 = vld [vmem:[%s3 + $0xaf0] sm:$0xff]
    %v1115 = vld [vmem:[%s3 + $0xaf8] sm:$0xff]
    %v1116 = vld [vmem:[%s3 + $0xb00] sm:$0xff]
    %v1117 = vld [vmem:[%s3 + $0xb08] sm:$0xff]
    %v1118 = vld [vmem:[%s3 + $0xb10] sm:$0xff]
    %v1119 = vld [vmem:[%s3 + $0xb18] sm:$0xff]
    %v1120 = vld [vmem:[%s3 + $0xb20] sm:$0xff]
    %v1121 = vld [vmem:[%s3 + $0xb28] sm:$0xff]
    %v1122 = vld [vmem:[%s3 + $0xb30] sm:$0xff]
    %v1123 = vld [vmem:[%s3 + $0xb38] sm:$0xff]
    %v1124 = vld [vmem:[%s3 + $0xb40] sm:$0xff]
    %v1125 = vld [vmem:[%s3 + $0xb48] sm:$0xff]
    %v1126 = vld [vmem:[%s3 + $0xb50] sm:$0xff]
    %v1127 = vld [vmem:[%s3 + $0xb58] sm:$0xff]
    %v1128 = vld [vmem:[%s3 + $0xb60] sm:$0xff]
    %v1129 = vld [vmem:[%s3 + $0xb68] sm:$0xff]
    %v1130 = vld [vmem:[%s3 + $0xb70] sm:$0xff]
    %v1131 = vld [vmem:[%s3 + $0xb78] sm:$0xff]
    %v1132 = vld [vmem:[%s3 + $0xb80] sm:$0xff]
    %v1133 = vld [vmem:[%s3 + $0xb88] sm:$0xff]
    %v1134 = vld [vmem:[%s3 + $0xb90] sm:$0xff]
    %v1135 = vld [vmem:[%s3 + $0xb98] sm:$0xff]
    %v1136 = vld [vmem:[%s3 + $0xba0] sm:$0xff]
    %v1137 = vld [vmem:[%s3 + $0xba8] sm:$0xff]
    %v1138 = vld [vmem:[%s3 + $0xbb0] sm:$0xff]
    %v1139 = vld [vmem:[%s3 + $0xbb8] sm:$0xff]
    %v1140 = vld [vmem:[%s3 + $0xbc0] sm:$0xff]
    %v1141 = vld [vmem:[%s3 + $0xbc8] sm:$0xff]
    %v1142 = vld [vmem:[%s3 + $0xbd0] sm:$0xff]
    %v1143 = vld [vmem:[%s3 + $0xbd8] sm:$0xff]
    %v1144 = vld [vmem:[%s3 + $0xbe0] sm:$0xff]
    %v1145 = vld [vmem:[%s3 + $0xbe8] sm:$0xff]
    %v1146 = vld [vmem:[%s3 + $0xbf0] sm:$0xff]
    %v1147 = vld [vmem:[%s3 + $0xbf8] sm:$0xff]
    %v1148 = vld [vmem:[%s3 + $0xc00] sm:$0xff]
    %v1149 = vld [vmem:[%s3 + $0xc08] sm:$0xff]
    %v1150 = vld [vmem:[%s3 + $0xc10] sm:$0xff]
    %v1151 = vld [vmem:[%s3 + $0xc18] sm:$0xff]
    %v1152 = vld [vmem:[%s3 + $0xc20] sm:$0xff]
    %v1153 = vld [vmem:[%s3 + $0xc28] sm:$0xff]
    %v1154 = vld [vmem:[%s3 + $0xc30] sm:$0xff]
    %v1155 = vld [vmem:[%s3 + $0xc38] sm:$0xff]
    %v1156 = vld [vmem:[%s3 + $0xc40] sm:$0xff]
    %v1157 = vld [vmem:[%s3 + $0xc48] sm:$0xff]
    %v1158 = vld [vmem:[%s3 + $0xc50] sm:$0xff]
    %v1159 = vld [vmem:[%s3 + $0xc58] sm:$0xff]
    %v1160 = vld [vmem:[%s3 + $0xc60] sm:$0xff]
    %v1161 = vld [vmem:[%s3 + $0xc68] sm:$0xff]
    %v1162 = vld [vmem:[%s3 + $0xc70] sm:$0xff]
    %v1163 = vld [vmem:[%s3 + $0xc78] sm:$0xff]
    %v1164 = vld [vmem:[%s3 + $0xc80] sm:$0xff]
    %v1165 = vld [vmem:[%s3 + $0xc88] sm:$0xff]
    %v1166 = vld [vmem:[%s3 + $0xc90] sm:$0xff]
    %v1167 = vld [vmem:[%s3 + $0xc98] sm:$0xff]
    %v1168 = vld [vmem:[%s3 + $0xca0] sm:$0xff]
    %v1169 = vld [vmem:[%s3 + $0xca8] sm:$0xff]
    %v1170 = vld [vmem:[%s3 + $0xcb0] sm:$0xff]
    %v1171 = vld [vmem:[%s3 + $0xcb8] sm:$0xff]
    %v1172 = vld [vmem:[%s3 + $0xcc0] sm:$0xff]
    %v1173 = vld [vmem:[%s3 + $0xcc8] sm:$0xff]
    %v1174 = vld [vmem:[%s3 + $0xcd0] sm:$0xff]
    %v1175 = vld [vmem:[%s3 + $0xcd8] sm:$0xff]
    %v1176 = vld [vmem:[%s3 + $0xce0] sm:$0xff]
    %v1177 = vld [vmem:[%s3 + $0xce8] sm:$0xff]
    %v1178 = vld [vmem:[%s3 + $0xcf0] sm:$0xff]
    %v1179 = vld [vmem:[%s3 + $0xcf8] sm:$0xff]
    %v1180 = vld [vmem:[%s3 + $0xd00] sm:$0xff]
    %v1181 = vld [vmem:[%s3 + $0xd08] sm:$0xff]
    %v1182 = vld [vmem:[%s3 + $0xd10] sm:$0xff]
    %v1183 = vld [vmem:[%s3 + $0xd18] sm:$0xff]
    %v1184 = vld [vmem:[%s3 + $0xd20] sm:$0xff]
    %v1185 = vld [vmem:[%s3 + $0xd28] sm:$0xff]
    %v1186 = vld [vmem:[%s3 + $0xd30] sm:$0xff]
    %v1187 = vld [vmem:[%s3 + $0xd38] sm:$0xff]
    %v1188 = vld [vmem:[%s3 + $0xd40] sm:$0xff]
    %v1189 = vld [vmem:[%s3 + $0xd48] sm:$0xff]
    %v1190 = vld [vmem:[%s3 + $0xd50] sm:$0xff]
    %v1191 = vld [vmem:[%s3 + $0xd58] sm:$0xff]
    %v1192 = vld [vmem:[%s3 + $0xd60] sm:$0xff]
    %v1193 = vld [vmem:[%s3 + $0xd68] sm:$0xff]
    %v1194 = vld [vmem:[%s3 + $0xd70] sm:$0xff]
    %v1195 = vld [vmem:[%s3 + $0xd78] sm:$0xff]
    %v1196 = vld [vmem:[%s3 + $0xd80] sm:$0xff]
    %v1197 = vld [vmem:[%s3 + $0xd88] sm:$0xff]
    %v1198 = vld [vmem:[%s3 + $0xd90] sm:$0xff]
    %v1199 = vld [vmem:[%s3 + $0xd98] sm:$0xff]
    %v1200 = vld [vmem:[%s3 + $0xda0] sm:$0xff]
    %v1201 = vld [vmem:[%s3 + $0xda8] sm:$0xff]
    %v1202 = vld [vmem:[%s3 + $0xdb0] sm:$0xff]
    %v1203 = vld [vmem:[%s3 + $0xdb8] sm:$0xff]
    %v1204 = vld [vmem:[%s3 + $0xdc0] sm:$0xff]
    %v1205 = vld [vmem:[%s3 + $0xdc8] sm:$0xff]
    %v1206 = vld [vmem:[%s3 + $0xdd0] sm:$0xff]
    %v1207 = vld [vmem:[%s3 + $0xdd8] sm:$0xff]
    %v1208 = vld [vmem:[%s3 + $0xde0] sm:$0xff]
    %v1209 = vld [vmem:[%s3 + $0xde8] sm:$0xff]
    %v1210 = vld [vmem:[%s3 + $0xdf0] sm:$0xff]
    %v1211 = vld [vmem:[%s3 + $0xdf8] sm:$0xff]
    %v1212 = vld [vmem:[%s3 + $0xe00] sm:$0xff]
    %v1213 = vld [vmem:[%s3 + $0xe08] sm:$0xff]
    %v1214 = vld [vmem:[%s3 + $0xe10] sm:$0xff]
    %v1215 = vld [vmem:[%s3 + $0xe18] sm:$0xff]
    %v1216 = vld [vmem:[%s3 + $0xe20] sm:$0xff]
    %v1217 = vld [vmem:[%s3 + $0xe28] sm:$0xff]
    %v1218 = vld [vmem:[%s3 + $0xe30] sm:$0xff]
    %v1219 = vld [vmem:[%s3 + $0xe38] sm:$0xff]
    %v1220 = vld [vmem:[%s3 + $0xe40] sm:$0xff]
    %v1221 = vld [vmem:[%s3 + $0xe48] sm:$0xff]
    %v1222 = vld [vmem:[%s3 + $0xe50] sm:$0xff]
    %v1223 = vld [vmem:[%s3 + $0xe58] sm:$0xff]
    %v1224 = vld [vmem:[%s3 + $0xe60] sm:$0xff]
    %v1225 = vld [vmem:[%s3 + $0xe68] sm:$0xff]
    %v1226 = vld [vmem:[%s3 + $0xe70] sm:$0xff]
    %v1227 = vld [vmem:[%s3 + $0xe78] sm:$0xff]
    %v1228 = vld [vmem:[%s3 + $0xe80] sm:$0xff]
    %v1229 = vld [vmem:[%s3 + $0xe88] sm:$0xff]
    %v1230 = vld [vmem:[%s3 + $0xe90] sm:$0xff]
    %v1231 = vld [vmem:[%s3 + $0xe98] sm:$0xff]
    %v1232 = vld [vmem:[%s3 + $0xea0] sm:$0xff]
    %v1233 = vld [vmem:[%s3 + $0xea8] sm:$0xff]
    %v1234 = vld [vmem:[%s3 + $0xeb0] sm:$0xff]
    %v1235 = vld [vmem:[%s3 + $0xeb8] sm:$0xff]
    %v1236 = vld [vmem:[%s3 + $0xec0] sm:$0xff]
    %v1237 = vld [vmem:[%s3 + $0xec8] sm:$0xff]
    %v1238 = vld [vmem:[%s3 + $0xed0] sm:$0xff]
    %v1239 = vld [vmem:[%s3 + $0xed8] sm:$0xff]
    %v1240 = vld [vmem:[%s3 + $0xee0] sm:$0xff]
    %v1241 = vld [vmem:[%s3 + $0xee8] sm:$0xff]
    %v1242 = vld [vmem:[%s3 + $0xef0] sm:$0xff]
    %v1243 = vld [vmem:[%s3 + $0xef8] sm:$0xff]
    %v1244 = vld [vmem:[%s3 + $0xf00] sm:$0xff]
    %v1245 = vld [vmem:[%s3 + $0xf08] sm:$0xff]
    %v1246 = vld [vmem:[%s3 + $0xf10] sm:$0xff]
    %v1247 = vld [vmem:[%s3 + $0xf18] sm:$0xff]
    %v1248 = vld [vmem:[%s3 + $0xf20] sm:$0xff]
    %v1249 = vld [vmem:[%s3 + $0xf28] sm:$0xff]
    %v1250 = vld [vmem:[%s3 + $0xf30] sm:$0xff]
    %v1251 = vld [vmem:[%s3 + $0xf38] sm:$0xff]
    %v1252 = vld [vmem:[%s3 + $0xf40] sm:$0xff]
    %v1253 = vld [vmem:[%s3 + $0xf48] sm:$0xff]
    %v1254 = vld [vmem:[%s3 + $0xf50] sm:$0xff]
    %v1255 = vld [vmem:[%s3 + $0xf58] sm:$0xff]
    %v1256 = vld [vmem:[%s3 + $0xf60] sm:$0xff]
    %v1257 = vld [vmem:[%s3 + $0xf68] sm:$0xff]
    %v1258 = vld [vmem:[%s3 + $0xf70] sm:$0xff]
    %v1259 = vld [vmem:[%s3 + $0xf78] sm:$0xff]
    %v1260 = vld [vmem:[%s3 + $0xf80] sm:$0xff]
    %v1261 = vld [vmem:[%s3 + $0xf88] sm:$0xff]
    %v1262 = vld [vmem:[%s3 + $0xf90] sm:$0xff]
    %v1263 = vld [vmem:[%s3 + $0xf98] sm:$0xff]
    %v1264 = vld [vmem:[%s3 + $0xfa0] sm:$0xff]
    %v1265 = vld [vmem:[%s3 + $0xfa8] sm:$0xff]
    %v1266 = vld [vmem:[%s3 + $0xfb0] sm:$0xff]
    %v1267 = vld [vmem:[%s3 + $0xfb8] sm:$0xff]
    %v1268 = vld [vmem:[%s3 + $0xfc0] sm:$0xff]
    %v1269 = vld [vmem:[%s3 + $0xfc8] sm:$0xff]
    %v1270 = vld [vmem:[%s3 + $0xfd0] sm:$0xff]
    %v1271 = vld [vmem:[%s3 + $0xfd8] sm:$0xff]
    %v1272 = vld [vmem:[%s3 + $0xfe0] sm:$0xff]
    %v1273 = vld [vmem:[%s3 + $0xfe8] sm:$0xff]
    %v1274 = vld [vmem:[%s3 + $0xff0] sm:$0xff]
    %v1275 = vld [vmem:[%s3 + $0xff8] sm:$0xff]
    %v1276 = vld [vmem:[%s3 + $0x1000] sm:$0xff]
    %v1277 = vld [vmem:[%s3 + $0x1008] sm:$0xff]
    %v1278 = vld [vmem:[%s3 + $0x1010] sm:$0xff]
    %v1279 = vld [vmem:[%s3 + $0x1018] sm:$0xff]
    %v1280 = vld [vmem:[%s3 + $0x1020] sm:$0xff]
    %v1281 = vld [vmem:[%s3 + $0x1028] sm:$0xff]
    %v1282 = vld [vmem:[%s3 + $0x1030] sm:$0xff]
    %v1283 = vld [vmem:[%s3 + $0x1038] sm:$0xff]
    %v1284 = vld [vmem:[%s3 + $0x1040] sm:$0xff]
    %v1285 = vld [vmem:[%s3 + $0x1048] sm:$0xff]
    %v1286 = vld [vmem:[%s3 + $0x1050] sm:$0xff]
    %v1287 = vld [vmem:[%s3 + $0x1058] sm:$0xff]
    %v1288 = vld [vmem:[%s3 + $0x1060] sm:$0xff]
    %v1289 = vld [vmem:[%s3 + $0x1068] sm:$0xff]
    %v1290 = vld [vmem:[%s3 + $0x1070] sm:$0xff]
    %v1291 = vld [vmem:[%s3 + $0x1078] sm:$0xff]
    %v1292 = vld [vmem:[%s3 + $0x1080] sm:$0xff]
    %v1293 = vld [vmem:[%s3 + $0x1088] sm:$0xff]
    %v1294 = vld [vmem:[%s3 + $0x1090] sm:$0xff]
    %v1295 = vld [vmem:[%s3 + $0x1098] sm:$0xff]
    %v1296 = vld [vmem:[%s3 + $0x10a0] sm:$0xff]
    %v1297 = vld [vmem:[%s3 + $0x10a8] sm:$0xff]
    %v1298 = vld [vmem:[%s3 + $0x10b0] sm:$0xff]
    %v1299 = vld [vmem:[%s3 + $0x10b8] sm:$0xff]
    %v1300 = vld [vmem:[%s3 + $0x10c0] sm:$0xff]
    %v1301 = vld [vmem:[%s3 + $0x10c8] sm:$0xff]
    %v1302 = vld [vmem:[%s3 + $0x10d0] sm:$0xff]
    %v1303 = vld [vmem:[%s3 + $0x10d8] sm:$0xff]
    %v1304 = vld [vmem:[%s3 + $0x10e0] sm:$0xff]
    %v1305 = vld [vmem:[%s3 + $0x10e8] sm:$0xff]
    %v1306 = vld [vmem:[%s3 + $0x10f0] sm:$0xff]
    %v1307 = vld [vmem:[%s3 + $0x10f8] sm:$0xff]
    %v1308 = vld [vmem:[%s3 + $0x1100] sm:$0xff]
    %v1309 = vld [vmem:[%s3 + $0x1108] sm:$0xff]
    %v1310 = vld [vmem:[%s3 + $0x1110] sm:$0xff]
    %v1311 = vld [vmem:[%s3 + $0x1118] sm:$0xff]
    %v1312 = vld [vmem:[%s3 + $0x1120] sm:$0xff]
    %v1313 = vld [vmem:[%s3 + $0x1128] sm:$0xff]
    %v1314 = vld [vmem:[%s3 + $0x1130] sm:$0xff]
    %v1315 = vld [vmem:[%s3 + $0x1138] sm:$0xff]
    %v1316 = vld [vmem:[%s3 + $0x1140] sm:$0xff]
    %v1317 = vld [vmem:[%s3 + $0x1148] sm:$0xff]
    %v1318 = vld [vmem:[%s3 + $0x1150] sm:$0xff]
    %v1319 = vld [vmem:[%s3 + $0x1158] sm:$0xff]
    %v1320 = vld [vmem:[%s3 + $0x1160] sm:$0xff]
    %v1321 = vld [vmem:[%s3 + $0x1168] sm:$0xff]
    %v1322 = vld [vmem:[%s3 + $0x1170] sm:$0xff]
    %v1323 = vld [vmem:[%s3 + $0x1178] sm:$0xff]
    %v1324 = vld [vmem:[%s3 + $0x1180] sm:$0xff]
    %v1325 = vld [vmem:[%s3 + $0x1188] sm:$0xff]
    %v1326 = vld [vmem:[%s3 + $0x1190] sm:$0xff]
    %v1327 = vld [vmem:[%s3 + $0x1198] sm:$0xff]
    %v1328 = vld [vmem:[%s3 + $0x11a0] sm:$0xff]
    %v1329 = vld [vmem:[%s3 + $0x11a8] sm:$0xff]
    %v1330 = vld [vmem:[%s3 + $0x11b0] sm:$0xff]
    %v1331 = vld [vmem:[%s3 + $0x11b8] sm:$0xff]
    %v1332 = vld [vmem:[%s3 + $0x11c0] sm:$0xff]
    %v1333 = vld [vmem:[%s3 + $0x11c8] sm:$0xff]
    %v1334 = vld [vmem:[%s3 + $0x11d0] sm:$0xff]
    %v1335 = vld [vmem:[%s3 + $0x11d8] sm:$0xff]
    %v1336 = vld [vmem:[%s3 + $0x11e0] sm:$0xff]
    %v1337 = vld [vmem:[%s3 + $0x11e8] sm:$0xff]
    %v1338 = vld [vmem:[%s3 + $0x11f0] sm:$0xff]
    %v1339 = vld [vmem:[%s3 + $0x11f8] sm:$0xff]
    %v1340 = vld [vmem:[%s3 + $0x1200] sm:$0xff]
    %v1341 = vld [vmem:[%s3 + $0x1208] sm:$0xff]
    %v1342 = vld [vmem:[%s3 + $0x1210] sm:$0xff]
    %v1343 = vld [vmem:[%s3 + $0x1218] sm:$0xff]
    %v1344 = vld [vmem:[%s3 + $0x1220] sm:$0xff]
    %v1345 = vld [vmem:[%s3 + $0x1228] sm:$0xff]
    %v1346 = vld [vmem:[%s3 + $0x1230] sm:$0xff]
    %v1347 = vld [vmem:[%s3 + $0x1238] sm:$0xff]
    %v1348 = vld [vmem:[%s3 + $0x1240] sm:$0xff]
    %v1349 = vld [vmem:[%s3 + $0x1248] sm:$0xff]
    %v1350 = vld [vmem:[%s3 + $0x1250] sm:$0xff]
    %v1351 = vld [vmem:[%s3 + $0x1258] sm:$0xff]
    %v1352 = vld [vmem:[%s3 + $0x1260] sm:$0xff]
    %v1353 = vld [vmem:[%s3 + $0x1268] sm:$0xff]
    %v1354 = vld [vmem:[%s3 + $0x1270] sm:$0xff]
    %v1355 = vld [vmem:[%s3 + $0x1278] sm:$0xff]
    %v1356 = vld [vmem:[%s3 + $0x1280] sm:$0xff]
    %v1357 = vld [vmem:[%s3 + $0x1288] sm:$0xff]
    %v1358 = vld [vmem:[%s3 + $0x1290] sm:$0xff]
    %v1359 = vld [vmem:[%s3 + $0x1298] sm:$0xff]
    %v1360 = vld [vmem:[%s3 + $0x12a0] sm:$0xff]
    %v1361 = vld [vmem:[%s3 + $0x12a8] sm:$0xff]
    %v1362 = vld [vmem:[%s3 + $0x12b0] sm:$0xff]
    %v1363 = vld [vmem:[%s3 + $0x12b8] sm:$0xff]
    %v1364 = vld [vmem:[%s3 + $0x12c0] sm:$0xff]
    %v1365 = vld [vmem:[%s3 + $0x12c8] sm:$0xff]
    %v1366 = vld [vmem:[%s3 + $0x12d0] sm:$0xff]
    %v1367 = vld [vmem:[%s3 + $0x12d8] sm:$0xff]
    %v1368 = vld [vmem:[%s3 + $0x12e0] sm:$0xff]
    %v1369 = vld [vmem:[%s3 + $0x12e8] sm:$0xff]
    %v1370 = vld [vmem:[%s3 + $0x12f0] sm:$0xff]
    %v1371 = vld [vmem:[%s3 + $0x12f8] sm:$0xff]
    %v1372 = vld [vmem:[%s3 + $0x1300] sm:$0xff]
    %v1373 = vld [vmem:[%s3 + $0x1308] sm:$0xff]
    %v1374 = vld [vmem:[%s3 + $0x1310] sm:$0xff]
    %v1375 = vld [vmem:[%s3 + $0x1318] sm:$0xff]
    %v1376 = vld [vmem:[%s3 + $0x1320] sm:$0xff]
    %v1377 = vld [vmem:[%s3 + $0x1328] sm:$0xff]
    %v1378 = vld [vmem:[%s3 + $0x1330] sm:$0xff]
    %v1379 = vld [vmem:[%s3 + $0x1338] sm:$0xff]
    %v1380 = vld [vmem:[%s3 + $0x1340] sm:$0xff]
    %v1381 = vld [vmem:[%s3 + $0x1348] sm:$0xff]
    %v1382 = vld [vmem:[%s3 + $0x1350] sm:$0xff]
    %v1383 = vld [vmem:[%s3 + $0x1358] sm:$0xff]
    %v1384 = vld [vmem:[%s3 + $0x1360] sm:$0xff]
    %v1385 = vld [vmem:[%s3 + $0x1368] sm:$0xff]
    %v1386 = vld [vmem:[%s3 + $0x1370] sm:$0xff]
    %v1387 = vld [vmem:[%s3 + $0x1378] sm:$0xff]
    %v1388 = vld [vmem:[%s3 + $0x1380] sm:$0xff]
    %v1389 = vld [vmem:[%s3 + $0x1388] sm:$0xff]
    %v1390 = vld [vmem:[%s3 + $0x1390] sm:$0xff]
    %v1391 = vld [vmem:[%s3 + $0x1398] sm:$0xff]
    %v1392 = vld [vmem:[%s3 + $0x13a0] sm:$0xff]
    %v1393 = vld [vmem:[%s3 + $0x13a8] sm:$0xff]
    %v1394 = vld [vmem:[%s3 + $0x13b0] sm:$0xff]
    %v1395 = vld [vmem:[%s3 + $0x13b8] sm:$0xff]
    %v1396 = vld [vmem:[%s3 + $0x13c0] sm:$0xff]
    %v1397 = vld [vmem:[%s3 + $0x13c8] sm:$0xff]
    %v1398 = vld [vmem:[%s3 + $0x13d0] sm:$0xff]
    %v1399 = vld [vmem:[%s3 + $0x13d8] sm:$0xff]
    %v1400 = vld [vmem:[%s3 + $0x13e0] sm:$0xff]
    %v1401 = vld [vmem:[%s3 + $0x13e8] sm:$0xff]
    %v1402 = vld [vmem:[%s3 + $0x13f0] sm:$0xff]
    %v1403 = vld [vmem:[%s3 + $0x13f8] sm:$0xff]
    %v1404 = vld [vmem:[%s3 + $0x1400] sm:$0xff]
    %v1405 = vld [vmem:[%s3 + $0x1408] sm:$0xff]
    %v1406 = vld [vmem:[%s3 + $0x1410] sm:$0xff]
    %v1407 = vld [vmem:[%s3 + $0x1418] sm:$0xff]
    %v1408 = vld [vmem:[%s3 + $0x1420] sm:$0xff]
    %v1409 = vld [vmem:[%s3 + $0x1428] sm:$0xff]
    %v1410 = vld [vmem:[%s3 + $0x1430] sm:$0xff]
    %v1411 = vld [vmem:[%s3 + $0x1438] sm:$0xff]
    %v1412 = vld [vmem:[%s3 + $0x1440] sm:$0xff]
    %v1413 = vld [vmem:[%s3 + $0x1448] sm:$0xff]
    %v1414 = vld [vmem:[%s3 + $0x1450] sm:$0xff]
    %v1415 = vld [vmem:[%s3 + $0x1458] sm:$0xff]
    %v1416 = vld [vmem:[%s3 + $0x1460] sm:$0xff]
    %v1417 = vld [vmem:[%s3 + $0x1468] sm:$0xff]
    %v1418 = vld [vmem:[%s3 + $0x1470] sm:$0xff]
    %v1419 = vld [vmem:[%s3 + $0x1478] sm:$0xff]
    %v1420 = vld [vmem:[%s3 + $0x1480] sm:$0xff]
    %v1421 = vld [vmem:[%s3 + $0x1488] sm:$0xff]
    %v1422 = vld [vmem:[%s3 + $0x1490] sm:$0xff]
    %v1423 = vld [vmem:[%s3 + $0x1498] sm:$0xff]
    %v1424 = vld [vmem:[%s3 + $0x14a0] sm:$0xff]
    %v1425 = vld [vmem:[%s3 + $0x14a8] sm:$0xff]
    %v1426 = vld [vmem:[%s3 + $0x14b0] sm:$0xff]
    %v1427 = vld [vmem:[%s3 + $0x14b8] sm:$0xff]
    %v1428 = vld [vmem:[%s3 + $0x14c0] sm:$0xff]
    %v1429 = vld [vmem:[%s3 + $0x14c8] sm:$0xff]
    %v1430 = vld [vmem:[%s3 + $0x14d0] sm:$0xff]
    %v1431 = vld [vmem:[%s3 + $0x14d8] sm:$0xff]
    %v1432 = vld [vmem:[%s3 + $0x14e0] sm:$0xff]
    %v1433 = vld [vmem:[%s3 + $0x14e8] sm:$0xff]
    %v1434 = vld [vmem:[%s3 + $0x14f0] sm:$0xff]
    %v1435 = vld [vmem:[%s3 + $0x14f8] sm:$0xff]
    %v1436 = vld [vmem:[%s3 + $0x1500] sm:$0xff]
    %v1437 = vld [vmem:[%s3 + $0x1508] sm:$0xff]
    %v1438 = vld [vmem:[%s3 + $0x1510] sm:$0xff]
    %v1439 = vld [vmem:[%s3 + $0x1518] sm:$0xff]
    %v1440 = vld [vmem:[%s3 + $0x1520] sm:$0xff]
    %v1441 = vld [vmem:[%s3 + $0x1528] sm:$0xff]
    %v1442 = vld [vmem:[%s3 + $0x1530] sm:$0xff]
    %v1443 = vld [vmem:[%s3 + $0x1538] sm:$0xff]
    %v1444 = vld [vmem:[%s3 + $0x1540] sm:$0xff]
    %v1445 = vld [vmem:[%s3 + $0x1548] sm:$0xff]
    %v1446 = vld [vmem:[%s3 + $0x1550] sm:$0xff]
    %v1447 = vld [vmem:[%s3 + $0x1558] sm:$0xff]
    %v1448 = vld [vmem:[%s3 + $0x1560] sm:$0xff]
    %v1449 = vld [vmem:[%s3 + $0x1568] sm:$0xff]
    %v1450 = vld [vmem:[%s3 + $0x1570] sm:$0xff]
    %v1451 = vld [vmem:[%s3 + $0x1578] sm:$0xff]
    %v1452 = vld [vmem:[%s3 + $0x1580] sm:$0xff]
    %v1453 = vld [vmem:[%s3 + $0x1588] sm:$0xff]
    %v1454 = vld [vmem:[%s3 + $0x1590] sm:$0xff]
    %v1455 = vld [vmem:[%s3 + $0x1598] sm:$0xff]
    %v1456 = vld [vmem:[%s3 + $0x15a0] sm:$0xff]
    %v1457 = vld [vmem:[%s3 + $0x15a8] sm:$0xff]
    %v1458 = vld [vmem:[%s3 + $0x15b0] sm:$0xff]
    %v1459 = vld [vmem:[%s3 + $0x15b8] sm:$0xff]
    %v1460 = vld [vmem:[%s3 + $0x15c0] sm:$0xff]
    %v1461 = vld [vmem:[%s3 + $0x15c8] sm:$0xff]
    %v1462 = vld [vmem:[%s3 + $0x15d0] sm:$0xff]
    %v1463 = vld [vmem:[%s3 + $0x15d8] sm:$0xff]
    %v1464 = vld [vmem:[%s3 + $0x15e0] sm:$0xff]
    %v1465 = vld [vmem:[%s3 + $0x15e8] sm:$0xff]
    %v1466 = vld [vmem:[%s3 + $0x15f0] sm:$0xff]
    %v1467 = vld [vmem:[%s3 + $0x15f8] sm:$0xff]
    %v1468 = vld [vmem:[%s3 + $0x1600] sm:$0xff]
    %v1469 = vld [vmem:[%s3 + $0x1608] sm:$0xff]
    %v1470 = vld [vmem:[%s3 + $0x1610] sm:$0xff]
    %v1471 = vld [vmem:[%s3 + $0x1618] sm:$0xff]
    %v1472 = vld [vmem:[%s3 + $0x1620] sm:$0xff]
    %v1473 = vld [vmem:[%s3 + $0x1628] sm:$0xff]
    %v1474 = vld [vmem:[%s3 + $0x1630] sm:$0xff]
    %v1475 = vld [vmem:[%s3 + $0x1638] sm:$0xff]
    %v1476 = vld [vmem:[%s3 + $0x1640] sm:$0xff]
    %v1477 = vld [vmem:[%s3 + $0x1648] sm:$0xff]
    %v1478 = vld [vmem:[%s3 + $0x1650] sm:$0xff]
    %v1479 = vld [vmem:[%s3 + $0x1658] sm:$0xff]
    %v1480 = vld [vmem:[%s3 + $0x1660] sm:$0xff]
    %v1481 = vld [vmem:[%s3 + $0x1668] sm:$0xff]
    %v1482 = vld [vmem:[%s3 + $0x1670] sm:$0xff]
    %v1483 = vld [vmem:[%s3 + $0x1678] sm:$0xff]
    %v1484 = vld [vmem:[%s3 + $0x1680] sm:$0xff]
    %v1485 = vld [vmem:[%s3 + $0x1688] sm:$0xff]
    %v1486 = vld [vmem:[%s3 + $0x1690] sm:$0xff]
    %v1487 = vld [vmem:[%s3 + $0x1698] sm:$0xff]
    %v1488 = vld [vmem:[%s3 + $0x16a0] sm:$0xff]
    %v1489 = vld [vmem:[%s3 + $0x16a8] sm:$0xff]
    %v1490 = vld [vmem:[%s3 + $0x16b0] sm:$0xff]
    %v1491 = vld [vmem:[%s3 + $0x16b8] sm:$0xff]
    %v1492 = vld [vmem:[%s3 + $0x16c0] sm:$0xff]
    %v1493 = vld [vmem:[%s3 + $0x16c8] sm:$0xff]
    %v1494 = vld [vmem:[%s3 + $0x16d0] sm:$0xff]
    %v1495 = vld [vmem:[%s3 + $0x16d8] sm:$0xff]
    %v1496 = vld [vmem:[%s3 + $0x16e0] sm:$0xff]
    %v1497 = vld [vmem:[%s3 + $0x16e8] sm:$0xff]
    %v1498 = vld [vmem:[%s3 + $0x16f0] sm:$0xff]
    %v1499 = vld [vmem:[%s3 + $0x16f8] sm:$0xff]
    %v1500 = vld [vmem:[%s3 + $0x1700] sm:$0xff]
    %v1501 = vld [vmem:[%s3 + $0x1708] sm:$0xff]
    %v1502 = vld [vmem:[%s3 + $0x1710] sm:$0xff]
    %v1503 = vld [vmem:[%s3 + $0x1718] sm:$0xff]
    %v1504 = vld [vmem:[%s3 + $0x1720] sm:$0xff]
    %v1505 = vld [vmem:[%s3 + $0x1728] sm:$0xff]
    %v1506 = vld [vmem:[%s3 + $0x1730] sm:$0xff]
    %v1507 = vld [vmem:[%s3 + $0x1738] sm:$0xff]
    %v1508 = vld [vmem:[%s3 + $0x1740] sm:$0xff]
    %v1509 = vld [vmem:[%s3 + $0x1748] sm:$0xff]
    %v1510 = vld [vmem:[%s3 + $0x1750] sm:$0xff]
    %v1511 = vld [vmem:[%s3 + $0x1758] sm:$0xff]
    %v1512 = vld [vmem:[%s3 + $0x1760] sm:$0xff]
    %v1513 = vld [vmem:[%s3 + $0x1768] sm:$0xff]
    %v1514 = vld [vmem:[%s3 + $0x1770] sm:$0xff]
    %v1515 = vld [vmem:[%s3 + $0x1778] sm:$0xff]
    %v1516 = vld [vmem:[%s3 + $0x1780] sm:$0xff]
    %v1517 = vld [vmem:[%s3 + $0x1788] sm:$0xff]
    %v1518 = vld [vmem:[%s3 + $0x1790] sm:$0xff]
    %v1519 = vld [vmem:[%s3 + $0x1798] sm:$0xff]
    %v1520 = vld [vmem:[%s3 + $0x17a0] sm:$0xff]
    %v1521 = vld [vmem:[%s3 + $0x17a8] sm:$0xff]
    %v1522 = vld [vmem:[%s3 + $0x17b0] sm:$0xff]
    %v1523 = vld [vmem:[%s3 + $0x17b8] sm:$0xff]
    %v1524 = vld [vmem:[%s3 + $0x17c0] sm:$0xff]
    %v1525 = vld [vmem:[%s3 + $0x17c8] sm:$0xff]
    %v1526 = vld [vmem:[%s3 + $0x17d0] sm:$0xff]
    %v1527 = vld [vmem:[%s3 + $0x17d8] sm:$0xff]
    %v1528 = vld [vmem:[%s3 + $0x17e0] sm:$0xff]
    %v1529 = vld [vmem:[%s3 + $0x17e8] sm:$0xff]
    %v1530 = vld [vmem:[%s3 + $0x17f0] sm:$0xff]
    %v1531 = vld [vmem:[%s3 + $0x17f8] sm:$0xff]
    %v1532 = vld [vmem:[%s3 + $0x1800] sm:$0xff]
    %v1533 = vld [vmem:[%s3 + $0x1808] sm:$0xff]
    %v1534 = vld [vmem:[%s3 + $0x1810] sm:$0xff]
    %v1535 = vld [vmem:[%s3 + $0x1818] sm:$0xff]
    %v1536 = vld [vmem:[%s3 + $0x1820] sm:$0xff]
    %v1537 = vld [vmem:[%s3 + $0x1828] sm:$0xff]
    %v1538 = vld [vmem:[%s3 + $0x1830] sm:$0xff]
    %v1539 = vld [vmem:[%s3 + $0x1838] sm:$0xff]
    %v1540 = vld [vmem:[%s3 + $0x1840] sm:$0xff]
    %v1541 = vld [vmem:[%s3 + $0x1848] sm:$0xff]
    %v1542 = vld [vmem:[%s3 + $0x1850] sm:$0xff]
    %v1543 = vld [vmem:[%s3 + $0x1858] sm:$0xff]
    %v1544 = vld [vmem:[%s3 + $0x1860] sm:$0xff]
    %v1545 = vld [vmem:[%s3 + $0x1868] sm:$0xff]
    %v1546 = vld [vmem:[%s3 + $0x1870] sm:$0xff]
    %v1547 = vld [vmem:[%s3 + $0x1878] sm:$0xff]
    %v1548 = vld [vmem:[%s3 + $0x1880] sm:$0xff]
    %v1549 = vld [vmem:[%s3 + $0x1888] sm:$0xff]
    %v1550 = vld [vmem:[%s3 + $0x1890] sm:$0xff]
    %v1551 = vld [vmem:[%s3 + $0x1898] sm:$0xff]
    %v1552 = vld [vmem:[%s3 + $0x18a0] sm:$0xff]
    %v1553 = vld [vmem:[%s3 + $0x18a8] sm:$0xff]
    %v1554 = vld [vmem:[%s3 + $0x18b0] sm:$0xff]
    %v1555 = vld [vmem:[%s3 + $0x18b8] sm:$0xff]
    %v1556 = vld [vmem:[%s3 + $0x18c0] sm:$0xff]
    %v1557 = vld [vmem:[%s3 + $0x18c8] sm:$0xff]
    %v1558 = vld [vmem:[%s3 + $0x18d0] sm:$0xff]
    %v1559 = vld [vmem:[%s3 + $0x18d8] sm:$0xff]
    %v1560 = vld [vmem:[%s3 + $0x18e0] sm:$0xff]
    %v1561 = vld [vmem:[%s3 + $0x18e8] sm:$0xff]
    %v1562 = vld [vmem:[%s3 + $0x18f0] sm:$0xff]
    %v1563 = vld [vmem:[%s3 + $0x18f8] sm:$0xff]
    %v1564 = vld [vmem:[%s3 + $0x1900] sm:$0xff]
    %v1565 = vld [vmem:[%s3 + $0x1908] sm:$0xff]
    %v1566 = vld [vmem:[%s3 + $0x1910] sm:$0xff]
    %v1567 = vld [vmem:[%s3 + $0x1918] sm:$0xff]
    %v1568 = vld [vmem:[%s3 + $0x1920] sm:$0xff]
    %v1569 = vld [vmem:[%s3 + $0x1928] sm:$0xff]
    %v1570 = vld [vmem:[%s3 + $0x1930] sm:$0xff]
    %v1571 = vld [vmem:[%s3 + $0x1938] sm:$0xff]
    %v1572 = vld [vmem:[%s3 + $0x1940] sm:$0xff]
    %v1573 = vld [vmem:[%s3 + $0x1948] sm:$0xff]
    %v1574 = vld [vmem:[%s3 + $0x1950] sm:$0xff]
    %v1575 = vld [vmem:[%s3 + $0x1958] sm:$0xff]
    %v1576 = vld [vmem:[%s3 + $0x1960] sm:$0xff]
    %v1577 = vld [vmem:[%s3 + $0x1968] sm:$0xff]
    %v1578 = vld [vmem:[%s3 + $0x1970] sm:$0xff]
    %v1579 = vld [vmem:[%s3 + $0x1978] sm:$0xff]
    %v1580 = vld [vmem:[%s3 + $0x1980] sm:$0xff]
    %v1581 = vld [vmem:[%s3 + $0x1988] sm:$0xff]
    %v1582 = vld [vmem:[%s3 + $0x1990] sm:$0xff]
    %v1583 = vld [vmem:[%s3 + $0x1998] sm:$0xff]
    %v1584 = vld [vmem:[%s3 + $0x19a0] sm:$0xff]
    %v1585 = vld [vmem:[%s3 + $0x19a8] sm:$0xff]
    %v1586 = vld [vmem:[%s3 + $0x19b0] sm:$0xff]
    %v1587 = vld [vmem:[%s3 + $0x19b8] sm:$0xff]
    %v1588 = vld [vmem:[%s3 + $0x19c0] sm:$0xff]
    %v1589 = vld [vmem:[%s3 + $0x19c8] sm:$0xff]
    %v1590 = vld [vmem:[%s3 + $0x19d0] sm:$0xff]
    %v1591 = vld [vmem:[%s3 + $0x19d8] sm:$0xff]
    %v1592 = vld [vmem:[%s3 + $0x19e0] sm:$0xff]
    %v1593 = vld [vmem:[%s3 + $0x19e8] sm:$0xff]
    %v1594 = vld [vmem:[%s3 + $0x19f0] sm:$0xff]
    %v1595 = vld [vmem:[%s3 + $0x19f8] sm:$0xff]
    %v1596 = vld [vmem:[%s3 + $0x1a00] sm:$0xff]
    %v1597 = vld [vmem:[%s3 + $0x1a08] sm:$0xff]
    %v1598 = vld [vmem:[%s3 + $0x1a10] sm:$0xff]
    %v1599 = vld [vmem:[%s3 + $0x1a18] sm:$0xff]
    %v1600 = vld [vmem:[%s3 + $0x1a20] sm:$0xff]
    %v1601 = vld [vmem:[%s3 + $0x1a28] sm:$0xff]
    %v1602 = vld [vmem:[%s3 + $0x1a30] sm:$0xff]
    %v1603 = vld [vmem:[%s3 + $0x1a38] sm:$0xff]
    %v1604 = vld [vmem:[%s3 + $0x1a40] sm:$0xff]
    %v1605 = vld [vmem:[%s3 + $0x1a48] sm:$0xff]
    %v1606 = vld [vmem:[%s3 + $0x1a50] sm:$0xff]
    %v1607 = vld [vmem:[%s3 + $0x1a58] sm:$0xff]
    %v1608 = vld [vmem:[%s3 + $0x1a60] sm:$0xff]
    %v1609 = vld [vmem:[%s3 + $0x1a68] sm:$0xff]
    %v1610 = vld [vmem:[%s3 + $0x1a70] sm:$0xff]
    %v1611 = vld [vmem:[%s3 + $0x1a78] sm:$0xff]
    %v1612 = vld [vmem:[%s3 + $0x1a80] sm:$0xff]
    %v1613 = vld [vmem:[%s3 + $0x1a88] sm:$0xff]
    %v1614 = vld [vmem:[%s3 + $0x1a90] sm:$0xff]
    %v1615 = vld [vmem:[%s3 + $0x1a98] sm:$0xff]
    %v1616 = vld [vmem:[%s3 + $0x1aa0] sm:$0xff]
    %v1617 = vld [vmem:[%s3 + $0x1aa8] sm:$0xff]
    %v1618 = vld [vmem:[%s3 + $0x1ab0] sm:$0xff]
    %v1619 = vld [vmem:[%s3 + $0x1ab8] sm:$0xff]
    %v1620 = vld [vmem:[%s3 + $0x1ac0] sm:$0xff]
    %v1621 = vld [vmem:[%s3 + $0x1ac8] sm:$0xff]
    %v1622 = vld [vmem:[%s3 + $0x1ad0] sm:$0xff]
    %v1623 = vld [vmem:[%s3 + $0x1ad8] sm:$0xff]
    %v1624 = vld [vmem:[%s3 + $0x1ae0] sm:$0xff]
    %v1625 = vld [vmem:[%s3 + $0x1ae8] sm:$0xff]
    %v1626 = vld [vmem:[%s3 + $0x1af0] sm:$0xff]
    %v1627 = vld [vmem:[%s3 + $0x1af8] sm:$0xff]
    %v1628 = vld [vmem:[%s3 + $0x1b00] sm:$0xff]
    %v1629 = vld [vmem:[%s3 + $0x1b08] sm:$0xff]
    %v1630 = vld [vmem:[%s3 + $0x1b10] sm:$0xff]
    %v1631 = vld [vmem:[%s3 + $0x1b18] sm:$0xff]
    %v1632 = vld [vmem:[%s3 + $0x1b20] sm:$0xff]
    %v1633 = vld [vmem:[%s3 + $0x1b28] sm:$0xff]
    %v1634 = vld [vmem:[%s3 + $0x1b30] sm:$0xff]
    %v1635 = vld [vmem:[%s3 + $0x1b38] sm:$0xff]
    %v1636 = vld [vmem:[%s3 + $0x1b40] sm:$0xff]
    %v1637 = vld [vmem:[%s3 + $0x1b48] sm:$0xff]
    %v1638 = vld [vmem:[%s3 + $0x1b50] sm:$0xff]
    %v1639 = vld [vmem:[%s3 + $0x1b58] sm:$0xff]
    %v1640 = vld [vmem:[%s3 + $0x1b60] sm:$0xff]
    %v1641 = vld [vmem:[%s3 + $0x1b68] sm:$0xff]
    %v1642 = vld [vmem:[%s3 + $0x1b70] sm:$0xff]
    %v1643 = vld [vmem:[%s3 + $0x1b78] sm:$0xff]
    %v1644 = vld [vmem:[%s3 + $0x1b80] sm:$0xff]
    %v1645 = vld [vmem:[%s3 + $0x1b88] sm:$0xff]
    %v1646 = vld [vmem:[%s3 + $0x1b90] sm:$0xff]
    %v1647 = vld [vmem:[%s3 + $0x1b98] sm:$0xff]
    %v1648 = vld [vmem:[%s3 + $0x1ba0] sm:$0xff]
    %v1649 = vld [vmem:[%s3 + $0x1ba8] sm:$0xff]
    %v1650 = vld [vmem:[%s3 + $0x1bb0] sm:$0xff]
    %v1651 = vld [vmem:[%s3 + $0x1bb8] sm:$0xff]
    %v1652 = vld [vmem:[%s3 + $0x1bc0] sm:$0xff]
    %v1653 = vld [vmem:[%s3 + $0x1bc8] sm:$0xff]
    %v1654 = vld [vmem:[%s3 + $0x1bd0] sm:$0xff]
    %v1655 = vld [vmem:[%s3 + $0x1bd8] sm:$0xff]
    %v1656 = vld [vmem:[%s3 + $0x1be0] sm:$0xff]
    %v1657 = vld [vmem:[%s3 + $0x1be8] sm:$0xff]
    %v1658 = vld [vmem:[%s3 + $0x1bf0] sm:$0xff]
    %v1659 = vld [vmem:[%s3 + $0x1bf8] sm:$0xff]
    %v1660 = vld [vmem:[%s3 + $0x1c00] sm:$0xff]
    %v1661 = vld [vmem:[%s3 + $0x1c08] sm:$0xff]
    %v1662 = vld [vmem:[%s3 + $0x1c10] sm:$0xff]
    %v1663 = vld [vmem:[%s3 + $0x1c18] sm:$0xff]
    %v1664 = vld [vmem:[%s3 + $0x1c20] sm:$0xff]
    %v1665 = vld [vmem:[%s3 + $0x1c28] sm:$0xff]
    %v1666 = vld [vmem:[%s3 + $0x1c30] sm:$0xff]
    %v1667 = vld [vmem:[%s3 + $0x1c38] sm:$0xff]
    %v1668 = vld [vmem:[%s3 + $0x1c40] sm:$0xff]
    %v1669 = vld [vmem:[%s3 + $0x1c48] sm:$0xff]
    %v1670 = vld [vmem:[%s3 + $0x1c50] sm:$0xff]
    %v1671 = vld [vmem:[%s3 + $0x1c58] sm:$0xff]
    %v1672 = vld [vmem:[%s3 + $0x1c60] sm:$0xff]
    %v1673 = vld [vmem:[%s3 + $0x1c68] sm:$0xff]
    %v1674 = vld [vmem:[%s3 + $0x1c70] sm:$0xff]
    %v1675 = vld [vmem:[%s3 + $0x1c78] sm:$0xff]
    %v1676 = vld [vmem:[%s3 + $0x1c80] sm:$0xff]
    %v1677 = vld [vmem:[%s3 + $0x1c88] sm:$0xff]
    %v1678 = vld [vmem:[%s3 + $0x1c90] sm:$0xff]
    %v1679 = vld [vmem:[%s3 + $0x1c98] sm:$0xff]
    %v1680 = vld [vmem:[%s3 + $0x1ca0] sm:$0xff]
    %v1681 = vld [vmem:[%s3 + $0x1ca8] sm:$0xff]
    %v1682 = vld [vmem:[%s3 + $0x1cb0] sm:$0xff]
    %v1683 = vld [vmem:[%s3 + $0x1cb8] sm:$0xff]
    %v1684 = vld [vmem:[%s3 + $0x1cc0] sm:$0xff]
    %v1685 = vld [vmem:[%s3 + $0x1cc8] sm:$0xff]
    %v1686 = vld [vmem:[%s3 + $0x1cd0] sm:$0xff]
    %v1687 = vld [vmem:[%s3 + $0x1cd8] sm:$0xff]
    %v1688 = vld [vmem:[%s3 + $0x1ce0] sm:$0xff]
    %v1689 = vld [vmem:[%s3 + $0x1ce8] sm:$0xff]
    %v1690 = vld [vmem:[%s3 + $0x1cf0] sm:$0xff]
    %v1691 = vld [vmem:[%s3 + $0x1cf8] sm:$0xff]
    %v1692 = vld [vmem:[%s3 + $0x1d00] sm:$0xff]
    %v1693 = vld [vmem:[%s3 + $0x1d08] sm:$0xff]
    %v1694 = vld [vmem:[%s3 + $0x1d10] sm:$0xff]
    %v1695 = vld [vmem:[%s3 + $0x1d18] sm:$0xff]
    %v1696 = vld [vmem:[%s3 + $0x1d20] sm:$0xff]
    %v1697 = vld [vmem:[%s3 + $0x1d28] sm:$0xff]
    %v1698 = vld [vmem:[%s3 + $0x1d30] sm:$0xff]
    %v1699 = vld [vmem:[%s3 + $0x1d38] sm:$0xff]
    %v1700 = vld [vmem:[%s3 + $0x1d40] sm:$0xff]
    %v1701 = vld [vmem:[%s3 + $0x1d48] sm:$0xff]
    %v1702 = vld [vmem:[%s3 + $0x1d50] sm:$0xff]
    %v1703 = vld [vmem:[%s3 + $0x1d58] sm:$0xff]
    %v1704 = vld [vmem:[%s3 + $0x1d60] sm:$0xff]
    %v1705 = vld [vmem:[%s3 + $0x1d68] sm:$0xff]
    %v1706 = vld [vmem:[%s3 + $0x1d70] sm:$0xff]
    %v1707 = vld [vmem:[%s3 + $0x1d78] sm:$0xff]
    %v1708 = vld [vmem:[%s3 + $0x1d80] sm:$0xff]
    %v1709 = vld [vmem:[%s3 + $0x1d88] sm:$0xff]
    %v1710 = vld [vmem:[%s3 + $0x1d90] sm:$0xff]
    %v1711 = vld [vmem:[%s3 + $0x1d98] sm:$0xff]
    %v1712 = vld [vmem:[%s3 + $0x1da0] sm:$0xff]
    %v1713 = vld [vmem:[%s3 + $0x1da8] sm:$0xff]
    %v1714 = vld [vmem:[%s3 + $0x1db0] sm:$0xff]
    %v1715 = vld [vmem:[%s3 + $0x1db8] sm:$0xff]
    %v1716 = vld [vmem:[%s3 + $0x1dc0] sm:$0xff]
    %v1717 = vld [vmem:[%s3 + $0x1dc8] sm:$0xff]
    %v1718 = vld [vmem:[%s3 + $0x1dd0] sm:$0xff]
    %v1719 = vld [vmem:[%s3 + $0x1dd8] sm:$0xff]
    %v1720 = vld [vmem:[%s3 + $0x1de0] sm:$0xff]
    %v1721 = vld [vmem:[%s3 + $0x1de8] sm:$0xff]
    %v1722 = vld [vmem:[%s3 + $0x1df0] sm:$0xff]
    %v1723 = vld [vmem:[%s3 + $0x1df8] sm:$0xff]
    %v1724 = vld [vmem:[%s3 + $0x1e00] sm:$0xff]
    %v1725 = vld [vmem:[%s3 + $0x1e08] sm:$0xff]
    %v1726 = vld [vmem:[%s3 + $0x1e10] sm:$0xff]
    %v1727 = vld [vmem:[%s3 + $0x1e18] sm:$0xff]
    %v1728 = vld [vmem:[%s3 + $0x1e20] sm:$0xff]
    %v1729 = vld [vmem:[%s3 + $0x1e28] sm:$0xff]
    %v1730 = vld [vmem:[%s3 + $0x1e30] sm:$0xff]
    %v1731 = vld [vmem:[%s3 + $0x1e38] sm:$0xff]
    %v1732 = vld [vmem:[%s3 + $0x1e40] sm:$0xff]
    %v1733 = vld [vmem:[%s3 + $0x1e48] sm:$0xff]
    %v1734 = vld [vmem:[%s3 + $0x1e50] sm:$0xff]
    %v1735 = vld [vmem:[%s3 + $0x1e58] sm:$0xff]
    %v1736 = vld [vmem:[%s3 + $0x1e60] sm:$0xff]
    %v1737 = vld [vmem:[%s3 + $0x1e68] sm:$0xff]
    %v1738 = vld [vmem:[%s3 + $0x1e70] sm:$0xff]
    %v1739 = vld [vmem:[%s3 + $0x1e78] sm:$0xff]
    %v1740 = vld [vmem:[%s3 + $0x1e80] sm:$0xff]
    %v1741 = vld [vmem:[%s3 + $0x1e88] sm:$0xff]
    %v1742 = vld [vmem:[%s3 + $0x1e90] sm:$0xff]
    %v1743 = vld [vmem:[%s3 + $0x1e98] sm:$0xff]
    %v1744 = vld [vmem:[%s3 + $0x1ea0] sm:$0xff]
    %v1745 = vld [vmem:[%s3 + $0x1ea8] sm:$0xff]
    %v1746 = vld [vmem:[%s3 + $0x1eb0] sm:$0xff]
    %v1747 = vld [vmem:[%s3 + $0x1eb8] sm:$0xff]
    %v1748 = vld [vmem:[%s3 + $0x1ec0] sm:$0xff]
    %v1749 = vld [vmem:[%s3 + $0x1ec8] sm:$0xff]
    %v1750 = vld [vmem:[%s3 + $0x1ed0] sm:$0xff]
    %v1751 = vld [vmem:[%s3 + $0x1ed8] sm:$0xff]
    %v1752 = vld [vmem:[%s3 + $0x1ee0] sm:$0xff]
    %v1753 = vld [vmem:[%s3 + $0x1ee8] sm:$0xff]
    %v1754 = vld [vmem:[%s3 + $0x1ef0] sm:$0xff]
    %v1755 = vld [vmem:[%s3 + $0x1ef8] sm:$0xff]
    %v1756 = vld [vmem:[%s3 + $0x1f00] sm:$0xff]
    %v1757 = vld [vmem:[%s3 + $0x1f08] sm:$0xff]
    %v1758 = vld [vmem:[%s3 + $0x1f10] sm:$0xff]
    %v1759 = vld [vmem:[%s3 + $0x1f18] sm:$0xff]
    %v1760 = vld [vmem:[%s3 + $0x1f20] sm:$0xff]
    %v1761 = vld [vmem:[%s3 + $0x1f28] sm:$0xff]
    %v1762 = vld [vmem:[%s3 + $0x1f30] sm:$0xff]
    %v1763 = vld [vmem:[%s3 + $0x1f38] sm:$0xff]
    %v1764 = vld [vmem:[%s3 + $0x1f40] sm:$0xff]
    %v1765 = vld [vmem:[%s3 + $0x1f48] sm:$0xff]
    %v1766 = vld [vmem:[%s3 + $0x1f50] sm:$0xff]
    %v1767 = vld [vmem:[%s3 + $0x1f58] sm:$0xff]
    %v1768 = vld [vmem:[%s3 + $0x1f60] sm:$0xff]
    %v1769 = vld [vmem:[%s3 + $0x1f68] sm:$0xff]
    %v1770 = vld [vmem:[%s3 + $0x1f70] sm:$0xff]
    %v1771 = vld [vmem:[%s3 + $0x1f78] sm:$0xff]
    %v1772 = vld [vmem:[%s3 + $0x1f80] sm:$0xff]
    %v1773 = vld [vmem:[%s3 + $0x1f88] sm:$0xff]
    %v1774 = vld [vmem:[%s3 + $0x1f90] sm:$0xff]
    %v1775 = vld [vmem:[%s3 + $0x1f98] sm:$0xff]
    %v1776 = vld [vmem:[%s3 + $0x1fa0] sm:$0xff]
    %v1777 = vld [vmem:[%s3 + $0x1fa8] sm:$0xff]
    %v1778 = vld [vmem:[%s3 + $0x1fb0] sm:$0xff]
    %v1779 = vld [vmem:[%s3 + $0x1fb8] sm:$0xff]
    %v1780 = vld [vmem:[%s3 + $0x1fc0] sm:$0xff]
    %v1781 = vld [vmem:[%s3 + $0x1fc8] sm:$0xff]
    %v1782 = vld [vmem:[%s3 + $0x1fd0] sm:$0xff]
    %v1783 = vld [vmem:[%s3 + $0x1fd8] sm:$0xff]
    %v1784 = vld [vmem:[%s3 + $0x1fe0] sm:$0xff]
    %v1785 = vld [vmem:[%s3 + $0x1fe8] sm:$0xff]
    %v1786 = vld [vmem:[%s3 + $0x1ff0] sm:$0xff]
    %v1787 = vld [vmem:[%s3 + $0x1ff8] sm:$0xff]
    %v1788 = vld [vmem:[%s3 + $0x2000] sm:$0xff]
    %v1789 = vld [vmem:[%s3 + $0x2008] sm:$0xff]
    %v1790 = vld [vmem:[%s3 + $0x2010] sm:$0xff]
    %v1791 = vld [vmem:[%s3 + $0x2018] sm:$0xff]
    %v1792 = vld [vmem:[%s3 + $0x2020] sm:$0xff]
    %v1793 = vld [vmem:[%s3 + $0x2028] sm:$0xff]
    %v1794 = vld [vmem:[%s3 + $0x2030] sm:$0xff]
    %v1795 = vld [vmem:[%s3 + $0x2038] sm:$0xff]
    %v1796 = vld [vmem:[%s3 + $0x2040] sm:$0xff]
    %v1797 = vld [vmem:[%s3 + $0x2048] sm:$0xff]
    %v1798 = vld [vmem:[%s3 + $0x2050] sm:$0xff]
    %v1799 = vld [vmem:[%s3 + $0x2058] sm:$0xff]
    %v1800 = vld [vmem:[%s3 + $0x2060] sm:$0xff]
    %v1801 = vld [vmem:[%s3 + $0x2068] sm:$0xff]
    %v1802 = vld [vmem:[%s3 + $0x2070] sm:$0xff]
    %v1803 = vld [vmem:[%s3 + $0x2078] sm:$0xff]
    %v1804 = vld [vmem:[%s3 + $0x2080] sm:$0xff]
    %v1805 = vld [vmem:[%s3 + $0x2088] sm:$0xff]
    %v1806 = vld [vmem:[%s3 + $0x2090] sm:$0xff]
    %v1807 = vld [vmem:[%s3 + $0x2098] sm:$0xff]
    %v1808 = vld [vmem:[%s3 + $0x20a0] sm:$0xff]
    %v1809 = vld [vmem:[%s3 + $0x20a8] sm:$0xff]
    %v1810 = vld [vmem:[%s3 + $0x20b0] sm:$0xff]
    %v1811 = vld [vmem:[%s3 + $0x20b8] sm:$0xff]
    %v1812 = vld [vmem:[%s3 + $0x20c0] sm:$0xff]
    %v1813 = vld [vmem:[%s3 + $0x20c8] sm:$0xff]
    %v1814 = vld [vmem:[%s3 + $0x20d0] sm:$0xff]
    %v1815 = vld [vmem:[%s3 + $0x20d8] sm:$0xff]
    %v1816 = vld [vmem:[%s3 + $0x20e0] sm:$0xff]
    %v1817 = vld [vmem:[%s3 + $0x20e8] sm:$0xff]
    %v1818 = vld [vmem:[%s3 + $0x20f0] sm:$0xff]
    %v1819 = vld [vmem:[%s3 + $0x20f8] sm:$0xff]
    %v1820 = vld [vmem:[%s3 + $0x2100] sm:$0xff]
    %v1821 = vld [vmem:[%s3 + $0x2108] sm:$0xff]
    %v1822 = vld [vmem:[%s3 + $0x2110] sm:$0xff]
    %v1823 = vld [vmem:[%s3 + $0x2118] sm:$0xff]
    %v1824 = vld [vmem:[%s3 + $0x2120] sm:$0xff]
    %v1825 = vld [vmem:[%s3 + $0x2128] sm:$0xff]
    %v1826 = vld [vmem:[%s3 + $0x2130] sm:$0xff]
    %v1827 = vld [vmem:[%s3 + $0x2138] sm:$0xff]
    %v1828 = vld [vmem:[%s3 + $0x2140] sm:$0xff]
    %v1829 = vld [vmem:[%s3 + $0x2148] sm:$0xff]
    %v1830 = vld [vmem:[%s3 + $0x2150] sm:$0xff]
    %v1831 = vld [vmem:[%s3 + $0x2158] sm:$0xff]
    %v1832 = vld [vmem:[%s3 + $0x2160] sm:$0xff]
    %v1833 = vld [vmem:[%s3 + $0x2168] sm:$0xff]
    %v1834 = vld [vmem:[%s3 + $0x2170] sm:$0xff]
    %v1835 = vld [vmem:[%s3 + $0x2178] sm:$0xff]
    %v1836 = vld [vmem:[%s3 + $0x2180] sm:$0xff]
    %v1837 = vld [vmem:[%s3 + $0x2188] sm:$0xff]
    %v1838 = vld [vmem:[%s3 + $0x2190] sm:$0xff]
    %v1839 = vld [vmem:[%s3 + $0x2198] sm:$0xff]
    %v1840 = vld [vmem:[%s3 + $0x21a0] sm:$0xff]
    %v1841 = vld [vmem:[%s3 + $0x21a8] sm:$0xff]
    %v1842 = vld [vmem:[%s3 + $0x21b0] sm:$0xff]
    %v1843 = vld [vmem:[%s3 + $0x21b8] sm:$0xff]
    %v1844 = vld [vmem:[%s3 + $0x21c0] sm:$0xff]
    %v1845 = vld [vmem:[%s3 + $0x21c8] sm:$0xff]
    %v1846 = vld [vmem:[%s3 + $0x21d0] sm:$0xff]
    %v1847 = vld [vmem:[%s3 + $0x21d8] sm:$0xff]
    %v1848 = vld [vmem:[%s3 + $0x21e0] sm:$0xff]
    %v1849 = vld [vmem:[%s3 + $0x21e8] sm:$0xff]
    %v1850 = vld [vmem:[%s3 + $0x21f0] sm:$0xff]
    %v1851 = vld [vmem:[%s3 + $0x21f8] sm:$0xff]
    %v1852 = vld [vmem:[%s3 + $0x2200] sm:$0xff]
    %v1853 = vld [vmem:[%s3 + $0x2208] sm:$0xff]
    %v1854 = vld [vmem:[%s3 + $0x2210] sm:$0xff]
    %v1855 = vld [vmem:[%s3 + $0x2218] sm:$0xff]
    %v1856 = vld [vmem:[%s3 + $0x2220] sm:$0xff]
    %v1857 = vld [vmem:[%s3 + $0x2228] sm:$0xff]
    %v1858 = vld [vmem:[%s3 + $0x2230] sm:$0xff]
    %v1859 = vld [vmem:[%s3 + $0x2238] sm:$0xff]
    %v1860 = vld [vmem:[%s3 + $0x2240] sm:$0xff]
    %v1861 = vld [vmem:[%s3 + $0x2248] sm:$0xff]
    %v1862 = vld [vmem:[%s3 + $0x2250] sm:$0xff]
    %v1863 = vld [vmem:[%s3 + $0x2258] sm:$0xff]
    %v1864 = vld [vmem:[%s3 + $0x2260] sm:$0xff]
    %v1865 = vld [vmem:[%s3 + $0x2268] sm:$0xff]
    %v1866 = vld [vmem:[%s3 + $0x2270] sm:$0xff]
    %v1867 = vld [vmem:[%s3 + $0x2278] sm:$0xff]
    %v1868 = vld [vmem:[%s3 + $0x2280] sm:$0xff]
    %v1869 = vld [vmem:[%s3 + $0x2288] sm:$0xff]
    %v1870 = vld [vmem:[%s3 + $0x2290] sm:$0xff]
    %v1871 = vld [vmem:[%s3 + $0x2298] sm:$0xff]
    %v1872 = vld [vmem:[%s3 + $0x22a0] sm:$0xff]
    %v1873 = vld [vmem:[%s3 + $0x22a8] sm:$0xff]
    %v1874 = vld [vmem:[%s3 + $0x22b0] sm:$0xff]
    %v1875 = vld [vmem:[%s3 + $0x22b8] sm:$0xff]
    %v1876 = vld [vmem:[%s3 + $0x22c0] sm:$0xff]
    %v1877 = vld [vmem:[%s3 + $0x22c8] sm:$0xff]
    %v1878 = vld [vmem:[%s3 + $0x22d0] sm:$0xff]
    %v1879 = vld [vmem:[%s3 + $0x22d8] sm:$0xff]
    %v1880 = vld [vmem:[%s3 + $0x22e0] sm:$0xff]
    %v1881 = vld [vmem:[%s3 + $0x22e8] sm:$0xff]
    %v1882 = vld [vmem:[%s3 + $0x22f0] sm:$0xff]
    %v1883 = vld [vmem:[%s3 + $0x22f8] sm:$0xff]
    %v1884 = vld [vmem:[%s3 + $0x2300] sm:$0xff]
    %v1885 = vld [vmem:[%s3 + $0x2308] sm:$0xff]
    %v1886 = vld [vmem:[%s3 + $0x2310] sm:$0xff]
    %v1887 = vld [vmem:[%s3 + $0x2318] sm:$0xff]
    %v1888 = vld [vmem:[%s3 + $0x2320] sm:$0xff]
    %v1889 = vld [vmem:[%s3 + $0x2328] sm:$0xff]
    %v1890 = vld [vmem:[%s3 + $0x2330] sm:$0xff]
    %v1891 = vld [vmem:[%s3 + $0x2338] sm:$0xff]
    %v1892 = vld [vmem:[%s3 + $0x2340] sm:$0xff]
    %v1893 = vld [vmem:[%s3 + $0x2348] sm:$0xff]
    %v1894 = vld [vmem:[%s3 + $0x2350] sm:$0xff]
    %v1895 = vld [vmem:[%s3 + $0x2358] sm:$0xff]
    %v1896 = vld [vmem:[%s3 + $0x2360] sm:$0xff]
    %v1897 = vld [vmem:[%s3 + $0x2368] sm:$0xff]
    %v1898 = vld [vmem:[%s3 + $0x2370] sm:$0xff]
    %v1899 = vld [vmem:[%s3 + $0x2378] sm:$0xff]
    %v1900 = vld [vmem:[%s3 + $0x2380] sm:$0xff]
    %v1901 = vld [vmem:[%s3 + $0x2388] sm:$0xff]
    %v1902 = vld [vmem:[%s3 + $0x2390] sm:$0xff]
    %v1903 = vld [vmem:[%s3 + $0x2398] sm:$0xff]
    %v1904 = vld [vmem:[%s3 + $0x23a0] sm:$0xff]
    %v1905 = vld [vmem:[%s3 + $0x23a8] sm:$0xff]
    %v1906 = vld [vmem:[%s3 + $0x23b0] sm:$0xff]
    %v1907 = vld [vmem:[%s3 + $0x23b8] sm:$0xff]
    %v1908 = vld [vmem:[%s3 + $0x23c0] sm:$0xff]
    %v1909 = vld [vmem:[%s3 + $0x23c8] sm:$0xff]
    %v1910 = vld [vmem:[%s3 + $0x23d0] sm:$0xff]
    %v1911 = vld [vmem:[%s3 + $0x23d8] sm:$0xff]
    %v1912 = vld [vmem:[%s3 + $0x23e0] sm:$0xff]
    %v1913 = vld [vmem:[%s3 + $0x23e8] sm:$0xff]
    %v1914 = vld [vmem:[%s3 + $0x23f0] sm:$0xff]
    %v1915 = vld [vmem:[%s3 + $0x23f8] sm:$0xff]
    %v1916 = vld [vmem:[%s3 + $0x2400] sm:$0xff]
    %v1917 = vld [vmem:[%s3 + $0x2408] sm:$0xff]
    %v1918 = vld [vmem:[%s3 + $0x2410] sm:$0xff]
    %v1919 = vld [vmem:[%s3 + $0x2418] sm:$0xff]
    %v1920 = vld [vmem:[%s3 + $0x2420] sm:$0xff]
    %v1921 = vld [vmem:[%s3 + $0x2428] sm:$0xff]
    %v1922 = vld [vmem:[%s3 + $0x2430] sm:$0xff]
    %v1923 = vld [vmem:[%s3 + $0x2438] sm:$0xff]
    %v1924 = vld [vmem:[%s3 + $0x2440] sm:$0xff]
    %v1925 = vld [vmem:[%s3 + $0x2448] sm:$0xff]
    %v1926 = vld [vmem:[%s3 + $0x2450] sm:$0xff]
    %v1927 = vld [vmem:[%s3 + $0x2458] sm:$0xff]
    %v1928 = vld [vmem:[%s3 + $0x2460] sm:$0xff]
    %v1929 = vld [vmem:[%s3 + $0x2468] sm:$0xff]
    %v1930 = vld [vmem:[%s3 + $0x2470] sm:$0xff]
    %v1931 = vld [vmem:[%s3 + $0x2478] sm:$0xff]
    %v1932 = vld [vmem:[%s3 + $0x2480] sm:$0xff]
    %v1933 = vld [vmem:[%s3 + $0x2488] sm:$0xff]
    %v1934 = vld [vmem:[%s3 + $0x2490] sm:$0xff]
    %v1935 = vld [vmem:[%s3 + $0x2498] sm:$0xff]
    %v1936 = vld [vmem:[%s3 + $0x24a0] sm:$0xff]
    %v1937 = vld [vmem:[%s3 + $0x24a8] sm:$0xff]
    %v1938 = vld [vmem:[%s3 + $0x24b0] sm:$0xff]
    %v1939 = vld [vmem:[%s3 + $0x24b8] sm:$0xff]
    %v1940 = vld [vmem:[%s3 + $0x24c0] sm:$0xff]
    %v1941 = vld [vmem:[%s3 + $0x24c8] sm:$0xff]
    %v1942 = vld [vmem:[%s3 + $0x24d0] sm:$0xff]
    %v1943 = vld [vmem:[%s3 + $0x24d8] sm:$0xff]
    %v1944 = vld [vmem:[%s3 + $0x24e0] sm:$0xff]
    %v1945 = vld [vmem:[%s3 + $0x24e8] sm:$0xff]
    %v1946 = vld [vmem:[%s3 + $0x24f0] sm:$0xff]
    %v1947 = vld [vmem:[%s3 + $0x24f8] sm:$0xff]
    %v1948 = vld [vmem:[%s3 + $0x2500] sm:$0xff]
    %v1949 = vld [vmem:[%s3 + $0x2508] sm:$0xff]
    %v1950 = vld [vmem:[%s3 + $0x2510] sm:$0xff]
    %v1951 = vld [vmem:[%s3 + $0x2518] sm:$0xff]
    %v1952 = vld [vmem:[%s3 + $0x2520] sm:$0xff]
    %v1953 = vld [vmem:[%s3 + $0x2528] sm:$0xff]
    %v1954 = vld [vmem:[%s3 + $0x2530] sm:$0xff]
    %v1955 = vld [vmem:[%s3 + $0x2538] sm:$0xff]
    %v1956 = vld [vmem:[%s3 + $0x2540] sm:$0xff]
    %v1957 = vld [vmem:[%s3 + $0x2548] sm:$0xff]
    %v1958 = vld [vmem:[%s3 + $0x2550] sm:$0xff]
    %v1959 = vld [vmem:[%s3 + $0x2558] sm:$0xff]
    %v1960 = vld [vmem:[%s3 + $0x2560] sm:$0xff]
    %v1961 = vld [vmem:[%s3 + $0x2568] sm:$0xff]
    %v1962 = vld [vmem:[%s3 + $0x2570] sm:$0xff]
    %v1963 = vld [vmem:[%s3 + $0x2578] sm:$0xff]
    %v1964 = vld [vmem:[%s4] sm:$0x7]
    %v1966 = vlaneseq
    %v1967 = vshrl.u32 %v1966, 7
    %v1968 = vsub.s32 0, %v1967
    %v1969 = vrot.slane %v1964, %v1968
    %v1970 = vlaneseq
    %v1971 = vshrl.u32 %v1970, 7
    %v1972 = vsub.s32 1, %v1971
    %v1973 = vrot.slane %v1964, %v1972
    %v1974 = vlaneseq
    %v1975 = vshrl.u32 %v1974, 7
    %v1976 = vsub.s32 2, %v1975
    %v1977 = vrot.slane %v1964, %v1976
    %1981 = vmatprep.subr.mxu0 %v765
    %1982 = vmatpush1.msra.mxu0 %v764
    %1983 = vmatprep.subr.mxu0 %v768
    %1984 = vmatpush1.msra.mxu0 %v767
    %1985 = vmatprep.subr.mxu0 %v771
    %1986 = vmatpush1.msra.mxu0 %v770
    %1987 = vmatprep.subr.mxu0 %v774
    %1988 = vmatpush1.msra.mxu0 %v773
    %1989 = vmatprep.subr.mxu0 %v777
    %1990 = vmatpush1.msra.mxu0 %v776
    %1991 = vmatprep.subr.mxu0 %v780
    %1992 = vmatpush1.msra.mxu0 %v779
    %1993 = vmatprep.subr.mxu0 %v783
    %1994 = vmatpush1.msra.mxu0 %v782
    %1995 = vmatprep.subr.mxu0 %v786
    %1996 = vmatpush1.msra.mxu0 %v785
    %1997 = vmatprep.subr.mxu0 %v789
    %1998 = vmatpush1.msra.mxu0 %v788
    %1999 = vmatprep.subr.mxu0 %v792
    %2000 = vmatpush1.msra.mxu0 %v791
    %2001 = vmatprep.subr.mxu0 %v795
    %2002 = vmatpush1.msra.mxu0 %v794
    %2003 = vmatprep.subr.mxu0 %v798
    %2004 = vmatpush1.msra.mxu0 %v797
    %2005 = vmatprep.subr.mxu0 %v801
    %2006 = vmatpush1.msra.mxu0 %v800
    %2007 = vmatprep.subr.mxu0 %v804
    %2008 = vmatpush1.msra.mxu0 %v803
    %2009 = vmatprep.subr.mxu0 %v807
    %2010 = vmatpush1.msra.mxu0 %v806
    %2011 = vmatprep.subr.mxu0 %v810
    %2012 = vmatpush1.msra.mxu0 %v809
    %2013 = vmatprep.subr.mxu0 %v813
    %2014 = vmatpush1.msra.mxu0 %v812
    %2015 = vmatprep.subr.mxu0 %v816
    %2016 = vmatpush1.msra.mxu0 %v815
    %2017 = vmatprep.subr.mxu0 %v819
    %2018 = vmatpush1.msra.mxu0 %v818
    %2019 = vmatprep.subr.mxu0 %v822
    %2020 = vmatpush1.msra.mxu0 %v821
    %2021 = vmatprep.subr.mxu0 %v825
    %2022 = vmatpush1.msra.mxu0 %v824
    %2023 = vmatprep.subr.mxu0 %v828
    %2024 = vmatpush1.msra.mxu0 %v827
    %2025 = vmatprep.subr.mxu0 %v831
    %2026 = vmatpush1.msra.mxu0 %v830
    %2027 = vmatprep.subr.mxu0 %v834
    %2028 = vmatpush1.msra.mxu0 %v833
    %2029 = vmatprep.subr.mxu0 %v837
    %2030 = vmatpush1.msra.mxu0 %v836
    %2031 = vmatprep.subr.mxu0 %v840
    %2032 = vmatpush1.msra.mxu0 %v839
    %2033 = vmatprep.subr.mxu0 %v843
    %2034 = vmatpush1.msra.mxu0 %v842
    %2035 = vmatprep.subr.mxu0 %v846
    %2036 = vmatpush1.msra.mxu0 %v845
    %2037 = vmatprep.subr.mxu0 %v849
    %2038 = vmatpush1.msra.mxu0 %v848
    %2039 = vmatprep.subr.mxu0 %v852
    %2040 = vmatpush1.msra.mxu0 %v851
    %2041 = vmatprep.subr.mxu0 %v855
    %2042 = vmatpush1.msra.mxu0 %v854
    %2043 = vmatprep.subr.mxu0 %v858
    %2044 = vmatpush1.msra.mxu0 %v857
    %2045 = vmatprep.mubr.f32.mxu0 %v565
    %2046 = vmatmul.mubr.f32.gmra.mrb[0].mxu0 %v564
    %v2047 = vpop.f32.mrb[0].mxu0
    %v2048 = vadd.f32 %v1969, %v2047
    %v2049 = vpop.f32.mrb[0].mxu0
    %v2050 = vadd.f32 %v1973, %v2049
    %2051 = vmatprep.mubr.f32.mxu0 %v570
    %2052 = vmatmul.mubr.f32.gmra.mrb[0].mxu0 %v569
    %v2053 = vpop.f32.mrb[0].mxu0
    %v2054 = vadd.f32 %v1969, %v2053
    %v2055 = vpop.f32.mrb[0].mxu0
    %v2056 = vadd.f32 %v1973, %v2055
    %2057 = vdwg.mxu0
    %2058 = vmatprep.subr.mxu0 %v861
    %2059 = vmatpush1.msra.mxu0 %v860
    %2060 = vmatprep.subr.mxu0 %v864
    %2061 = vmatpush1.msra.mxu0 %v863
    %2062 = vmatprep.subr.mxu0 %v867
    %2063 = vmatpush1.msra.mxu0 %v866
    %2064 = vmatprep.subr.mxu0 %v870
    %2065 = vmatpush1.msra.mxu0 %v869
    %2066 = vmatprep.subr.mxu0 %v873
    %2067 = vmatpush1.msra.mxu0 %v872
    %2068 = vmatprep.subr.mxu0 %v876
    %2069 = vmatpush1.msra.mxu0 %v875
    %2070 = vmatprep.subr.mxu0 %v879
    %2071 = vmatpush1.msra.mxu0 %v878
    %2072 = vmatprep.subr.mxu0 %v882
    %2073 = vmatpush1.msra.mxu0 %v881
    %2074 = vmatprep.subr.mxu0 %v885
    %2075 = vmatpush1.msra.mxu0 %v884
    %2076 = vmatprep.subr.mxu0 %v888
    %2077 = vmatpush1.msra.mxu0 %v887
    %2078 = vmatprep.subr.mxu0 %v891
    %2079 = vmatpush1.msra.mxu0 %v890
    %2080 = vmatprep.subr.mxu0 %v894
    %2081 = vmatpush1.msra.mxu0 %v893
    %2082 = vmatprep.subr.mxu0 %v897
    %2083 = vmatpush1.msra.mxu0 %v896
    %2084 = vmatprep.subr.mxu0 %v900
    %2085 = vmatpush1.msra.mxu0 %v899
    %2086 = vmatprep.subr.mxu0 %v903
    %2087 = vmatpush1.msra.mxu0 %v902
    %2088 = vmatprep.subr.mxu0 %v906
    %2089 = vmatpush1.msra.mxu0 %v905
    %2090 = vmatprep.subr.mxu0 %v909
    %2091 = vmatpush1.msra.mxu0 %v908
    %2092 = vmatprep.subr.mxu0 %v912
    %2093 = vmatpush1.msra.mxu0 %v911
    %2094 = vmatprep.subr.mxu0 %v915
    %2095 = vmatpush1.msra.mxu0 %v914
    %2096 = vmatprep.subr.mxu0 %v918
    %2097 = vmatpush1.msra.mxu0 %v917
    %2098 = vmatprep.subr.mxu0 %v921
    %2099 = vmatpush1.msra.mxu0 %v920
    %2100 = vmatprep.subr.mxu0 %v924
    %2101 = vmatpush1.msra.mxu0 %v923
    %2102 = vmatprep.subr.mxu0 %v927
    %2103 = vmatpush1.msra.mxu0 %v926
    %2104 = vmatprep.subr.mxu0 %v930
    %2105 = vmatpush1.msra.mxu0 %v929
    %2106 = vmatprep.subr.mxu0 %v933
    %2107 = vmatpush1.msra.mxu0 %v932
    %2108 = vmatprep.subr.mxu0 %v936
    %2109 = vmatpush1.msra.mxu0 %v935
    %2110 = vmatprep.subr.mxu0 %v939
    %2111 = vmatpush1.msra.mxu0 %v938
    %2112 = vmatprep.subr.mxu0 %v942
    %2113 = vmatpush1.msra.mxu0 %v941
    %2114 = vmatprep.subr.mxu0 %v945
    %2115 = vmatpush1.msra.mxu0 %v944
    %2116 = vmatprep.subr.mxu0 %v948
    %2117 = vmatpush1.msra.mxu0 %v947
    %2118 = vmatprep.subr.mxu0 %v951
    %2119 = vmatpush1.msra.mxu0 %v950
    %2120 = vmatprep.subr.mxu0 %v954
    %2121 = vmatpush1.msra.mxu0 %v953
    %2122 = vmatprep.mubr.f32.mxu0 %v567
    %2123 = vmatmul.mubr.f32.gmra.mrb[0].mxu0 %v566
    %v2124 = vpop.f32.mrb[0].mxu0
    %v2125 = vadd.f32 %v2048, %v2124
    %v2126 = vpop.f32.mrb[0].mxu0
    %v2127 = vadd.f32 %v2050, %v2126
    %2128 = vmatprep.mubr.f32.mxu0 %v572
    %2129 = vmatmul.mubr.f32.gmra.mrb[0].mxu0 %v571
    %v2130 = vpop.f32.mrb[0].mxu0
    %v2131 = vadd.f32 %v2054, %v2130
    %v2132 = vpop.f32.mrb[0].mxu0
    %v2133 = vadd.f32 %v2056, %v2132
    %2134 = vdwg.mxu0
    %2135 = vmatprep.subr.mxu0 %v957
    %2136 = vmatpush1.msra.mxu0 %v956
    %2137 = vmatprep.subr.mxu0 %v960
    %2138 = vmatpush1.msra.mxu0 %v959
    %2139 = vmatprep.subr.mxu0 %v963
    %2140 = vmatpush1.msra.mxu0 %v962
    %2141 = vmatprep.subr.mxu0 %v966
    %2142 = vmatpush1.msra.mxu0 %v965
    %2143 = vmatprep.subr.mxu0 %v969
    %2144 = vmatpush1.msra.mxu0 %v968
    %2145 = vmatprep.subr.mxu0 %v972
    %2146 = vmatpush1.msra.mxu0 %v971
    %2147 = vmatprep.subr.mxu0 %v975
    %2148 = vmatpush1.msra.mxu0 %v974
    %2149 = vmatprep.subr.mxu0 %v978
    %2150 = vmatpush1.msra.mxu0 %v977
    %2151 = vmatprep.subr.mxu0 %v981
    %2152 = vmatpush1.msra.mxu0 %v980
    %2153 = vmatprep.subr.mxu0 %v984
    %2154 = vmatpush1.msra.mxu0 %v983
    %2155 = vmatprep.subr.mxu0 %v987
    %2156 = vmatpush1.msra.mxu0 %v986
    %2157 = vmatprep.subr.mxu0 %v990
    %2158 = vmatpush1.msra.mxu0 %v989
    %2159 = vmatprep.subr.mxu0 %v993
    %2160 = vmatpush1.msra.mxu0 %v992
    %2161 = vmatprep.subr.mxu0 %v996
    %2162 = vmatpush1.msra.mxu0 %v995
    %2163 = vmatprep.subr.mxu0 %v999
    %2164 = vmatpush1.msra.mxu0 %v998
    %2165 = vmatprep.subr.mxu0 %v1002
    %2166 = vmatpush1.msra.mxu0 %v1001
    %2167 = vmatprep.subr.mxu0 %v1005
    %2168 = vmatpush1.msra.mxu0 %v1004
    %2169 = vmatprep.subr.mxu0 %v1008
    %2170 = vmatpush1.msra.mxu0 %v1007
    %2171 = vmatprep.subr.mxu0 %v1011
    %2172 = vmatpush1.msra.mxu0 %v1010
    %2173 = vmatprep.subr.mxu0 %v1014
    %2174 = vmatpush1.msra.mxu0 %v1013
    %2175 = vmatprep.subr.mxu0 %v1017
    %2176 = vmatpush1.msra.mxu0 %v1016
    %2177 = vmatprep.subr.mxu0 %v1020
    %2178 = vmatpush1.msra.mxu0 %v1019
    %2179 = vmatprep.subr.mxu0 %v1023
    %2180 = vmatpush1.msra.mxu0 %v1022
    %2181 = vmatprep.subr.mxu0 %v1026
    %2182 = vmatpush1.msra.mxu0 %v1025
    %2183 = vmatprep.subr.mxu0 %v1029
    %2184 = vmatpush1.msra.mxu0 %v1028
    %2185 = vmatprep.subr.mxu0 %v1032
    %2186 = vmatpush1.msra.mxu0 %v1031
    %2187 = vmatprep.subr.mxu0 %v1035
    %2188 = vmatpush1.msra.mxu0 %v1034
    %2189 = vmatprep.subr.mxu0 %v1038
    %2190 = vmatpush1.msra.mxu0 %v1037
    %2191 = vmatprep.subr.mxu0 %v1041
    %2192 = vmatpush1.msra.mxu0 %v1040
    %2193 = vmatprep.subr.mxu0 %v1044
    %2194 = vmatpush1.msra.mxu0 %v1043
    %2195 = vmatprep.subr.mxu0 %v1047
    %2196 = vmatpush1.msra.mxu0 %v1046
    %2197 = vmatprep.subr.mxu0 %v1050
    %2198 = vmatpush1.msra.mxu0 %v1049
    %2199 = vmatprep.mubr.f32.mxu0 %v606
    %2200 = vmatmul.mubr.f32.gmra.mrb[0].mxu0 %v568
    %v2201 = vpop.f32.mrb[0].mxu0
    %v2202 = vadd.f32 %v2125, %v2201
    %v2203 = vpop.f32.mrb[0].mxu0
    %v2204 = vadd.f32 %v2127, %v2203
    %2205 = vmatprep.mubr.f32.mxu0 %v621
    %2206 = vmatmul.mubr.f32.gmra.mrb[0].mxu0 %v573
    %v2207 = vpop.f32.mrb[0].mxu0
    %v2208 = vadd.f32 %v2131, %v2207
    %v2209 = vpop.f32.mrb[0].mxu0
    %v2210 = vadd.f32 %v2133, %v2209
    %2211 = vdwg.mxu0
    %2212 = vmatprep.subr.mxu0 %v1053
    %2213 = vmatpush1.msra.mxu0 %v1052
    %2214 = vmatprep.subr.mxu0 %v1056
    %2215 = vmatpush1.msra.mxu0 %v1055
    %2216 = vmatprep.subr.mxu0 %v1059
    %2217 = vmatpush1.msra.mxu0 %v1058
    %2218 = vmatprep.subr.mxu0 %v1062
    %2219 = vmatpush1.msra.mxu0 %v1061
    %2220 = vmatprep.subr.mxu0 %v1065
    %2221 = vmatpush1.msra.mxu0 %v1064
    %2222 = vmatprep.subr.mxu0 %v1068
    %2223 = vmatpush1.msra.mxu0 %v1067
    %2224 = vmatprep.subr.mxu0 %v1071
    %2225 = vmatpush1.msra.mxu0 %v1070
    %2226 = vmatprep.subr.mxu0 %v1074
    %2227 = vmatpush1.msra.mxu0 %v1073
    %2228 = vmatprep.subr.mxu0 %v1077
    %2229 = vmatpush1.msra.mxu0 %v1076
    %2230 = vmatprep.subr.mxu0 %v1080
    %2231 = vmatpush1.msra.mxu0 %v1079
    %2232 = vmatprep.subr.mxu0 %v1083
    %2233 = vmatpush1.msra.mxu0 %v1082
    %2234 = vmatprep.subr.mxu0 %v1086
    %2235 = vmatpush1.msra.mxu0 %v1085
    %2236 = vmatprep.subr.mxu0 %v1089
    %2237 = vmatpush1.msra.mxu0 %v1088
    %2238 = vmatprep.subr.mxu0 %v1092
    %2239 = vmatpush1.msra.mxu0 %v1091
    %2240 = vmatprep.subr.mxu0 %v1095
    %2241 = vmatpush1.msra.mxu0 %v1094
    %2242 = vmatprep.subr.mxu0 %v1098
    %2243 = vmatpush1.msra.mxu0 %v1097
    %2244 = vmatprep.subr.mxu0 %v1101
    %2245 = vmatpush1.msra.mxu0 %v1100
    %2246 = vmatprep.subr.mxu0 %v1104
    %2247 = vmatpush1.msra.mxu0 %v1103
    %2248 = vmatprep.subr.mxu0 %v1107
    %2249 = vmatpush1.msra.mxu0 %v1106
    %2250 = vmatprep.subr.mxu0 %v1110
    %2251 = vmatpush1.msra.mxu0 %v1109
    %2252 = vmatprep.subr.mxu0 %v1113
    %2253 = vmatpush1.msra.mxu0 %v1112
    %2254 = vmatprep.subr.mxu0 %v1116
    %2255 = vmatpush1.msra.mxu0 %v1115
    %2256 = vmatprep.subr.mxu0 %v1119
    %2257 = vmatpush1.msra.mxu0 %v1118
    %2258 = vmatprep.subr.mxu0 %v1122
    %2259 = vmatpush1.msra.mxu0 %v1121
    %2260 = vmatprep.subr.mxu0 %v1125
    %2261 = vmatpush1.msra.mxu0 %v1124
    %2262 = vmatprep.subr.mxu0 %v1128
    %2263 = vmatpush1.msra.mxu0 %v1127
    %2264 = vmatprep.subr.mxu0 %v1131
    %2265 = vmatpush1.msra.mxu0 %v1130
    %2266 = vmatprep.subr.mxu0 %v1134
    %2267 = vmatpush1.msra.mxu0 %v1133
    %2268 = vmatprep.subr.mxu0 %v1137
    %2269 = vmatpush1.msra.mxu0 %v1136
    %2270 = vmatprep.subr.mxu0 %v1140
    %2271 = vmatpush1.msra.mxu0 %v1139
    %2272 = vmatprep.subr.mxu0 %v1143
    %2273 = vmatpush1.msra.mxu0 %v1142
    %2274 = vmatprep.subr.mxu0 %v1146
    %2275 = vmatpush1.msra.mxu0 %v1145
    %2276 = vmatprep.mubr.f32.mxu0 %v612
    %2277 = vmatmul.mubr.f32.gmra.mrb[0].mxu0 %v609
    %v2278 = vpop.f32.mrb[0].mxu0
    %v2279 = vadd.f32 %v2202, %v2278
    %v2280 = vpop.f32.mrb[0].mxu0
    %v2281 = vadd.f32 %v2204, %v2280
    %2282 = vmatprep.mubr.f32.mxu0 %v627
    %2283 = vmatmul.mubr.f32.gmra.mrb[0].mxu0 %v624
    %v2284 = vpop.f32.mrb[0].mxu0
    %v2285 = vadd.f32 %v2208, %v2284
    %v2286 = vpop.f32.mrb[0].mxu0
    %v2287 = vadd.f32 %v2210, %v2286
    %2288 = vdwg.mxu0
    %2289 = vmatprep.subr.mxu0 %v1149
    %2290 = vmatpush1.msra.mxu0 %v1148
    %2291 = vmatprep.subr.mxu0 %v1152
    %2292 = vmatpush1.msra.mxu0 %v1151
    %2293 = vmatprep.subr.mxu0 %v1155
    %2294 = vmatpush1.msra.mxu0 %v1154
    %2295 = vmatprep.subr.mxu0 %v1158
    %2296 = vmatpush1.msra.mxu0 %v1157
    %2297 = vmatprep.subr.mxu0 %v1161
    %2298 = vmatpush1.msra.mxu0 %v1160
    %2299 = vmatprep.subr.mxu0 %v1164
    %2300 = vmatpush1.msra.mxu0 %v1163
    %2301 = vmatprep.subr.mxu0 %v1167
    %2302 = vmatpush1.msra.mxu0 %v1166
    %2303 = vmatprep.subr.mxu0 %v1170
    %2304 = vmatpush1.msra.mxu0 %v1169
    %2305 = vmatprep.subr.mxu0 %v1173
    %2306 = vmatpush1.msra.mxu0 %v1172
    %2307 = vmatprep.subr.mxu0 %v1176
    %2308 = vmatpush1.msra.mxu0 %v1175
    %2309 = vmatprep.subr.mxu0 %v1179
    %2310 = vmatpush1.msra.mxu0 %v1178
    %2311 = vmatprep.subr.mxu0 %v1182
    %2312 = vmatpush1.msra.mxu0 %v1181
    %2313 = vmatprep.subr.mxu0 %v1185
    %2314 = vmatpush1.msra.mxu0 %v1184
    %2315 = vmatprep.subr.mxu0 %v1188
    %2316 = vmatpush1.msra.mxu0 %v1187
    %2317 = vmatprep.subr.mxu0 %v1191
    %2318 = vmatpush1.msra.mxu0 %v1190
    %2319 = vmatprep.subr.mxu0 %v1194
    %2320 = vmatpush1.msra.mxu0 %v1193
    %2321 = vmatprep.subr.mxu0 %v1197
    %2322 = vmatpush1.msra.mxu0 %v1196
    %2323 = vmatprep.subr.mxu0 %v1200
    %2324 = vmatpush1.msra.mxu0 %v1199
    %2325 = vmatprep.subr.mxu0 %v1203
    %2326 = vmatpush1.msra.mxu0 %v1202
    %2327 = vmatprep.subr.mxu0 %v1206
    %2328 = vmatpush1.msra.mxu0 %v1205
    %2329 = vmatprep.subr.mxu0 %v1209
    %2330 = vmatpush1.msra.mxu0 %v1208
    %2331 = vmatprep.subr.mxu0 %v1212
    %2332 = vmatpush1.msra.mxu0 %v1211
    %2333 = vmatprep.subr.mxu0 %v1215
    %2334 = vmatpush1.msra.mxu0 %v1214
    %2335 = vmatprep.subr.mxu0 %v1218
    %2336 = vmatpush1.msra.mxu0 %v1217
    %2337 = vmatprep.subr.mxu0 %v1221
    %2338 = vmatpush1.msra.mxu0 %v1220
    %2339 = vmatprep.subr.mxu0 %v1224
    %2340 = vmatpush1.msra.mxu0 %v1223
    %2341 = vmatprep.subr.mxu0 %v1227
    %2342 = vmatpush1.msra.mxu0 %v1226
    %2343 = vmatprep.subr.mxu0 %v1230
    %2344 = vmatpush1.msra.mxu0 %v1229
    %2345 = vmatprep.subr.mxu0 %v1233
    %2346 = vmatpush1.msra.mxu0 %v1232
    %2347 = vmatprep.subr.mxu0 %v1236
    %2348 = vmatpush1.msra.mxu0 %v1235
    %2349 = vmatprep.subr.mxu0 %v1239
    %2350 = vmatpush1.msra.mxu0 %v1238
    %2351 = vmatprep.subr.mxu0 %v1242
    %2352 = vmatpush1.msra.mxu0 %v1241
    %2353 = vmatprep.mubr.f32.mxu0 %v618
    %2354 = vmatmul.mubr.f32.gmra.mrb[0].mxu0 %v615
    %v2355 = vpop.f32.mrb[0].mxu0
    %v2356 = vadd.f32 %v2279, %v2355
    %v2357 = vpop.f32.mrb[0].mxu0
    %v2358 = vadd.f32 %v2281, %v2357
    %2359 = vmatprep.mubr.f32.mxu0 %v633
    %2360 = vmatmul.mubr.f32.gmra.mrb[0].mxu0 %v630
    %v2361 = vpop.f32.mrb[0].mxu0
    %v2362 = vadd.f32 %v2285, %v2361
    %v2363 = vpop.f32.mrb[0].mxu0
    %v2364 = vadd.f32 %v2287, %v2363
    %2365 = vdwg.mxu0
    %2366 = vmatprep.subr.mxu0 %v1245
    %2367 = vmatpush1.msra.mxu0 %v1244
    %2368 = vmatprep.subr.mxu0 %v1248
    %2369 = vmatpush1.msra.mxu0 %v1247
    %2370 = vmatprep.subr.mxu0 %v1251
    %2371 = vmatpush1.msra.mxu0 %v1250
    %2372 = vmatprep.subr.mxu0 %v1254
    %2373 = vmatpush1.msra.mxu0 %v1253
    %2374 = vmatprep.subr.mxu0 %v1257
    %2375 = vmatpush1.msra.mxu0 %v1256
    %2376 = vmatprep.subr.mxu0 %v1260
    %2377 = vmatpush1.msra.mxu0 %v1259
    %2378 = vmatprep.subr.mxu0 %v1263
    %2379 = vmatpush1.msra.mxu0 %v1262
    %2380 = vmatprep.subr.mxu0 %v1266
    %2381 = vmatpush1.msra.mxu0 %v1265
    %2382 = vmatprep.subr.mxu0 %v1269
    %2383 = vmatpush1.msra.mxu0 %v1268
    %2384 = vmatprep.subr.mxu0 %v1272
    %2385 = vmatpush1.msra.mxu0 %v1271
    %2386 = vmatprep.subr.mxu0 %v1275
    %2387 = vmatpush1.msra.mxu0 %v1274
    %2388 = vmatprep.subr.mxu0 %v1278
    %2389 = vmatpush1.msra.mxu0 %v1277
    %2390 = vmatprep.subr.mxu0 %v1281
    %2391 = vmatpush1.msra.mxu0 %v1280
    %2392 = vmatprep.subr.mxu0 %v1284
    %2393 = vmatpush1.msra.mxu0 %v1283
    %2394 = vmatprep.subr.mxu0 %v1287
    %2395 = vmatpush1.msra.mxu0 %v1286
    %2396 = vmatprep.subr.mxu0 %v1290
    %2397 = vmatpush1.msra.mxu0 %v1289
    %2398 = vmatprep.subr.mxu0 %v1293
    %2399 = vmatpush1.msra.mxu0 %v1292
    %2400 = vmatprep.subr.mxu0 %v1296
    %2401 = vmatpush1.msra.mxu0 %v1295
    %2402 = vmatprep.subr.mxu0 %v1299
    %2403 = vmatpush1.msra.mxu0 %v1298
    %2404 = vmatprep.subr.mxu0 %v1302
    %2405 = vmatpush1.msra.mxu0 %v1301
    %2406 = vmatprep.subr.mxu0 %v1305
    %2407 = vmatpush1.msra.mxu0 %v1304
    %2408 = vmatprep.subr.mxu0 %v1308
    %2409 = vmatpush1.msra.mxu0 %v1307
    %2410 = vmatprep.subr.mxu0 %v1311
    %2411 = vmatpush1.msra.mxu0 %v1310
    %2412 = vmatprep.subr.mxu0 %v1314
    %2413 = vmatpush1.msra.mxu0 %v1313
    %2414 = vmatprep.subr.mxu0 %v1317
    %2415 = vmatpush1.msra.mxu0 %v1316
    %2416 = vmatprep.subr.mxu0 %v1320
    %2417 = vmatpush1.msra.mxu0 %v1319
    %2418 = vmatprep.subr.mxu0 %v1323
    %2419 = vmatpush1.msra.mxu0 %v1322
    %2420 = vmatprep.subr.mxu0 %v1326
    %2421 = vmatpush1.msra.mxu0 %v1325
    %2422 = vmatprep.subr.mxu0 %v1329
    %2423 = vmatpush1.msra.mxu0 %v1328
    %2424 = vmatprep.subr.mxu0 %v1332
    %2425 = vmatpush1.msra.mxu0 %v1331
    %2426 = vmatprep.subr.mxu0 %v1335
    %2427 = vmatpush1.msra.mxu0 %v1334
    %2428 = vmatprep.subr.mxu0 %v1338
    %2429 = vmatpush1.msra.mxu0 %v1337
    %2430 = vmatprep.mubr.f32.mxu0 %v649
    %2431 = vmatmul.mubr.f32.gmra.mrb[0].mxu0 %v646
    %v2432 = vpop.f32.mrb[0].mxu0
    %v2433 = vadd.f32 %v2356, %v2432
    %v2434 = vpop.f32.mrb[0].mxu0
    %v2435 = vadd.f32 %v2358, %v2434
    %2436 = vmatprep.mubr.f32.mxu0 %v664
    %2437 = vmatmul.mubr.f32.gmra.mrb[0].mxu0 %v661
    %v2438 = vpop.f32.mrb[0].mxu0
    %v2439 = vadd.f32 %v2362, %v2438
    %v2440 = vpop.f32.mrb[0].mxu0
    %v2441 = vadd.f32 %v2364, %v2440
    %2442 = vdwg.mxu0
    %2443 = vmatprep.subr.mxu0 %v1341
    %2444 = vmatpush1.msra.mxu0 %v1340
    %2445 = vmatprep.subr.mxu0 %v1344
    %2446 = vmatpush1.msra.mxu0 %v1343
    %2447 = vmatprep.subr.mxu0 %v1347
    %2448 = vmatpush1.msra.mxu0 %v1346
    %2449 = vmatprep.subr.mxu0 %v1350
    %2450 = vmatpush1.msra.mxu0 %v1349
    %2451 = vmatprep.subr.mxu0 %v1353
    %2452 = vmatpush1.msra.mxu0 %v1352
    %2453 = vmatprep.subr.mxu0 %v1356
    %2454 = vmatpush1.msra.mxu0 %v1355
    %2455 = vmatprep.subr.mxu0 %v1359
    %2456 = vmatpush1.msra.mxu0 %v1358
    %2457 = vmatprep.subr.mxu0 %v1362
    %2458 = vmatpush1.msra.mxu0 %v1361
    %2459 = vmatprep.subr.mxu0 %v1365
    %2460 = vmatpush1.msra.mxu0 %v1364
    %2461 = vmatprep.subr.mxu0 %v1368
    %2462 = vmatpush1.msra.mxu0 %v1367
    %2463 = vmatprep.subr.mxu0 %v1371
    %2464 = vmatpush1.msra.mxu0 %v1370
    %2465 = vmatprep.subr.mxu0 %v1374
    %2466 = vmatpush1.msra.mxu0 %v1373
    %2467 = vmatprep.subr.mxu0 %v1377
    %2468 = vmatpush1.msra.mxu0 %v1376
    %2469 = vmatprep.subr.mxu0 %v1380
    %2470 = vmatpush1.msra.mxu0 %v1379
    %2471 = vmatprep.subr.mxu0 %v1383
    %2472 = vmatpush1.msra.mxu0 %v1382
    %2473 = vmatprep.subr.mxu0 %v1386
    %2474 = vmatpush1.msra.mxu0 %v1385
    %2475 = vmatprep.subr.mxu0 %v1389
    %2476 = vmatpush1.msra.mxu0 %v1388
    %2477 = vmatprep.subr.mxu0 %v1392
    %2478 = vmatpush1.msra.mxu0 %v1391
    %2479 = vmatprep.subr.mxu0 %v1395
    %2480 = vmatpush1.msra.mxu0 %v1394
    %2481 = vmatprep.subr.mxu0 %v1398
    %2482 = vmatpush1.msra.mxu0 %v1397
    %2483 = vmatprep.subr.mxu0 %v1401
    %2484 = vmatpush1.msra.mxu0 %v1400
    %2485 = vmatprep.subr.mxu0 %v1404
    %2486 = vmatpush1.msra.mxu0 %v1403
    %2487 = vmatprep.subr.mxu0 %v1407
    %2488 = vmatpush1.msra.mxu0 %v1406
    %2489 = vmatprep.subr.mxu0 %v1410
    %2490 = vmatpush1.msra.mxu0 %v1409
    %2491 = vmatprep.subr.mxu0 %v1413
    %2492 = vmatpush1.msra.mxu0 %v1412
    %2493 = vmatprep.subr.mxu0 %v1416
    %2494 = vmatpush1.msra.mxu0 %v1415
    %2495 = vmatprep.subr.mxu0 %v1419
    %2496 = vmatpush1.msra.mxu0 %v1418
    %2497 = vmatprep.subr.mxu0 %v1422
    %2498 = vmatpush1.msra.mxu0 %v1421
    %2499 = vmatprep.subr.mxu0 %v1425
    %2500 = vmatpush1.msra.mxu0 %v1424
    %2501 = vmatprep.subr.mxu0 %v1428
    %2502 = vmatpush1.msra.mxu0 %v1427
    %2503 = vmatprep.subr.mxu0 %v1431
    %2504 = vmatpush1.msra.mxu0 %v1430
    %2505 = vmatprep.subr.mxu0 %v1434
    %2506 = vmatpush1.msra.mxu0 %v1433
    %2507 = vmatprep.mubr.f32.mxu0 %v655
    %2508 = vmatmul.mubr.f32.gmra.mrb[0].mxu0 %v652
    %v2509 = vpop.f32.mrb[0].mxu0
    %v2510 = vadd.f32 %v2433, %v2509
    %v2511 = vpop.f32.mrb[0].mxu0
    %v2512 = vadd.f32 %v2435, %v2511
    %2513 = vmatprep.mubr.f32.mxu0 %v670
    %2514 = vmatmul.mubr.f32.gmra.mrb[0].mxu0 %v667
    %v2515 = vpop.f32.mrb[0].mxu0
    %v2516 = vadd.f32 %v2439, %v2515
    %v2517 = vpop.f32.mrb[0].mxu0
    %v2518 = vadd.f32 %v2441, %v2517
    %2519 = vdwg.mxu0
    %2520 = vmatprep.subr.mxu0 %v1437
    %2521 = vmatpush1.msra.mxu0 %v1436
    %2522 = vmatprep.subr.mxu0 %v1440
    %2523 = vmatpush1.msra.mxu0 %v1439
    %2524 = vmatprep.subr.mxu0 %v1443
    %2525 = vmatpush1.msra.mxu0 %v1442
    %2526 = vmatprep.subr.mxu0 %v1446
    %2527 = vmatpush1.msra.mxu0 %v1445
    %2528 = vmatprep.subr.mxu0 %v1449
    %2529 = vmatpush1.msra.mxu0 %v1448
    %2530 = vmatprep.subr.mxu0 %v1452
    %2531 = vmatpush1.msra.mxu0 %v1451
    %2532 = vmatprep.subr.mxu0 %v1455
    %2533 = vmatpush1.msra.mxu0 %v1454
    %2534 = vmatprep.subr.mxu0 %v1458
    %2535 = vmatpush1.msra.mxu0 %v1457
    %2536 = vmatprep.subr.mxu0 %v1461
    %2537 = vmatpush1.msra.mxu0 %v1460
    %2538 = vmatprep.subr.mxu0 %v1464
    %2539 = vmatpush1.msra.mxu0 %v1463
    %2540 = vmatprep.subr.mxu0 %v1467
    %2541 = vmatpush1.msra.mxu0 %v1466
    %2542 = vmatprep.subr.mxu0 %v1470
    %2543 = vmatpush1.msra.mxu0 %v1469
    %2544 = vmatprep.subr.mxu0 %v1473
    %2545 = vmatpush1.msra.mxu0 %v1472
    %2546 = vmatprep.subr.mxu0 %v1476
    %2547 = vmatpush1.msra.mxu0 %v1475
    %2548 = vmatprep.subr.mxu0 %v1479
    %2549 = vmatpush1.msra.mxu0 %v1478
    %2550 = vmatprep.subr.mxu0 %v1482
    %2551 = vmatpush1.msra.mxu0 %v1481
    %2552 = vmatprep.subr.mxu0 %v1485
    %2553 = vmatpush1.msra.mxu0 %v1484
    %2554 = vmatprep.subr.mxu0 %v1488
    %2555 = vmatpush1.msra.mxu0 %v1487
    %2556 = vmatprep.subr.mxu0 %v1491
    %2557 = vmatpush1.msra.mxu0 %v1490
    %2558 = vmatprep.subr.mxu0 %v1494
    %2559 = vmatpush1.msra.mxu0 %v1493
    %2560 = vmatprep.subr.mxu0 %v1497
    %2561 = vmatpush1.msra.mxu0 %v1496
    %2562 = vmatprep.subr.mxu0 %v1500
    %2563 = vmatpush1.msra.mxu0 %v1499
    %2564 = vmatprep.subr.mxu0 %v1503
    %2565 = vmatpush1.msra.mxu0 %v1502
    %2566 = vmatprep.subr.mxu0 %v1506
    %2567 = vmatpush1.msra.mxu0 %v1505
    %2568 = vmatprep.subr.mxu0 %v1509
    %2569 = vmatpush1.msra.mxu0 %v1508
    %2570 = vmatprep.subr.mxu0 %v1512
    %2571 = vmatpush1.msra.mxu0 %v1511
    %2572 = vmatprep.subr.mxu0 %v1515
    %2573 = vmatpush1.msra.mxu0 %v1514
    %2574 = vmatprep.subr.mxu0 %v1518
    %2575 = vmatpush1.msra.mxu0 %v1517
    %2576 = vmatprep.subr.mxu0 %v1521
    %2577 = vmatpush1.msra.mxu0 %v1520
    %2578 = vmatprep.subr.mxu0 %v1524
    %2579 = vmatpush1.msra.mxu0 %v1523
    %2580 = vmatprep.subr.mxu0 %v1527
    %2581 = vmatpush1.msra.mxu0 %v1526
    %2582 = vmatprep.subr.mxu0 %v1530
    %2583 = vmatpush1.msra.mxu0 %v1529
    %2584 = vmatprep.mubr.f32.mxu0 %v686
    %2585 = vmatmul.mubr.f32.gmra.mrb[0].mxu0 %v658
    %v2586 = vpop.f32.mrb[0].mxu0
    %v2587 = vadd.f32 %v2510, %v2586
    %v2588 = vpop.f32.mrb[0].mxu0
    %v2589 = vadd.f32 %v2512, %v2588
    %2590 = vmatprep.mubr.f32.mxu0 %v701
    %2591 = vmatmul.mubr.f32.gmra.mrb[0].mxu0 %v673
    %v2592 = vpop.f32.mrb[0].mxu0
    %v2593 = vadd.f32 %v2516, %v2592
    %v2594 = vpop.f32.mrb[0].mxu0
    %v2595 = vadd.f32 %v2518, %v2594
    %2596 = vdwg.mxu0
    %2597 = vmatprep.subr.mxu0 %v1533
    %2598 = vmatpush1.msra.mxu0 %v1532
    %2599 = vmatprep.subr.mxu0 %v1536
    %2600 = vmatpush1.msra.mxu0 %v1535
    %2601 = vmatprep.subr.mxu0 %v1539
    %2602 = vmatpush1.msra.mxu0 %v1538
    %2603 = vmatprep.subr.mxu0 %v1542
    %2604 = vmatpush1.msra.mxu0 %v1541
    %2605 = vmatprep.subr.mxu0 %v1545
    %2606 = vmatpush1.msra.mxu0 %v1544
    %2607 = vmatprep.subr.mxu0 %v1548
    %2608 = vmatpush1.msra.mxu0 %v1547
    %2609 = vmatprep.subr.mxu0 %v1551
    %2610 = vmatpush1.msra.mxu0 %v1550
    %2611 = vmatprep.subr.mxu0 %v1554
    %2612 = vmatpush1.msra.mxu0 %v1553
    %2613 = vmatprep.subr.mxu0 %v1557
    %2614 = vmatpush1.msra.mxu0 %v1556
    %2615 = vmatprep.subr.mxu0 %v1560
    %2616 = vmatpush1.msra.mxu0 %v1559
    %2617 = vmatprep.subr.mxu0 %v1563
    %2618 = vmatpush1.msra.mxu0 %v1562
    %2619 = vmatprep.subr.mxu0 %v1566
    %2620 = vmatpush1.msra.mxu0 %v1565
    %2621 = vmatprep.subr.mxu0 %v1569
    %2622 = vmatpush1.msra.mxu0 %v1568
    %2623 = vmatprep.subr.mxu0 %v1572
    %2624 = vmatpush1.msra.mxu0 %v1571
    %2625 = vmatprep.subr.mxu0 %v1575
    %2626 = vmatpush1.msra.mxu0 %v1574
    %2627 = vmatprep.subr.mxu0 %v1578
    %2628 = vmatpush1.msra.mxu0 %v1577
    %2629 = vmatprep.subr.mxu0 %v1581
    %2630 = vmatpush1.msra.mxu0 %v1580
    %2631 = vmatprep.subr.mxu0 %v1584
    %2632 = vmatpush1.msra.mxu0 %v1583
    %2633 = vmatprep.subr.mxu0 %v1587
    %2634 = vmatpush1.msra.mxu0 %v1586
    %2635 = vmatprep.subr.mxu0 %v1590
    %2636 = vmatpush1.msra.mxu0 %v1589
    %2637 = vmatprep.subr.mxu0 %v1593
    %2638 = vmatpush1.msra.mxu0 %v1592
    %2639 = vmatprep.subr.mxu0 %v1596
    %2640 = vmatpush1.msra.mxu0 %v1595
    %2641 = vmatprep.subr.mxu0 %v1599
    %2642 = vmatpush1.msra.mxu0 %v1598
    %2643 = vmatprep.subr.mxu0 %v1602
    %2644 = vmatpush1.msra.mxu0 %v1601
    %2645 = vmatprep.subr.mxu0 %v1605
    %2646 = vmatpush1.msra.mxu0 %v1604
    %2647 = vmatprep.subr.mxu0 %v1608
    %2648 = vmatpush1.msra.mxu0 %v1607
    %2649 = vmatprep.subr.mxu0 %v1611
    %2650 = vmatpush1.msra.mxu0 %v1610
    %2651 = vmatprep.subr.mxu0 %v1614
    %2652 = vmatpush1.msra.mxu0 %v1613
    %2653 = vmatprep.subr.mxu0 %v1617
    %2654 = vmatpush1.msra.mxu0 %v1616
    %2655 = vmatprep.subr.mxu0 %v1620
    %2656 = vmatpush1.msra.mxu0 %v1619
    %2657 = vmatprep.subr.mxu0 %v1623
    %2658 = vmatpush1.msra.mxu0 %v1622
    %2659 = vmatprep.subr.mxu0 %v1626
    %2660 = vmatpush1.msra.mxu0 %v1625
    %2661 = vmatprep.mubr.f32.mxu0 %v692
    %2662 = vmatmul.mubr.f32.gmra.mrb[0].mxu0 %v689
    %v2663 = vpop.f32.mrb[0].mxu0
    %v2664 = vadd.f32 %v2587, %v2663
    %v2665 = vpop.f32.mrb[0].mxu0
    %v2666 = vadd.f32 %v2589, %v2665
    %2667 = vmatprep.mubr.f32.mxu0 %v707
    %2668 = vmatmul.mubr.f32.gmra.mrb[0].mxu0 %v704
    %v2669 = vpop.f32.mrb[0].mxu0
    %v2670 = vadd.f32 %v2593, %v2669
    %v2671 = vpop.f32.mrb[0].mxu0
    %v2672 = vadd.f32 %v2595, %v2671
    %2673 = vdwg.mxu0
    %2674 = vmatprep.subr.mxu0 %v1629
    %2675 = vmatpush1.msra.mxu0 %v1628
    %2676 = vmatprep.subr.mxu0 %v1632
    %2677 = vmatpush1.msra.mxu0 %v1631
    %2678 = vmatprep.subr.mxu0 %v1635
    %2679 = vmatpush1.msra.mxu0 %v1634
    %2680 = vmatprep.subr.mxu0 %v1638
    %2681 = vmatpush1.msra.mxu0 %v1637
    %2682 = vmatprep.subr.mxu0 %v1641
    %2683 = vmatpush1.msra.mxu0 %v1640
    %2684 = vmatprep.subr.mxu0 %v1644
    %2685 = vmatpush1.msra.mxu0 %v1643
    %2686 = vmatprep.subr.mxu0 %v1647
    %2687 = vmatpush1.msra.mxu0 %v1646
    %2688 = vmatprep.subr.mxu0 %v1650
    %2689 = vmatpush1.msra.mxu0 %v1649
    %2690 = vmatprep.subr.mxu0 %v1653
    %2691 = vmatpush1.msra.mxu0 %v1652
    %2692 = vmatprep.subr.mxu0 %v1656
    %2693 = vmatpush1.msra.mxu0 %v1655
    %2694 = vmatprep.subr.mxu0 %v1659
    %2695 = vmatpush1.msra.mxu0 %v1658
    %2696 = vmatprep.subr.mxu0 %v1662
    %2697 = vmatpush1.msra.mxu0 %v1661
    %2698 = vmatprep.subr.mxu0 %v1665
    %2699 = vmatpush1.msra.mxu0 %v1664
    %2700 = vmatprep.subr.mxu0 %v1668
    %2701 = vmatpush1.msra.mxu0 %v1667
    %2702 = vmatprep.subr.mxu0 %v1671
    %2703 = vmatpush1.msra.mxu0 %v1670
    %2704 = vmatprep.subr.mxu0 %v1674
    %2705 = vmatpush1.msra.mxu0 %v1673
    %2706 = vmatprep.subr.mxu0 %v1677
    %2707 = vmatpush1.msra.mxu0 %v1676
    %2708 = vmatprep.subr.mxu0 %v1680
    %2709 = vmatpush1.msra.mxu0 %v1679
    %2710 = vmatprep.subr.mxu0 %v1683
    %2711 = vmatpush1.msra.mxu0 %v1682
    %2712 = vmatprep.subr.mxu0 %v1686
    %2713 = vmatpush1.msra.mxu0 %v1685
    %2714 = vmatprep.subr.mxu0 %v1689
    %2715 = vmatpush1.msra.mxu0 %v1688
    %2716 = vmatprep.subr.mxu0 %v1692
    %2717 = vmatpush1.msra.mxu0 %v1691
    %2718 = vmatprep.subr.mxu0 %v1695
    %2719 = vmatpush1.msra.mxu0 %v1694
    %2720 = vmatprep.subr.mxu0 %v1698
    %2721 = vmatpush1.msra.mxu0 %v1697
    %2722 = vmatprep.subr.mxu0 %v1701
    %2723 = vmatpush1.msra.mxu0 %v1700
    %2724 = vmatprep.subr.mxu0 %v1704
    %2725 = vmatpush1.msra.mxu0 %v1703
    %2726 = vmatprep.subr.mxu0 %v1707
    %2727 = vmatpush1.msra.mxu0 %v1706
    %2728 = vmatprep.subr.mxu0 %v1710
    %2729 = vmatpush1.msra.mxu0 %v1709
    %2730 = vmatprep.subr.mxu0 %v1713
    %2731 = vmatpush1.msra.mxu0 %v1712
    %2732 = vmatprep.subr.mxu0 %v1716
    %2733 = vmatpush1.msra.mxu0 %v1715
    %2734 = vmatprep.subr.mxu0 %v1719
    %2735 = vmatpush1.msra.mxu0 %v1718
    %2736 = vmatprep.subr.mxu0 %v1722
    %2737 = vmatpush1.msra.mxu0 %v1721
    %2738 = vmatprep.mubr.f32.mxu0 %v698
    %2739 = vmatmul.mubr.f32.gmra.mrb[0].mxu0 %v695
    %v2740 = vpop.f32.mrb[0].mxu0
    %v2741 = vadd.f32 %v2664, %v2740
    %v2742 = vpop.f32.mrb[0].mxu0
    %v2743 = vadd.f32 %v2666, %v2742
    %2744 = vmatprep.mubr.f32.mxu0 %v713
    %2745 = vmatmul.mubr.f32.gmra.mrb[0].mxu0 %v710
    %v2746 = vpop.f32.mrb[0].mxu0
    %v2747 = vadd.f32 %v2670, %v2746
    %v2748 = vpop.f32.mrb[0].mxu0
    %v2749 = vadd.f32 %v2672, %v2748
    %2750 = vdwg.mxu0
    %2751 = vmatprep.subr.mxu0 %v1725
    %2752 = vmatpush1.msra.mxu0 %v1724
    %2753 = vmatprep.subr.mxu0 %v1728
    %2754 = vmatpush1.msra.mxu0 %v1727
    %2755 = vmatprep.subr.mxu0 %v1731
    %2756 = vmatpush1.msra.mxu0 %v1730
    %2757 = vmatprep.subr.mxu0 %v1734
    %2758 = vmatpush1.msra.mxu0 %v1733
    %2759 = vmatprep.subr.mxu0 %v1737
    %2760 = vmatpush1.msra.mxu0 %v1736
    %2761 = vmatprep.subr.mxu0 %v1740
    %2762 = vmatpush1.msra.mxu0 %v1739
    %2763 = vmatprep.subr.mxu0 %v1743
    %2764 = vmatpush1.msra.mxu0 %v1742
    %2765 = vmatprep.subr.mxu0 %v1746
    %2766 = vmatpush1.msra.mxu0 %v1745
    %2767 = vmatprep.subr.mxu0 %v1749
    %2768 = vmatpush1.msra.mxu0 %v1748
    %2769 = vmatprep.subr.mxu0 %v1752
    %2770 = vmatpush1.msra.mxu0 %v1751
    %2771 = vmatprep.subr.mxu0 %v1755
    %2772 = vmatpush1.msra.mxu0 %v1754
    %2773 = vmatprep.subr.mxu0 %v1758
    %2774 = vmatpush1.msra.mxu0 %v1757
    %2775 = vmatprep.subr.mxu0 %v1761
    %2776 = vmatpush1.msra.mxu0 %v1760
    %2777 = vmatprep.subr.mxu0 %v1764
    %2778 = vmatpush1.msra.mxu0 %v1763
    %2779 = vmatprep.subr.mxu0 %v1767
    %2780 = vmatpush1.msra.mxu0 %v1766
    %2781 = vmatprep.subr.mxu0 %v1770
    %2782 = vmatpush1.msra.mxu0 %v1769
    %2783 = vmatprep.subr.mxu0 %v1773
    %2784 = vmatpush1.msra.mxu0 %v1772
    %2785 = vmatprep.subr.mxu0 %v1776
    %2786 = vmatpush1.msra.mxu0 %v1775
    %2787 = vmatprep.subr.mxu0 %v1779
    %2788 = vmatpush1.msra.mxu0 %v1778
    %2789 = vmatprep.subr.mxu0 %v1782
    %2790 = vmatpush1.msra.mxu0 %v1781
    %2791 = vmatprep.subr.mxu0 %v1785
    %2792 = vmatpush1.msra.mxu0 %v1784
    %2793 = vmatprep.subr.mxu0 %v1788
    %2794 = vmatpush1.msra.mxu0 %v1787
    %2795 = vmatprep.subr.mxu0 %v1791
    %2796 = vmatpush1.msra.mxu0 %v1790
    %2797 = vmatprep.subr.mxu0 %v1794
    %2798 = vmatpush1.msra.mxu0 %v1793
    %2799 = vmatprep.subr.mxu0 %v1797
    %2800 = vmatpush1.msra.mxu0 %v1796
    %2801 = vmatprep.subr.mxu0 %v1800
    %2802 = vmatpush1.msra.mxu0 %v1799
    %2803 = vmatprep.subr.mxu0 %v1803
    %2804 = vmatpush1.msra.mxu0 %v1802
    %2805 = vmatprep.subr.mxu0 %v1806
    %2806 = vmatpush1.msra.mxu0 %v1805
    %2807 = vmatprep.subr.mxu0 %v1809
    %2808 = vmatpush1.msra.mxu0 %v1808
    %2809 = vmatprep.subr.mxu0 %v1812
    %2810 = vmatpush1.msra.mxu0 %v1811
    %2811 = vmatprep.subr.mxu0 %v1815
    %2812 = vmatpush1.msra.mxu0 %v1814
    %2813 = vmatprep.subr.mxu0 %v1818
    %2814 = vmatpush1.msra.mxu0 %v1817
    %2815 = vmatprep.mubr.f32.mxu0 %v729
    %2816 = vmatmul.mubr.f32.gmra.mrb[0].mxu0 %v726
    %v2817 = vpop.f32.mrb[0].mxu0
    %v2818 = vadd.f32 %v2741, %v2817
    %v2819 = vpop.f32.mrb[0].mxu0
    %v2820 = vadd.f32 %v2743, %v2819
    %2821 = vmatprep.mubr.f32.mxu0 %v744
    %2822 = vmatmul.mubr.f32.gmra.mrb[0].mxu0 %v741
    %v2823 = vpop.f32.mrb[0].mxu0
    %v2824 = vadd.f32 %v2747, %v2823
    %v2825 = vpop.f32.mrb[0].mxu0
    %v2826 = vadd.f32 %v2749, %v2825
    %2827 = vdwg.mxu0
    %2828 = vmatprep.subr.mxu0 %v1821
    %2829 = vmatpush1.msra.mxu0 %v1820
    %2830 = vmatprep.subr.mxu0 %v1824
    %2831 = vmatpush1.msra.mxu0 %v1823
    %2832 = vmatprep.subr.mxu0 %v1827
    %2833 = vmatpush1.msra.mxu0 %v1826
    %2834 = vmatprep.subr.mxu0 %v1830
    %2835 = vmatpush1.msra.mxu0 %v1829
    %2836 = vmatprep.subr.mxu0 %v1833
    %2837 = vmatpush1.msra.mxu0 %v1832
    %2838 = vmatprep.subr.mxu0 %v1836
    %2839 = vmatpush1.msra.mxu0 %v1835
    %2840 = vmatprep.subr.mxu0 %v1839
    %2841 = vmatpush1.msra.mxu0 %v1838
    %2842 = vmatprep.subr.mxu0 %v1842
    %2843 = vmatpush1.msra.mxu0 %v1841
    %2844 = vmatprep.subr.mxu0 %v1845
    %2845 = vmatpush1.msra.mxu0 %v1844
    %2846 = vmatprep.subr.mxu0 %v1848
    %2847 = vmatpush1.msra.mxu0 %v1847
    %2848 = vmatprep.subr.mxu0 %v1851
    %2849 = vmatpush1.msra.mxu0 %v1850
    %2850 = vmatprep.subr.mxu0 %v1854
    %2851 = vmatpush1.msra.mxu0 %v1853
    %2852 = vmatprep.subr.mxu0 %v1857
    %2853 = vmatpush1.msra.mxu0 %v1856
    %2854 = vmatprep.subr.mxu0 %v1860
    %2855 = vmatpush1.msra.mxu0 %v1859
    %2856 = vmatprep.subr.mxu0 %v1863
    %2857 = vmatpush1.msra.mxu0 %v1862
    %2858 = vmatprep.subr.mxu0 %v1866
    %2859 = vmatpush1.msra.mxu0 %v1865
    %2860 = vmatprep.subr.mxu0 %v1869
    %2861 = vmatpush1.msra.mxu0 %v1868
    %2862 = vmatprep.subr.mxu0 %v1872
    %2863 = vmatpush1.msra.mxu0 %v1871
    %2864 = vmatprep.subr.mxu0 %v1875
    %2865 = vmatpush1.msra.mxu0 %v1874
    %2866 = vmatprep.subr.mxu0 %v1878
    %2867 = vmatpush1.msra.mxu0 %v1877
    %2868 = vmatprep.subr.mxu0 %v1881
    %2869 = vmatpush1.msra.mxu0 %v1880
    %2870 = vmatprep.subr.mxu0 %v1884
    %2871 = vmatpush1.msra.mxu0 %v1883
    %2872 = vmatprep.subr.mxu0 %v1887
    %2873 = vmatpush1.msra.mxu0 %v1886
    %2874 = vmatprep.subr.mxu0 %v1890
    %2875 = vmatpush1.msra.mxu0 %v1889
    %2876 = vmatprep.subr.mxu0 %v1893
    %2877 = vmatpush1.msra.mxu0 %v1892
    %2878 = vmatprep.subr.mxu0 %v1896
    %2879 = vmatpush1.msra.mxu0 %v1895
    %2880 = vmatprep.subr.mxu0 %v1899
    %2881 = vmatpush1.msra.mxu0 %v1898
    %2882 = vmatprep.subr.mxu0 %v1902
    %2883 = vmatpush1.msra.mxu0 %v1901
    %2884 = vmatprep.subr.mxu0 %v1905
    %2885 = vmatpush1.msra.mxu0 %v1904
    %2886 = vmatprep.subr.mxu0 %v1908
    %2887 = vmatpush1.msra.mxu0 %v1907
    %2888 = vmatprep.subr.mxu0 %v1911
    %2889 = vmatpush1.msra.mxu0 %v1910
    %2890 = vmatprep.subr.mxu0 %v1914
    %2891 = vmatpush1.msra.mxu0 %v1913
    %2892 = vmatprep.mubr.f32.mxu0 %v735
    %2893 = vmatmul.mubr.f32.gmra.mrb[0].mxu0 %v732
    %v2894 = vpop.f32.mrb[0].mxu0
    %v2895 = vadd.f32 %v2818, %v2894
    %v2896 = vpop.f32.mrb[0].mxu0
    %v2897 = vadd.f32 %v2820, %v2896
    %2898 = vmatprep.mubr.f32.mxu0 %v750
    %2899 = vmatmul.mubr.f32.gmra.mrb[0].mxu0 %v747
    %v2900 = vpop.f32.mrb[0].mxu0
    %v2901 = vadd.f32 %v2824, %v2900
    %v2902 = vpop.f32.mrb[0].mxu0
    %v2903 = vadd.f32 %v2826, %v2902
    %2904 = vdwg.mxu0
    %2905 = vmatprep.subr.mxu0 %v1917
    %2906 = vmatpush1.msra.mxu0 %v1916
    %2907 = vmatprep.subr.mxu0 %v1920
    %2908 = vmatpush1.msra.mxu0 %v1919
    %2909 = vmatprep.subr.mxu0 %v1923
    %2910 = vmatpush1.msra.mxu0 %v1922
    %2911 = vmatprep.subr.mxu0 %v1926
    %2912 = vmatpush1.msra.mxu0 %v1925
    %2913 = vmatprep.subr.mxu0 %v1929
    %2914 = vmatpush1.msra.mxu0 %v1928
    %2915 = vmatprep.subr.mxu0 %v1932
    %2916 = vmatpush1.msra.mxu0 %v1931
    %2917 = vmatprep.subr.mxu0 %v1935
    %2918 = vmatpush1.msra.mxu0 %v1934
    %2919 = vmatprep.subr.mxu0 %v1938
    %2920 = vmatpush1.msra.mxu0 %v1937
    %2921 = vmatprep.subr.mxu0 %v1941
    %2922 = vmatpush1.msra.mxu0 %v1940
    %2923 = vmatprep.subr.mxu0 %v1944
    %2924 = vmatpush1.msra.mxu0 %v1943
    %2925 = vmatprep.subr.mxu0 %v1947
    %2926 = vmatpush1.msra.mxu0 %v1946
    %2927 = vmatprep.subr.mxu0 %v1950
    %2928 = vmatpush1.msra.mxu0 %v1949
    %2929 = vmatprep.subr.mxu0 %v1953
    %2930 = vmatpush1.msra.mxu0 %v1952
    %2931 = vmatprep.subr.mxu0 %v1956
    %2932 = vmatpush1.msra.mxu0 %v1955
    %2933 = vmatprep.subr.mxu0 %v1959
    %2934 = vmatpush1.msra.mxu0 %v1958
    %2935 = vmatprep.subr.mxu0 %v1962
    %2936 = vmatpush1.msra.mxu0 %v1961
    %2937 = vmatprep.subr.mxu0 0.0
    %2938 = vmatpush1.msra.mxu0 0.0
    %2939 = vmatprep.subr.mxu0 0.0
    %2940 = vmatpush1.msra.mxu0 0.0
    %2941 = vmatprep.subr.mxu0 0.0
    %2942 = vmatpush1.msra.mxu0 0.0
    %2943 = vmatprep.subr.mxu0 0.0
    %2944 = vmatpush1.msra.mxu0 0.0
    %2945 = vmatprep.subr.mxu0 0.0
    %2946 = vmatpush1.msra.mxu0 0.0
    %2947 = vmatprep.subr.mxu0 0.0
    %2948 = vmatpush1.msra.mxu0 0.0
    %2949 = vmatprep.subr.mxu0 0.0
    %2950 = vmatpush1.msra.mxu0 0.0
    %2951 = vmatprep.subr.mxu0 0.0
    %2952 = vmatpush1.msra.mxu0 0.0
    %2953 = vmatprep.subr.mxu0 0.0
    %2954 = vmatpush1.msra.mxu0 0.0
    %2955 = vmatprep.subr.mxu0 0.0
    %2956 = vmatpush1.msra.mxu0 0.0
    %2957 = vmatprep.subr.mxu0 0.0
    %2958 = vmatpush1.msra.mxu0 0.0
    %2959 = vmatprep.subr.mxu0 0.0
    %2960 = vmatpush1.msra.mxu0 0.0
    %2961 = vmatprep.subr.mxu0 0.0
    %2962 = vmatpush1.msra.mxu0 0.0
    %2963 = vmatprep.subr.mxu0 0.0
    %2964 = vmatpush1.msra.mxu0 0.0
    %2965 = vmatprep.subr.mxu0 0.0
    %2966 = vmatpush1.msra.mxu0 0.0
    %2967 = vmatprep.subr.mxu0 0.0
    %2968 = vmatpush1.msra.mxu0 0.0
    %2969 = vmatprep.mubr.f32.mxu0 0.0
    %2970 = vmatmul.mubr.f32.gmra.mrb[0].mxu0 %v738
    %v2971 = vpop.f32.mrb[0].mxu0
    %v2972 = vadd.f32 %v2895, %v2971
    %v2973 = vpop.f32.mrb[0].mxu0
    %v2974 = vadd.f32 %v2897, %v2973
    %2975 = vmatprep.mubr.f32.mxu0 0.0
    %2976 = vmatmul.mubr.f32.gmra.mrb[0].mxu0 %v753
    %v2977 = vpop.f32.mrb[0].mxu0
    %v2978 = vadd.f32 %v2901, %v2977
    %v2979 = vpop.f32.mrb[0].mxu0
    %v2980 = vadd.f32 %v2903, %v2979
    %2981 = vdwg.mxu0
    %2982 = vmatprep.subr.mxu0 0.0
    %2983 = vmatpush1.msra.mxu0 %v766
    %2984 = vmatprep.subr.mxu0 0.0
    %2985 = vmatpush1.msra.mxu0 %v769
    %2986 = vmatprep.subr.mxu0 0.0
    %2987 = vmatpush1.msra.mxu0 %v772
    %2988 = vmatprep.subr.mxu0 0.0
    %2989 = vmatpush1.msra.mxu0 %v775
    %2990 = vmatprep.subr.mxu0 0.0
    %2991 = vmatpush1.msra.mxu0 %v778
    %2992 = vmatprep.subr.mxu0 0.0
    %2993 = vmatpush1.msra.mxu0 %v781
    %2994 = vmatprep.subr.mxu0 0.0
    %2995 = vmatpush1.msra.mxu0 %v784
    %2996 = vmatprep.subr.mxu0 0.0
    %2997 = vmatpush1.msra.mxu0 %v787
    %2998 = vmatprep.subr.mxu0 0.0
    %2999 = vmatpush1.msra.mxu0 %v790
    %3000 = vmatprep.subr.mxu0 0.0
    %3001 = vmatpush1.msra.mxu0 %v793
    %3002 = vmatprep.subr.mxu0 0.0
    %3003 = vmatpush1.msra.mxu0 %v796
    %3004 = vmatprep.subr.mxu0 0.0
    %3005 = vmatpush1.msra.mxu0 %v799
    %3006 = vmatprep.subr.mxu0 0.0
    %3007 = vmatpush1.msra.mxu0 %v802
    %3008 = vmatprep.subr.mxu0 0.0
    %3009 = vmatpush1.msra.mxu0 %v805
    %3010 = vmatprep.subr.mxu0 0.0
    %3011 = vmatpush1.msra.mxu0 %v808
    %3012 = vmatprep.subr.mxu0 0.0
    %3013 = vmatpush1.msra.mxu0 %v811
    %3014 = vmatprep.subr.mxu0 0.0
    %3015 = vmatpush1.msra.mxu0 %v814
    %3016 = vmatprep.subr.mxu0 0.0
    %3017 = vmatpush1.msra.mxu0 %v817
    %3018 = vmatprep.subr.mxu0 0.0
    %3019 = vmatpush1.msra.mxu0 %v820
    %3020 = vmatprep.subr.mxu0 0.0
    %3021 = vmatpush1.msra.mxu0 %v823
    %3022 = vmatprep.subr.mxu0 0.0
    %3023 = vmatpush1.msra.mxu0 %v826
    %3024 = vmatprep.subr.mxu0 0.0
    %3025 = vmatpush1.msra.mxu0 %v829
    %3026 = vmatprep.subr.mxu0 0.0
    %3027 = vmatpush1.msra.mxu0 %v832
    %3028 = vmatprep.subr.mxu0 0.0
    %3029 = vmatpush1.msra.mxu0 %v835
    %3030 = vmatprep.subr.mxu0 0.0
    %3031 = vmatpush1.msra.mxu0 %v838
    %3032 = vmatprep.subr.mxu0 0.0
    %3033 = vmatpush1.msra.mxu0 %v841
    %3034 = vmatprep.subr.mxu0 0.0
    %3035 = vmatpush1.msra.mxu0 %v844
    %3036 = vmatprep.subr.mxu0 0.0
    %3037 = vmatpush1.msra.mxu0 %v847
    %3038 = vmatprep.subr.mxu0 0.0
    %3039 = vmatpush1.msra.mxu0 %v850
    %3040 = vmatprep.subr.mxu0 0.0
    %3041 = vmatpush1.msra.mxu0 %v853
    %3042 = vmatprep.subr.mxu0 0.0
    %3043 = vmatpush1.msra.mxu0 %v856
    %3044 = vmatprep.subr.mxu0 0.0
    %3045 = vmatpush1.msra.mxu0 %v859
    %3046 = vmatprep.mubr.f32.mxu0 %v565
    %3047 = vmatmul.mubr.f32.gmra.mrb[0].mxu0 %v564
    %v3048 = vpop.f32.mrb[0].mxu0
    %v3049 = vadd.f32 %v1977, %v3048
    %v3050 = vpop.f32.mrb[0].mxu0
    %3051 = vmatprep.mubr.f32.mxu0 %v570
    %3052 = vmatmul.mubr.f32.gmra.mrb[0].mxu0 %v569
    %v3053 = vpop.f32.mrb[0].mxu0
    %v3054 = vadd.f32 %v1977, %v3053
    %v3055 = vpop.f32.mrb[0].mxu0
    %3056 = vdwg.mxu0
    %3057 = vmatprep.subr.mxu0 0.0
    %3058 = vmatpush1.msra.mxu0 %v862
    %3059 = vmatprep.subr.mxu0 0.0
    %3060 = vmatpush1.msra.mxu0 %v865
    %3061 = vmatprep.subr.mxu0 0.0
    %3062 = vmatpush1.msra.mxu0 %v868
    %3063 = vmatprep.subr.mxu0 0.0
    %3064 = vmatpush1.msra.mxu0 %v871
    %3065 = vmatprep.subr.mxu0 0.0
    %3066 = vmatpush1.msra.mxu0 %v874
    %3067 = vmatprep.subr.mxu0 0.0
    %3068 = vmatpush1.msra.mxu0 %v877
    %3069 = vmatprep.subr.mxu0 0.0
    %3070 = vmatpush1.msra.mxu0 %v880
    %3071 = vmatprep.subr.mxu0 0.0
    %3072 = vmatpush1.msra.mxu0 %v883
    %3073 = vmatprep.subr.mxu0 0.0
    %3074 = vmatpush1.msra.mxu0 %v886
    %3075 = vmatprep.subr.mxu0 0.0
    %3076 = vmatpush1.msra.mxu0 %v889
    %3077 = vmatprep.subr.mxu0 0.0
    %3078 = vmatpush1.msra.mxu0 %v892
    %3079 = vmatprep.subr.mxu0 0.0
    %3080 = vmatpush1.msra.mxu0 %v895
    %3081 = vmatprep.subr.mxu0 0.0
    %3082 = vmatpush1.msra.mxu0 %v898
    %3083 = vmatprep.subr.mxu0 0.0
    %3084 = vmatpush1.msra.mxu0 %v901
    %3085 = vmatprep.subr.mxu0 0.0
    %3086 = vmatpush1.msra.mxu0 %v904
    %3087 = vmatprep.subr.mxu0 0.0
    %3088 = vmatpush1.msra.mxu0 %v907
    %3089 = vmatprep.subr.mxu0 0.0
    %3090 = vmatpush1.msra.mxu0 %v910
    %3091 = vmatprep.subr.mxu0 0.0
    %3092 = vmatpush1.msra.mxu0 %v913
    %3093 = vmatprep.subr.mxu0 0.0
    %3094 = vmatpush1.msra.mxu0 %v916
    %3095 = vmatprep.subr.mxu0 0.0
    %3096 = vmatpush1.msra.mxu0 %v919
    %3097 = vmatprep.subr.mxu0 0.0
    %3098 = vmatpush1.msra.mxu0 %v922
    %3099 = vmatprep.subr.mxu0 0.0
    %3100 = vmatpush1.msra.mxu0 %v925
    %3101 = vmatprep.subr.mxu0 0.0
    %3102 = vmatpush1.msra.mxu0 %v928
    %3103 = vmatprep.subr.mxu0 0.0
    %3104 = vmatpush1.msra.mxu0 %v931
    %3105 = vmatprep.subr.mxu0 0.0
    %3106 = vmatpush1.msra.mxu0 %v934
    %3107 = vmatprep.subr.mxu0 0.0
    %3108 = vmatpush1.msra.mxu0 %v937
    %3109 = vmatprep.subr.mxu0 0.0
    %3110 = vmatpush1.msra.mxu0 %v940
    %3111 = vmatprep.subr.mxu0 0.0
    %3112 = vmatpush1.msra.mxu0 %v943
    %3113 = vmatprep.subr.mxu0 0.0
    %3114 = vmatpush1.msra.mxu0 %v946
    %3115 = vmatprep.subr.mxu0 0.0
    %3116 = vmatpush1.msra.mxu0 %v949
    %3117 = vmatprep.subr.mxu0 0.0
    %3118 = vmatpush1.msra.mxu0 %v952
    %3119 = vmatprep.subr.mxu0 0.0
    %3120 = vmatpush1.msra.mxu0 %v955
    %3121 = vmatprep.mubr.f32.mxu0 %v567
    %3122 = vmatmul.mubr.f32.gmra.mrb[0].mxu0 %v566
    %v3123 = vpop.f32.mrb[0].mxu0
    %v3124 = vadd.f32 %v3049, %v3123
    %v3125 = vpop.f32.mrb[0].mxu0
    %3126 = vmatprep.mubr.f32.mxu0 %v572
    %3127 = vmatmul.mubr.f32.gmra.mrb[0].mxu0 %v571
    %v3128 = vpop.f32.mrb[0].mxu0
    %v3129 = vadd.f32 %v3054, %v3128
    %v3130 = vpop.f32.mrb[0].mxu0
    %3131 = vdwg.mxu0
    %3132 = vmatprep.subr.mxu0 0.0
    %3133 = vmatpush1.msra.mxu0 %v958
    %3134 = vmatprep.subr.mxu0 0.0
    %3135 = vmatpush1.msra.mxu0 %v961
    %3136 = vmatprep.subr.mxu0 0.0
    %3137 = vmatpush1.msra.mxu0 %v964
    %3138 = vmatprep.subr.mxu0 0.0
    %3139 = vmatpush1.msra.mxu0 %v967
    %3140 = vmatprep.subr.mxu0 0.0
    %3141 = vmatpush1.msra.mxu0 %v970
    %3142 = vmatprep.subr.mxu0 0.0
    %3143 = vmatpush1.msra.mxu0 %v973
    %3144 = vmatprep.subr.mxu0 0.0
    %3145 = vmatpush1.msra.mxu0 %v976
    %3146 = vmatprep.subr.mxu0 0.0
    %3147 = vmatpush1.msra.mxu0 %v979
    %3148 = vmatprep.subr.mxu0 0.0
    %3149 = vmatpush1.msra.mxu0 %v982
    %3150 = vmatprep.subr.mxu0 0.0
    %3151 = vmatpush1.msra.mxu0 %v985
    %3152 = vmatprep.subr.mxu0 0.0
    %3153 = vmatpush1.msra.mxu0 %v988
    %3154 = vmatprep.subr.mxu0 0.0
    %3155 = vmatpush1.msra.mxu0 %v991
    %3156 = vmatprep.subr.mxu0 0.0
    %3157 = vmatpush1.msra.mxu0 %v994
    %3158 = vmatprep.subr.mxu0 0.0
    %3159 = vmatpush1.msra.mxu0 %v997
    %3160 = vmatprep.subr.mxu0 0.0
    %3161 = vmatpush1.msra.mxu0 %v1000
    %3162 = vmatprep.subr.mxu0 0.0
    %3163 = vmatpush1.msra.mxu0 %v1003
    %3164 = vmatprep.subr.mxu0 0.0
    %3165 = vmatpush1.msra.mxu0 %v1006
    %3166 = vmatprep.subr.mxu0 0.0
    %3167 = vmatpush1.msra.mxu0 %v1009
    %3168 = vmatprep.subr.mxu0 0.0
    %3169 = vmatpush1.msra.mxu0 %v1012
    %3170 = vmatprep.subr.mxu0 0.0
    %3171 = vmatpush1.msra.mxu0 %v1015
    %3172 = vmatprep.subr.mxu0 0.0
    %3173 = vmatpush1.msra.mxu0 %v1018
    %3174 = vmatprep.subr.mxu0 0.0
    %3175 = vmatpush1.msra.mxu0 %v1021
    %3176 = vmatprep.subr.mxu0 0.0
    %3177 = vmatpush1.msra.mxu0 %v1024
    %3178 = vmatprep.subr.mxu0 0.0
    %3179 = vmatpush1.msra.mxu0 %v1027
    %3180 = vmatprep.subr.mxu0 0.0
    %3181 = vmatpush1.msra.mxu0 %v1030
    %3182 = vmatprep.subr.mxu0 0.0
    %3183 = vmatpush1.msra.mxu0 %v1033
    %3184 = vmatprep.subr.mxu0 0.0
    %3185 = vmatpush1.msra.mxu0 %v1036
    %3186 = vmatprep.subr.mxu0 0.0
    %3187 = vmatpush1.msra.mxu0 %v1039
    %3188 = vmatprep.subr.mxu0 0.0
    %3189 = vmatpush1.msra.mxu0 %v1042
    %3190 = vmatprep.subr.mxu0 0.0
    %3191 = vmatpush1.msra.mxu0 %v1045
    %3192 = vmatprep.subr.mxu0 0.0
    %3193 = vmatpush1.msra.mxu0 %v1048
    %3194 = vmatprep.subr.mxu0 0.0
    %3195 = vmatpush1.msra.mxu0 %v1051
    %3196 = vmatprep.mubr.f32.mxu0 %v606
    %3197 = vmatmul.mubr.f32.gmra.mrb[0].mxu0 %v568
    %v3198 = vpop.f32.mrb[0].mxu0
    %v3199 = vadd.f32 %v3124, %v3198
    %v3200 = vpop.f32.mrb[0].mxu0
    %3201 = vmatprep.mubr.f32.mxu0 %v621
    %3202 = vmatmul.mubr.f32.gmra.mrb[0].mxu0 %v573
    %v3203 = vpop.f32.mrb[0].mxu0
    %v3204 = vadd.f32 %v3129, %v3203
    %v3205 = vpop.f32.mrb[0].mxu0
    %3206 = vdwg.mxu0
    %3207 = vmatprep.subr.mxu0 0.0
    %3208 = vmatpush1.msra.mxu0 %v1054
    %3209 = vmatprep.subr.mxu0 0.0
    %3210 = vmatpush1.msra.mxu0 %v1057
    %3211 = vmatprep.subr.mxu0 0.0
    %3212 = vmatpush1.msra.mxu0 %v1060
    %3213 = vmatprep.subr.mxu0 0.0
    %3214 = vmatpush1.msra.mxu0 %v1063
    %3215 = vmatprep.subr.mxu0 0.0
    %3216 = vmatpush1.msra.mxu0 %v1066
    %3217 = vmatprep.subr.mxu0 0.0
    %3218 = vmatpush1.msra.mxu0 %v1069
    %3219 = vmatprep.subr.mxu0 0.0
    %3220 = vmatpush1.msra.mxu0 %v1072
    %3221 = vmatprep.subr.mxu0 0.0
    %3222 = vmatpush1.msra.mxu0 %v1075
    %3223 = vmatprep.subr.mxu0 0.0
    %3224 = vmatpush1.msra.mxu0 %v1078
    %3225 = vmatprep.subr.mxu0 0.0
    %3226 = vmatpush1.msra.mxu0 %v1081
    %3227 = vmatprep.subr.mxu0 0.0
    %3228 = vmatpush1.msra.mxu0 %v1084
    %3229 = vmatprep.subr.mxu0 0.0
    %3230 = vmatpush1.msra.mxu0 %v1087
    %3231 = vmatprep.subr.mxu0 0.0
    %3232 = vmatpush1.msra.mxu0 %v1090
    %3233 = vmatprep.subr.mxu0 0.0
    %3234 = vmatpush1.msra.mxu0 %v1093
    %3235 = vmatprep.subr.mxu0 0.0
    %3236 = vmatpush1.msra.mxu0 %v1096
    %3237 = vmatprep.subr.mxu0 0.0
    %3238 = vmatpush1.msra.mxu0 %v1099
    %3239 = vmatprep.subr.mxu0 0.0
    %3240 = vmatpush1.msra.mxu0 %v1102
    %3241 = vmatprep.subr.mxu0 0.0
    %3242 = vmatpush1.msra.mxu0 %v1105
    %3243 = vmatprep.subr.mxu0 0.0
    %3244 = vmatpush1.msra.mxu0 %v1108
    %3245 = vmatprep.subr.mxu0 0.0
    %3246 = vmatpush1.msra.mxu0 %v1111
    %3247 = vmatprep.subr.mxu0 0.0
    %3248 = vmatpush1.msra.mxu0 %v1114
    %3249 = vmatprep.subr.mxu0 0.0
    %3250 = vmatpush1.msra.mxu0 %v1117
    %3251 = vmatprep.subr.mxu0 0.0
    %3252 = vmatpush1.msra.mxu0 %v1120
    %3253 = vmatprep.subr.mxu0 0.0
    %3254 = vmatpush1.msra.mxu0 %v1123
    %3255 = vmatprep.subr.mxu0 0.0
    %3256 = vmatpush1.msra.mxu0 %v1126
    %3257 = vmatprep.subr.mxu0 0.0
    %3258 = vmatpush1.msra.mxu0 %v1129
    %3259 = vmatprep.subr.mxu0 0.0
    %3260 = vmatpush1.msra.mxu0 %v1132
    %3261 = vmatprep.subr.mxu0 0.0
    %3262 = vmatpush1.msra.mxu0 %v1135
    %3263 = vmatprep.subr.mxu0 0.0
    %3264 = vmatpush1.msra.mxu0 %v1138
    %3265 = vmatprep.subr.mxu0 0.0
    %3266 = vmatpush1.msra.mxu0 %v1141
    %3267 = vmatprep.subr.mxu0 0.0
    %3268 = vmatpush1.msra.mxu0 %v1144
    %3269 = vmatprep.subr.mxu0 0.0
    %3270 = vmatpush1.msra.mxu0 %v1147
    %3271 = vmatprep.mubr.f32.mxu0 %v612
    %3272 = vmatmul.mubr.f32.gmra.mrb[0].mxu0 %v609
    %v3273 = vpop.f32.mrb[0].mxu0
    %v3274 = vadd.f32 %v3199, %v3273
    %v3275 = vpop.f32.mrb[0].mxu0
    %3276 = vmatprep.mubr.f32.mxu0 %v627
    %3277 = vmatmul.mubr.f32.gmra.mrb[0].mxu0 %v624
    %v3278 = vpop.f32.mrb[0].mxu0
    %v3279 = vadd.f32 %v3204, %v3278
    %v3280 = vpop.f32.mrb[0].mxu0
    %3281 = vdwg.mxu0
    %3282 = vmatprep.subr.mxu0 0.0
    %3283 = vmatpush1.msra.mxu0 %v1150
    %3284 = vmatprep.subr.mxu0 0.0
    %3285 = vmatpush1.msra.mxu0 %v1153
    %3286 = vmatprep.subr.mxu0 0.0
    %3287 = vmatpush1.msra.mxu0 %v1156
    %3288 = vmatprep.subr.mxu0 0.0
    %3289 = vmatpush1.msra.mxu0 %v1159
    %3290 = vmatprep.subr.mxu0 0.0
    %3291 = vmatpush1.msra.mxu0 %v1162
    %3292 = vmatprep.subr.mxu0 0.0
    %3293 = vmatpush1.msra.mxu0 %v1165
    %3294 = vmatprep.subr.mxu0 0.0
    %3295 = vmatpush1.msra.mxu0 %v1168
    %3296 = vmatprep.subr.mxu0 0.0
    %3297 = vmatpush1.msra.mxu0 %v1171
    %3298 = vmatprep.subr.mxu0 0.0
    %3299 = vmatpush1.msra.mxu0 %v1174
    %3300 = vmatprep.subr.mxu0 0.0
    %3301 = vmatpush1.msra.mxu0 %v1177
    %3302 = vmatprep.subr.mxu0 0.0
    %3303 = vmatpush1.msra.mxu0 %v1180
    %3304 = vmatprep.subr.mxu0 0.0
    %3305 = vmatpush1.msra.mxu0 %v1183
    %3306 = vmatprep.subr.mxu0 0.0
    %3307 = vmatpush1.msra.mxu0 %v1186
    %3308 = vmatprep.subr.mxu0 0.0
    %3309 = vmatpush1.msra.mxu0 %v1189
    %3310 = vmatprep.subr.mxu0 0.0
    %3311 = vmatpush1.msra.mxu0 %v1192
    %3312 = vmatprep.subr.mxu0 0.0
    %3313 = vmatpush1.msra.mxu0 %v1195
    %3314 = vmatprep.subr.mxu0 0.0
    %3315 = vmatpush1.msra.mxu0 %v1198
    %3316 = vmatprep.subr.mxu0 0.0
    %3317 = vmatpush1.msra.mxu0 %v1201
    %3318 = vmatprep.subr.mxu0 0.0
    %3319 = vmatpush1.msra.mxu0 %v1204
    %3320 = vmatprep.subr.mxu0 0.0
    %3321 = vmatpush1.msra.mxu0 %v1207
    %3322 = vmatprep.subr.mxu0 0.0
    %3323 = vmatpush1.msra.mxu0 %v1210
    %3324 = vmatprep.subr.mxu0 0.0
    %3325 = vmatpush1.msra.mxu0 %v1213
    %3326 = vmatprep.subr.mxu0 0.0
    %3327 = vmatpush1.msra.mxu0 %v1216
    %3328 = vmatprep.subr.mxu0 0.0
    %3329 = vmatpush1.msra.mxu0 %v1219
    %3330 = vmatprep.subr.mxu0 0.0
    %3331 = vmatpush1.msra.mxu0 %v1222
    %3332 = vmatprep.subr.mxu0 0.0
    %3333 = vmatpush1.msra.mxu0 %v1225
    %3334 = vmatprep.subr.mxu0 0.0
    %3335 = vmatpush1.msra.mxu0 %v1228
    %3336 = vmatprep.subr.mxu0 0.0
    %3337 = vmatpush1.msra.mxu0 %v1231
    %3338 = vmatprep.subr.mxu0 0.0
    %3339 = vmatpush1.msra.mxu0 %v1234
    %3340 = vmatprep.subr.mxu0 0.0
    %3341 = vmatpush1.msra.mxu0 %v1237
    %3342 = vmatprep.subr.mxu0 0.0
    %3343 = vmatpush1.msra.mxu0 %v1240
    %3344 = vmatprep.subr.mxu0 0.0
    %3345 = vmatpush1.msra.mxu0 %v1243
    %3346 = vmatprep.mubr.f32.mxu0 %v618
    %3347 = vmatmul.mubr.f32.gmra.mrb[0].mxu0 %v615
    %v3348 = vpop.f32.mrb[0].mxu0
    %v3349 = vadd.f32 %v3274, %v3348
    %v3350 = vpop.f32.mrb[0].mxu0
    %3351 = vmatprep.mubr.f32.mxu0 %v633
    %3352 = vmatmul.mubr.f32.gmra.mrb[0].mxu0 %v630
    %v3353 = vpop.f32.mrb[0].mxu0
    %v3354 = vadd.f32 %v3279, %v3353
    %v3355 = vpop.f32.mrb[0].mxu0
    %3356 = vdwg.mxu0
    %3357 = vmatprep.subr.mxu0 0.0
    %3358 = vmatpush1.msra.mxu0 %v1246
    %3359 = vmatprep.subr.mxu0 0.0
    %3360 = vmatpush1.msra.mxu0 %v1249
    %3361 = vmatprep.subr.mxu0 0.0
    %3362 = vmatpush1.msra.mxu0 %v1252
    %3363 = vmatprep.subr.mxu0 0.0
    %3364 = vmatpush1.msra.mxu0 %v1255
    %3365 = vmatprep.subr.mxu0 0.0
    %3366 = vmatpush1.msra.mxu0 %v1258
    %3367 = vmatprep.subr.mxu0 0.0
    %3368 = vmatpush1.msra.mxu0 %v1261
    %3369 = vmatprep.subr.mxu0 0.0
    %3370 = vmatpush1.msra.mxu0 %v1264
    %3371 = vmatprep.subr.mxu0 0.0
    %3372 = vmatpush1.msra.mxu0 %v1267
    %3373 = vmatprep.subr.mxu0 0.0
    %3374 = vmatpush1.msra.mxu0 %v1270
    %3375 = vmatprep.subr.mxu0 0.0
    %3376 = vmatpush1.msra.mxu0 %v1273
    %3377 = vmatprep.subr.mxu0 0.0
    %3378 = vmatpush1.msra.mxu0 %v1276
    %3379 = vmatprep.subr.mxu0 0.0
    %3380 = vmatpush1.msra.mxu0 %v1279
    %3381 = vmatprep.subr.mxu0 0.0
    %3382 = vmatpush1.msra.mxu0 %v1282
    %3383 = vmatprep.subr.mxu0 0.0
    %3384 = vmatpush1.msra.mxu0 %v1285
    %3385 = vmatprep.subr.mxu0 0.0
    %3386 = vmatpush1.msra.mxu0 %v1288
    %3387 = vmatprep.subr.mxu0 0.0
    %3388 = vmatpush1.msra.mxu0 %v1291
    %3389 = vmatprep.subr.mxu0 0.0
    %3390 = vmatpush1.msra.mxu0 %v1294
    %3391 = vmatprep.subr.mxu0 0.0
    %3392 = vmatpush1.msra.mxu0 %v1297
    %3393 = vmatprep.subr.mxu0 0.0
    %3394 = vmatpush1.msra.mxu0 %v1300
    %3395 = vmatprep.subr.mxu0 0.0
    %3396 = vmatpush1.msra.mxu0 %v1303
    %3397 = vmatprep.subr.mxu0 0.0
    %3398 = vmatpush1.msra.mxu0 %v1306
    %3399 = vmatprep.subr.mxu0 0.0
    %3400 = vmatpush1.msra.mxu0 %v1309
    %3401 = vmatprep.subr.mxu0 0.0
    %3402 = vmatpush1.msra.mxu0 %v1312
    %3403 = vmatprep.subr.mxu0 0.0
    %3404 = vmatpush1.msra.mxu0 %v1315
    %3405 = vmatprep.subr.mxu0 0.0
    %3406 = vmatpush1.msra.mxu0 %v1318
    %3407 = vmatprep.subr.mxu0 0.0
    %3408 = vmatpush1.msra.mxu0 %v1321
    %3409 = vmatprep.subr.mxu0 0.0
    %3410 = vmatpush1.msra.mxu0 %v1324
    %3411 = vmatprep.subr.mxu0 0.0
    %3412 = vmatpush1.msra.mxu0 %v1327
    %3413 = vmatprep.subr.mxu0 0.0
    %3414 = vmatpush1.msra.mxu0 %v1330
    %3415 = vmatprep.subr.mxu0 0.0
    %3416 = vmatpush1.msra.mxu0 %v1333
    %3417 = vmatprep.subr.mxu0 0.0
    %3418 = vmatpush1.msra.mxu0 %v1336
    %3419 = vmatprep.subr.mxu0 0.0
    %3420 = vmatpush1.msra.mxu0 %v1339
    %3421 = vmatprep.mubr.f32.mxu0 %v649
    %3422 = vmatmul.mubr.f32.gmra.mrb[0].mxu0 %v646
    %v3423 = vpop.f32.mrb[0].mxu0
    %v3424 = vadd.f32 %v3349, %v3423
    %v3425 = vpop.f32.mrb[0].mxu0
    %3426 = vmatprep.mubr.f32.mxu0 %v664
    %3427 = vmatmul.mubr.f32.gmra.mrb[0].mxu0 %v661
    %v3428 = vpop.f32.mrb[0].mxu0
    %v3429 = vadd.f32 %v3354, %v3428
    %v3430 = vpop.f32.mrb[0].mxu0
    %3431 = vdwg.mxu0
    %3432 = vmatprep.subr.mxu0 0.0
    %3433 = vmatpush1.msra.mxu0 %v1342
    %3434 = vmatprep.subr.mxu0 0.0
    %3435 = vmatpush1.msra.mxu0 %v1345
    %3436 = vmatprep.subr.mxu0 0.0
    %3437 = vmatpush1.msra.mxu0 %v1348
    %3438 = vmatprep.subr.mxu0 0.0
    %3439 = vmatpush1.msra.mxu0 %v1351
    %3440 = vmatprep.subr.mxu0 0.0
    %3441 = vmatpush1.msra.mxu0 %v1354
    %3442 = vmatprep.subr.mxu0 0.0
    %3443 = vmatpush1.msra.mxu0 %v1357
    %3444 = vmatprep.subr.mxu0 0.0
    %3445 = vmatpush1.msra.mxu0 %v1360
    %3446 = vmatprep.subr.mxu0 0.0
    %3447 = vmatpush1.msra.mxu0 %v1363
    %3448 = vmatprep.subr.mxu0 0.0
    %3449 = vmatpush1.msra.mxu0 %v1366
    %3450 = vmatprep.subr.mxu0 0.0
    %3451 = vmatpush1.msra.mxu0 %v1369
    %3452 = vmatprep.subr.mxu0 0.0
    %3453 = vmatpush1.msra.mxu0 %v1372
    %3454 = vmatprep.subr.mxu0 0.0
    %3455 = vmatpush1.msra.mxu0 %v1375
    %3456 = vmatprep.subr.mxu0 0.0
    %3457 = vmatpush1.msra.mxu0 %v1378
    %3458 = vmatprep.subr.mxu0 0.0
    %3459 = vmatpush1.msra.mxu0 %v1381
    %3460 = vmatprep.subr.mxu0 0.0
    %3461 = vmatpush1.msra.mxu0 %v1384
    %3462 = vmatprep.subr.mxu0 0.0
    %3463 = vmatpush1.msra.mxu0 %v1387
    %3464 = vmatprep.subr.mxu0 0.0
    %3465 = vmatpush1.msra.mxu0 %v1390
    %3466 = vmatprep.subr.mxu0 0.0
    %3467 = vmatpush1.msra.mxu0 %v1393
    %3468 = vmatprep.subr.mxu0 0.0
    %3469 = vmatpush1.msra.mxu0 %v1396
    %3470 = vmatprep.subr.mxu0 0.0
    %3471 = vmatpush1.msra.mxu0 %v1399
    %3472 = vmatprep.subr.mxu0 0.0
    %3473 = vmatpush1.msra.mxu0 %v1402
    %3474 = vmatprep.subr.mxu0 0.0
    %3475 = vmatpush1.msra.mxu0 %v1405
    %3476 = vmatprep.subr.mxu0 0.0
    %3477 = vmatpush1.msra.mxu0 %v1408
    %3478 = vmatprep.subr.mxu0 0.0
    %3479 = vmatpush1.msra.mxu0 %v1411
    %3480 = vmatprep.subr.mxu0 0.0
    %3481 = vmatpush1.msra.mxu0 %v1414
    %3482 = vmatprep.subr.mxu0 0.0
    %3483 = vmatpush1.msra.mxu0 %v1417
    %3484 = vmatprep.subr.mxu0 0.0
    %3485 = vmatpush1.msra.mxu0 %v1420
    %3486 = vmatprep.subr.mxu0 0.0
    %3487 = vmatpush1.msra.mxu0 %v1423
    %3488 = vmatprep.subr.mxu0 0.0
    %3489 = vmatpush1.msra.mxu0 %v1426
    %3490 = vmatprep.subr.mxu0 0.0
    %3491 = vmatpush1.msra.mxu0 %v1429
    %3492 = vmatprep.subr.mxu0 0.0
    %3493 = vmatpush1.msra.mxu0 %v1432
    %3494 = vmatprep.subr.mxu0 0.0
    %3495 = vmatpush1.msra.mxu0 %v1435
    %3496 = vmatprep.mubr.f32.mxu0 %v655
    %3497 = vmatmul.mubr.f32.gmra.mrb[0].mxu0 %v652
    %v3498 = vpop.f32.mrb[0].mxu0
    %v3499 = vadd.f32 %v3424, %v3498
    %v3500 = vpop.f32.mrb[0].mxu0
    %3501 = vmatprep.mubr.f32.mxu0 %v670
    %3502 = vmatmul.mubr.f32.gmra.mrb[0].mxu0 %v667
    %v3503 = vpop.f32.mrb[0].mxu0
    %v3504 = vadd.f32 %v3429, %v3503
    %v3505 = vpop.f32.mrb[0].mxu0
    %3506 = vdwg.mxu0
    %3507 = vmatprep.subr.mxu0 0.0
    %3508 = vmatpush1.msra.mxu0 %v1438
    %3509 = vmatprep.subr.mxu0 0.0
    %3510 = vmatpush1.msra.mxu0 %v1441
    %3511 = vmatprep.subr.mxu0 0.0
    %3512 = vmatpush1.msra.mxu0 %v1444
    %3513 = vmatprep.subr.mxu0 0.0
    %3514 = vmatpush1.msra.mxu0 %v1447
    %3515 = vmatprep.subr.mxu0 0.0
    %3516 = vmatpush1.msra.mxu0 %v1450
    %3517 = vmatprep.subr.mxu0 0.0
    %3518 = vmatpush1.msra.mxu0 %v1453
    %3519 = vmatprep.subr.mxu0 0.0
    %3520 = vmatpush1.msra.mxu0 %v1456
    %3521 = vmatprep.subr.mxu0 0.0
    %3522 = vmatpush1.msra.mxu0 %v1459
    %3523 = vmatprep.subr.mxu0 0.0
    %3524 = vmatpush1.msra.mxu0 %v1462
    %3525 = vmatprep.subr.mxu0 0.0
    %3526 = vmatpush1.msra.mxu0 %v1465
    %3527 = vmatprep.subr.mxu0 0.0
    %3528 = vmatpush1.msra.mxu0 %v1468
    %3529 = vmatprep.subr.mxu0 0.0
    %3530 = vmatpush1.msra.mxu0 %v1471
    %3531 = vmatprep.subr.mxu0 0.0
    %3532 = vmatpush1.msra.mxu0 %v1474
    %3533 = vmatprep.subr.mxu0 0.0
    %3534 = vmatpush1.msra.mxu0 %v1477
    %3535 = vmatprep.subr.mxu0 0.0
    %3536 = vmatpush1.msra.mxu0 %v1480
    %3537 = vmatprep.subr.mxu0 0.0
    %3538 = vmatpush1.msra.mxu0 %v1483
    %3539 = vmatprep.subr.mxu0 0.0
    %3540 = vmatpush1.msra.mxu0 %v1486
    %3541 = vmatprep.subr.mxu0 0.0
    %3542 = vmatpush1.msra.mxu0 %v1489
    %3543 = vmatprep.subr.mxu0 0.0
    %3544 = vmatpush1.msra.mxu0 %v1492
    %3545 = vmatprep.subr.mxu0 0.0
    %3546 = vmatpush1.msra.mxu0 %v1495
    %3547 = vmatprep.subr.mxu0 0.0
    %3548 = vmatpush1.msra.mxu0 %v1498
    %3549 = vmatprep.subr.mxu0 0.0
    %3550 = vmatpush1.msra.mxu0 %v1501
    %3551 = vmatprep.subr.mxu0 0.0
    %3552 = vmatpush1.msra.mxu0 %v1504
    %3553 = vmatprep.subr.mxu0 0.0
    %3554 = vmatpush1.msra.mxu0 %v1507
    %3555 = vmatprep.subr.mxu0 0.0
    %3556 = vmatpush1.msra.mxu0 %v1510
    %3557 = vmatprep.subr.mxu0 0.0
    %3558 = vmatpush1.msra.mxu0 %v1513
    %3559 = vmatprep.subr.mxu0 0.0
    %3560 = vmatpush1.msra.mxu0 %v1516
    %3561 = vmatprep.subr.mxu0 0.0
    %3562 = vmatpush1.msra.mxu0 %v1519
    %3563 = vmatprep.subr.mxu0 0.0
    %3564 = vmatpush1.msra.mxu0 %v1522
    %3565 = vmatprep.subr.mxu0 0.0
    %3566 = vmatpush1.msra.mxu0 %v1525
    %3567 = vmatprep.subr.mxu0 0.0
    %3568 = vmatpush1.msra.mxu0 %v1528
    %3569 = vmatprep.subr.mxu0 0.0
    %3570 = vmatpush1.msra.mxu0 %v1531
    %3571 = vmatprep.mubr.f32.mxu0 %v686
    %3572 = vmatmul.mubr.f32.gmra.mrb[0].mxu0 %v658
    %v3573 = vpop.f32.mrb[0].mxu0
    %v3574 = vadd.f32 %v3499, %v3573
    %v3575 = vpop.f32.mrb[0].mxu0
    %3576 = vmatprep.mubr.f32.mxu0 %v701
    %3577 = vmatmul.mubr.f32.gmra.mrb[0].mxu0 %v673
    %v3578 = vpop.f32.mrb[0].mxu0
    %v3579 = vadd.f32 %v3504, %v3578
    %v3580 = vpop.f32.mrb[0].mxu0
    %3581 = vdwg.mxu0
    %3582 = vmatprep.subr.mxu0 0.0
    %3583 = vmatpush1.msra.mxu0 %v1534
    %3584 = vmatprep.subr.mxu0 0.0
    %3585 = vmatpush1.msra.mxu0 %v1537
    %3586 = vmatprep.subr.mxu0 0.0
    %3587 = vmatpush1.msra.mxu0 %v1540
    %3588 = vmatprep.subr.mxu0 0.0
    %3589 = vmatpush1.msra.mxu0 %v1543
    %3590 = vmatprep.subr.mxu0 0.0
    %3591 = vmatpush1.msra.mxu0 %v1546
    %3592 = vmatprep.subr.mxu0 0.0
    %3593 = vmatpush1.msra.mxu0 %v1549
    %3594 = vmatprep.subr.mxu0 0.0
    %3595 = vmatpush1.msra.mxu0 %v1552
    %3596 = vmatprep.subr.mxu0 0.0
    %3597 = vmatpush1.msra.mxu0 %v1555
    %3598 = vmatprep.subr.mxu0 0.0
    %3599 = vmatpush1.msra.mxu0 %v1558
    %3600 = vmatprep.subr.mxu0 0.0
    %3601 = vmatpush1.msra.mxu0 %v1561
    %3602 = vmatprep.subr.mxu0 0.0
    %3603 = vmatpush1.msra.mxu0 %v1564
    %3604 = vmatprep.subr.mxu0 0.0
    %3605 = vmatpush1.msra.mxu0 %v1567
    %3606 = vmatprep.subr.mxu0 0.0
    %3607 = vmatpush1.msra.mxu0 %v1570
    %3608 = vmatprep.subr.mxu0 0.0
    %3609 = vmatpush1.msra.mxu0 %v1573
    %3610 = vmatprep.subr.mxu0 0.0
    %3611 = vmatpush1.msra.mxu0 %v1576
    %3612 = vmatprep.subr.mxu0 0.0
    %3613 = vmatpush1.msra.mxu0 %v1579
    %3614 = vmatprep.subr.mxu0 0.0
    %3615 = vmatpush1.msra.mxu0 %v1582
    %3616 = vmatprep.subr.mxu0 0.0
    %3617 = vmatpush1.msra.mxu0 %v1585
    %3618 = vmatprep.subr.mxu0 0.0
    %3619 = vmatpush1.msra.mxu0 %v1588
    %3620 = vmatprep.subr.mxu0 0.0
    %3621 = vmatpush1.msra.mxu0 %v1591
    %3622 = vmatprep.subr.mxu0 0.0
    %3623 = vmatpush1.msra.mxu0 %v1594
    %3624 = vmatprep.subr.mxu0 0.0
    %3625 = vmatpush1.msra.mxu0 %v1597
    %3626 = vmatprep.subr.mxu0 0.0
    %3627 = vmatpush1.msra.mxu0 %v1600
    %3628 = vmatprep.subr.mxu0 0.0
    %3629 = vmatpush1.msra.mxu0 %v1603
    %3630 = vmatprep.subr.mxu0 0.0
    %3631 = vmatpush1.msra.mxu0 %v1606
    %3632 = vmatprep.subr.mxu0 0.0
    %3633 = vmatpush1.msra.mxu0 %v1609
    %3634 = vmatprep.subr.mxu0 0.0
    %3635 = vmatpush1.msra.mxu0 %v1612
    %3636 = vmatprep.subr.mxu0 0.0
    %3637 = vmatpush1.msra.mxu0 %v1615
    %3638 = vmatprep.subr.mxu0 0.0
    %3639 = vmatpush1.msra.mxu0 %v1618
    %3640 = vmatprep.subr.mxu0 0.0
    %3641 = vmatpush1.msra.mxu0 %v1621
    %3642 = vmatprep.subr.mxu0 0.0
    %3643 = vmatpush1.msra.mxu0 %v1624
    %3644 = vmatprep.subr.mxu0 0.0
    %3645 = vmatpush1.msra.mxu0 %v1627
    %3646 = vmatprep.mubr.f32.mxu0 %v692
    %3647 = vmatmul.mubr.f32.gmra.mrb[0].mxu0 %v689
    %v3648 = vpop.f32.mrb[0].mxu0
    %v3649 = vadd.f32 %v3574, %v3648
    %v3650 = vpop.f32.mrb[0].mxu0
    %3651 = vmatprep.mubr.f32.mxu0 %v707
    %3652 = vmatmul.mubr.f32.gmra.mrb[0].mxu0 %v704
    %v3653 = vpop.f32.mrb[0].mxu0
    %v3654 = vadd.f32 %v3579, %v3653
    %v3655 = vpop.f32.mrb[0].mxu0
    %3656 = vdwg.mxu0
    %3657 = vmatprep.subr.mxu0 0.0
    %3658 = vmatpush1.msra.mxu0 %v1630
    %3659 = vmatprep.subr.mxu0 0.0
    %3660 = vmatpush1.msra.mxu0 %v1633
    %3661 = vmatprep.subr.mxu0 0.0
    %3662 = vmatpush1.msra.mxu0 %v1636
    %3663 = vmatprep.subr.mxu0 0.0
    %3664 = vmatpush1.msra.mxu0 %v1639
    %3665 = vmatprep.subr.mxu0 0.0
    %3666 = vmatpush1.msra.mxu0 %v1642
    %3667 = vmatprep.subr.mxu0 0.0
    %3668 = vmatpush1.msra.mxu0 %v1645
    %3669 = vmatprep.subr.mxu0 0.0
    %3670 = vmatpush1.msra.mxu0 %v1648
    %3671 = vmatprep.subr.mxu0 0.0
    %3672 = vmatpush1.msra.mxu0 %v1651
    %3673 = vmatprep.subr.mxu0 0.0
    %3674 = vmatpush1.msra.mxu0 %v1654
    %3675 = vmatprep.subr.mxu0 0.0
    %3676 = vmatpush1.msra.mxu0 %v1657
    %3677 = vmatprep.subr.mxu0 0.0
    %3678 = vmatpush1.msra.mxu0 %v1660
    %3679 = vmatprep.subr.mxu0 0.0
    %3680 = vmatpush1.msra.mxu0 %v1663
    %3681 = vmatprep.subr.mxu0 0.0
    %3682 = vmatpush1.msra.mxu0 %v1666
    %3683 = vmatprep.subr.mxu0 0.0
    %3684 = vmatpush1.msra.mxu0 %v1669
    %3685 = vmatprep.subr.mxu0 0.0
    %3686 = vmatpush1.msra.mxu0 %v1672
    %3687 = vmatprep.subr.mxu0 0.0
    %3688 = vmatpush1.msra.mxu0 %v1675
    %3689 = vmatprep.subr.mxu0 0.0
    %3690 = vmatpush1.msra.mxu0 %v1678
    %3691 = vmatprep.subr.mxu0 0.0
    %3692 = vmatpush1.msra.mxu0 %v1681
    %3693 = vmatprep.subr.mxu0 0.0
    %3694 = vmatpush1.msra.mxu0 %v1684
    %3695 = vmatprep.subr.mxu0 0.0
    %3696 = vmatpush1.msra.mxu0 %v1687
    %3697 = vmatprep.subr.mxu0 0.0
    %3698 = vmatpush1.msra.mxu0 %v1690
    %3699 = vmatprep.subr.mxu0 0.0
    %3700 = vmatpush1.msra.mxu0 %v1693
    %3701 = vmatprep.subr.mxu0 0.0
    %3702 = vmatpush1.msra.mxu0 %v1696
    %3703 = vmatprep.subr.mxu0 0.0
    %3704 = vmatpush1.msra.mxu0 %v1699
    %3705 = vmatprep.subr.mxu0 0.0
    %3706 = vmatpush1.msra.mxu0 %v1702
    %3707 = vmatprep.subr.mxu0 0.0
    %3708 = vmatpush1.msra.mxu0 %v1705
    %3709 = vmatprep.subr.mxu0 0.0
    %3710 = vmatpush1.msra.mxu0 %v1708
    %3711 = vmatprep.subr.mxu0 0.0
    %3712 = vmatpush1.msra.mxu0 %v1711
    %3713 = vmatprep.subr.mxu0 0.0
    %3714 = vmatpush1.msra.mxu0 %v1714
    %3715 = vmatprep.subr.mxu0 0.0
    %3716 = vmatpush1.msra.mxu0 %v1717
    %3717 = vmatprep.subr.mxu0 0.0
    %3718 = vmatpush1.msra.mxu0 %v1720
    %3719 = vmatprep.subr.mxu0 0.0
    %3720 = vmatpush1.msra.mxu0 %v1723
    %3721 = vmatprep.mubr.f32.mxu0 %v698
    %3722 = vmatmul.mubr.f32.gmra.mrb[0].mxu0 %v695
    %v3723 = vpop.f32.mrb[0].mxu0
    %v3724 = vadd.f32 %v3649, %v3723
    %v3725 = vpop.f32.mrb[0].mxu0
    %3726 = vmatprep.mubr.f32.mxu0 %v713
    %3727 = vmatmul.mubr.f32.gmra.mrb[0].mxu0 %v710
    %v3728 = vpop.f32.mrb[0].mxu0
    %v3729 = vadd.f32 %v3654, %v3728
    %v3730 = vpop.f32.mrb[0].mxu0
    %3731 = vdwg.mxu0
    %3732 = vmatprep.subr.mxu0 0.0
    %3733 = vmatpush1.msra.mxu0 %v1726
    %3734 = vmatprep.subr.mxu0 0.0
    %3735 = vmatpush1.msra.mxu0 %v1729
    %3736 = vmatprep.subr.mxu0 0.0
    %3737 = vmatpush1.msra.mxu0 %v1732
    %3738 = vmatprep.subr.mxu0 0.0
    %3739 = vmatpush1.msra.mxu0 %v1735
    %3740 = vmatprep.subr.mxu0 0.0
    %3741 = vmatpush1.msra.mxu0 %v1738
    %3742 = vmatprep.subr.mxu0 0.0
    %3743 = vmatpush1.msra.mxu0 %v1741
    %3744 = vmatprep.subr.mxu0 0.0
    %3745 = vmatpush1.msra.mxu0 %v1744
    %3746 = vmatprep.subr.mxu0 0.0
    %3747 = vmatpush1.msra.mxu0 %v1747
    %3748 = vmatprep.subr.mxu0 0.0
    %3749 = vmatpush1.msra.mxu0 %v1750
    %3750 = vmatprep.subr.mxu0 0.0
    %3751 = vmatpush1.msra.mxu0 %v1753
    %3752 = vmatprep.subr.mxu0 0.0
    %3753 = vmatpush1.msra.mxu0 %v1756
    %3754 = vmatprep.subr.mxu0 0.0
    %3755 = vmatpush1.msra.mxu0 %v1759
    %3756 = vmatprep.subr.mxu0 0.0
    %3757 = vmatpush1.msra.mxu0 %v1762
    %3758 = vmatprep.subr.mxu0 0.0
    %3759 = vmatpush1.msra.mxu0 %v1765
    %3760 = vmatprep.subr.mxu0 0.0
    %3761 = vmatpush1.msra.mxu0 %v1768
    %3762 = vmatprep.subr.mxu0 0.0
    %3763 = vmatpush1.msra.mxu0 %v1771
    %3764 = vmatprep.subr.mxu0 0.0
    %3765 = vmatpush1.msra.mxu0 %v1774
    %3766 = vmatprep.subr.mxu0 0.0
    %3767 = vmatpush1.msra.mxu0 %v1777
    %3768 = vmatprep.subr.mxu0 0.0
    %3769 = vmatpush1.msra.mxu0 %v1780
    %3770 = vmatprep.subr.mxu0 0.0
    %3771 = vmatpush1.msra.mxu0 %v1783
    %3772 = vmatprep.subr.mxu0 0.0
    %3773 = vmatpush1.msra.mxu0 %v1786
    %3774 = vmatprep.subr.mxu0 0.0
    %3775 = vmatpush1.msra.mxu0 %v1789
    %3776 = vmatprep.subr.mxu0 0.0
    %3777 = vmatpush1.msra.mxu0 %v1792
    %3778 = vmatprep.subr.mxu0 0.0
    %3779 = vmatpush1.msra.mxu0 %v1795
    %3780 = vmatprep.subr.mxu0 0.0
    %3781 = vmatpush1.msra.mxu0 %v1798
    %3782 = vmatprep.subr.mxu0 0.0
    %3783 = vmatpush1.msra.mxu0 %v1801
    %3784 = vmatprep.subr.mxu0 0.0
    %3785 = vmatpush1.msra.mxu0 %v1804
    %3786 = vmatprep.subr.mxu0 0.0
    %3787 = vmatpush1.msra.mxu0 %v1807
    %3788 = vmatprep.subr.mxu0 0.0
    %3789 = vmatpush1.msra.mxu0 %v1810
    %3790 = vmatprep.subr.mxu0 0.0
    %3791 = vmatpush1.msra.mxu0 %v1813
    %3792 = vmatprep.subr.mxu0 0.0
    %3793 = vmatpush1.msra.mxu0 %v1816
    %3794 = vmatprep.subr.mxu0 0.0
    %3795 = vmatpush1.msra.mxu0 %v1819
    %3796 = vmatprep.mubr.f32.mxu0 %v729
    %3797 = vmatmul.mubr.f32.gmra.mrb[0].mxu0 %v726
    %v3798 = vpop.f32.mrb[0].mxu0
    %v3799 = vadd.f32 %v3724, %v3798
    %v3800 = vpop.f32.mrb[0].mxu0
    %3801 = vmatprep.mubr.f32.mxu0 %v744
    %3802 = vmatmul.mubr.f32.gmra.mrb[0].mxu0 %v741
    %v3803 = vpop.f32.mrb[0].mxu0
    %v3804 = vadd.f32 %v3729, %v3803
    %v3805 = vpop.f32.mrb[0].mxu0
    %3806 = vdwg.mxu0
    %3807 = vmatprep.subr.mxu0 0.0
    %3808 = vmatpush1.msra.mxu0 %v1822
    %3809 = vmatprep.subr.mxu0 0.0
    %3810 = vmatpush1.msra.mxu0 %v1825
    %3811 = vmatprep.subr.mxu0 0.0
    %3812 = vmatpush1.msra.mxu0 %v1828
    %3813 = vmatprep.subr.mxu0 0.0
    %3814 = vmatpush1.msra.mxu0 %v1831
    %3815 = vmatprep.subr.mxu0 0.0
    %3816 = vmatpush1.msra.mxu0 %v1834
    %3817 = vmatprep.subr.mxu0 0.0
    %3818 = vmatpush1.msra.mxu0 %v1837
    %3819 = vmatprep.subr.mxu0 0.0
    %3820 = vmatpush1.msra.mxu0 %v1840
    %3821 = vmatprep.subr.mxu0 0.0
    %3822 = vmatpush1.msra.mxu0 %v1843
    %3823 = vmatprep.subr.mxu0 0.0
    %3824 = vmatpush1.msra.mxu0 %v1846
    %3825 = vmatprep.subr.mxu0 0.0
    %3826 = vmatpush1.msra.mxu0 %v1849
    %3827 = vmatprep.subr.mxu0 0.0
    %3828 = vmatpush1.msra.mxu0 %v1852
    %3829 = vmatprep.subr.mxu0 0.0
    %3830 = vmatpush1.msra.mxu0 %v1855
    %3831 = vmatprep.subr.mxu0 0.0
    %3832 = vmatpush1.msra.mxu0 %v1858
    %3833 = vmatprep.subr.mxu0 0.0
    %3834 = vmatpush1.msra.mxu0 %v1861
    %3835 = vmatprep.subr.mxu0 0.0
    %3836 = vmatpush1.msra.mxu0 %v1864
    %3837 = vmatprep.subr.mxu0 0.0
    %3838 = vmatpush1.msra.mxu0 %v1867
    %3839 = vmatprep.subr.mxu0 0.0
    %3840 = vmatpush1.msra.mxu0 %v1870
    %3841 = vmatprep.subr.mxu0 0.0
    %3842 = vmatpush1.msra.mxu0 %v1873
    %3843 = vmatprep.subr.mxu0 0.0
    %3844 = vmatpush1.msra.mxu0 %v1876
    %3845 = vmatprep.subr.mxu0 0.0
    %3846 = vmatpush1.msra.mxu0 %v1879
    %3847 = vmatprep.subr.mxu0 0.0
    %3848 = vmatpush1.msra.mxu0 %v1882
    %3849 = vmatprep.subr.mxu0 0.0
    %3850 = vmatpush1.msra.mxu0 %v1885
    %3851 = vmatprep.subr.mxu0 0.0
    %3852 = vmatpush1.msra.mxu0 %v1888
    %3853 = vmatprep.subr.mxu0 0.0
    %3854 = vmatpush1.msra.mxu0 %v1891
    %3855 = vmatprep.subr.mxu0 0.0
    %3856 = vmatpush1.msra.mxu0 %v1894
    %3857 = vmatprep.subr.mxu0 0.0
    %3858 = vmatpush1.msra.mxu0 %v1897
    %3859 = vmatprep.subr.mxu0 0.0
    %3860 = vmatpush1.msra.mxu0 %v1900
    %3861 = vmatprep.subr.mxu0 0.0
    %3862 = vmatpush1.msra.mxu0 %v1903
    %3863 = vmatprep.subr.mxu0 0.0
    %3864 = vmatpush1.msra.mxu0 %v1906
    %3865 = vmatprep.subr.mxu0 0.0
    %3866 = vmatpush1.msra.mxu0 %v1909
    %3867 = vmatprep.subr.mxu0 0.0
    %3868 = vmatpush1.msra.mxu0 %v1912
    %3869 = vmatprep.subr.mxu0 0.0
    %3870 = vmatpush1.msra.mxu0 %v1915
    %3871 = vmatprep.mubr.f32.mxu0 %v735
    %3872 = vmatmul.mubr.f32.gmra.mrb[0].mxu0 %v732
    %v3873 = vpop.f32.mrb[0].mxu0
    %v3874 = vadd.f32 %v3799, %v3873
    %v3875 = vpop.f32.mrb[0].mxu0
    %3876 = vmatprep.mubr.f32.mxu0 %v750
    %3877 = vmatmul.mubr.f32.gmra.mrb[0].mxu0 %v747
    %v3878 = vpop.f32.mrb[0].mxu0
    %v3879 = vadd.f32 %v3804, %v3878
    %v3880 = vpop.f32.mrb[0].mxu0
    %3881 = vdwg.mxu0
    %3882 = vmatprep.subr.mxu0 0.0
    %3883 = vmatpush1.msra.mxu0 %v1918
    %3884 = vmatprep.subr.mxu0 0.0
    %3885 = vmatpush1.msra.mxu0 %v1921
    %3886 = vmatprep.subr.mxu0 0.0
    %3887 = vmatpush1.msra.mxu0 %v1924
    %3888 = vmatprep.subr.mxu0 0.0
    %3889 = vmatpush1.msra.mxu0 %v1927
    %3890 = vmatprep.subr.mxu0 0.0
    %3891 = vmatpush1.msra.mxu0 %v1930
    %3892 = vmatprep.subr.mxu0 0.0
    %3893 = vmatpush1.msra.mxu0 %v1933
    %3894 = vmatprep.subr.mxu0 0.0
    %3895 = vmatpush1.msra.mxu0 %v1936
    %3896 = vmatprep.subr.mxu0 0.0
    %3897 = vmatpush1.msra.mxu0 %v1939
    %3898 = vmatprep.subr.mxu0 0.0
    %3899 = vmatpush1.msra.mxu0 %v1942
    %3900 = vmatprep.subr.mxu0 0.0
    %3901 = vmatpush1.msra.mxu0 %v1945
    %3902 = vmatprep.subr.mxu0 0.0
    %3903 = vmatpush1.msra.mxu0 %v1948
    %3904 = vmatprep.subr.mxu0 0.0
    %3905 = vmatpush1.msra.mxu0 %v1951
    %3906 = vmatprep.subr.mxu0 0.0
    %3907 = vmatpush1.msra.mxu0 %v1954
    %3908 = vmatprep.subr.mxu0 0.0
    %3909 = vmatpush1.msra.mxu0 %v1957
    %3910 = vmatprep.subr.mxu0 0.0
    %3911 = vmatpush1.msra.mxu0 %v1960
    %3912 = vmatprep.subr.mxu0 0.0
    %3913 = vmatpush1.msra.mxu0 %v1963
    %3914 = vmatprep.subr.mxu0 0.0
    %3915 = vmatpush1.msra.mxu0 0.0
    %3916 = vmatprep.subr.mxu0 0.0
    %3917 = vmatpush1.msra.mxu0 0.0
    %3918 = vmatprep.subr.mxu0 0.0
    %3919 = vmatpush1.msra.mxu0 0.0
    %3920 = vmatprep.subr.mxu0 0.0
    %3921 = vmatpush1.msra.mxu0 0.0
    %3922 = vmatprep.subr.mxu0 0.0
    %3923 = vmatpush1.msra.mxu0 0.0
    %3924 = vmatprep.subr.mxu0 0.0
    %3925 = vmatpush1.msra.mxu0 0.0
    %3926 = vmatprep.subr.mxu0 0.0
    %3927 = vmatpush1.msra.mxu0 0.0
    %3928 = vmatprep.subr.mxu0 0.0
    %3929 = vmatpush1.msra.mxu0 0.0
    %3930 = vmatprep.subr.mxu0 0.0
    %3931 = vmatpush1.msra.mxu0 0.0
    %3932 = vmatprep.subr.mxu0 0.0
    %3933 = vmatpush1.msra.mxu0 0.0
    %3934 = vmatprep.subr.mxu0 0.0
    %3935 = vmatpush1.msra.mxu0 0.0
    %3936 = vmatprep.subr.mxu0 0.0
    %3937 = vmatpush1.msra.mxu0 0.0
    %3938 = vmatprep.subr.mxu0 0.0
    %3939 = vmatpush1.msra.mxu0 0.0
    %3940 = vmatprep.subr.mxu0 0.0
    %3941 = vmatpush1.msra.mxu0 0.0
    %3942 = vmatprep.subr.mxu0 0.0
    %3943 = vmatpush1.msra.mxu0 0.0
    %3944 = vmatprep.subr.mxu0 0.0
    %3945 = vmatpush1.msra.mxu0 0.0
    %3946 = vmatprep.mubr.f32.mxu0 0.0
    %3947 = vmatmul.mubr.f32.gmra.mrb[0].mxu0 %v738
    %v3948 = vpop.f32.mrb[0].mxu0
    %v3949 = vadd.f32 %v3874, %v3948
    %v3950 = vpop.f32.mrb[0].mxu0
    %3951 = vmatprep.mubr.f32.mxu0 0.0
    %3952 = vmatmul.mubr.f32.gmra.mrb[0].mxu0 %v753
    %v3953 = vpop.f32.mrb[0].mxu0
    %v3954 = vadd.f32 %v3879, %v3953
    %v3955 = vpop.f32.mrb[0].mxu0
    %3956 = vdwg.mxu0
    %v3957 = vmax.f32 %v2972, 0.0
    %v3958 = vmax.f32 %v2974, 0.0
    %v3959 = vmax.f32 %v3949, 0.0
    %v3960 = vmax.f32 %v2978, 0.0
    %v3961 = vmax.f32 %v2980, 0.0
    %v3962 = vmax.f32 %v3954, 0.0
    %v3969 = vrot.slane %v3957, 7
    %v3970 = vrot.slane %v3958, 7
    %v3971 = vrot.slane %v3959, 7
    %v3972 = vrot.slane %v3960, 7
    %v3973 = vrot.slane %v3961, 7
    %v3974 = vrot.slane %v3962, 7
    %vm3981 = vcmask 1040384
    %v3982 = vsel %vm3981, 0.0, %v3969
    %v3983 = vsel %vm3981, 0.0, %v3970
    %v3984 = vsel %vm3981, 0.0, %v3971
    %v3985 = vsel %vm3981, 0.0, %v3972
    %v3986 = vsel %vm3981, 0.0, %v3973
    %v3987 = vsel %vm3981, 0.0, %v3974
    %v3988 = vsel %vm3981, %v3969, 0.0
    %v3989 = vsel %vm3981, %v3970, 0.0
    %v3990 = vsel %vm3981, %v3971, 0.0
    %v3991 = vsel %vm3981, %v3972, 0.0
    %v3992 = vsel %vm3981, %v3973, 0.0
    %v3993 = vsel %vm3981, %v3974, 0.0
    %v4006 = vrot.slane %v3982, 1
    %v4007 = vrot.slane %v3988, 1
    %v4008 = vsel %vm35, %v4006, %v4007
    %v4009 = vrot.slane %v3983, 1
    %v4010 = vrot.slane %v3989, 1
    %v4011 = vsel %vm35, %v4009, %v4010
    %v4012 = vrot.slane %v3984, 1
    %v4013 = vrot.slane %v3990, 1
    %v4014 = vsel %vm35, %v4012, %v4013
    %v4015 = vrot.slane %v3985, 1
    %v4016 = vrot.slane %v3991, 1
    %v4017 = vsel %vm35, %v4015, %v4016
    %v4018 = vrot.slane %v3986, 1
    %v4019 = vrot.slane %v3992, 1
    %v4020 = vsel %vm35, %v4018, %v4019
    %v4021 = vrot.slane %v3987, 1
    %v4022 = vrot.slane %v3993, 1
    %v4023 = vsel %vm35, %v4021, %v4022
    %4024 = vrot.lane.b32.xlu0 %v4008, 64
    %v4025 = vpop.permute.xlu0 %4024
    %4026 = vrot.lane.b32.xlu0 %v4011, 64
    %v4027 = vpop.permute.xlu0 %4026
    %4028 = vrot.lane.b32.xlu0 %v4014, 64
    %v4029 = vpop.permute.xlu0 %4028
    %4030 = vrot.lane.b32.xlu0 %v4017, 64
    %v4031 = vpop.permute.xlu0 %4030
    %4032 = vrot.lane.b32.xlu0 %v4020, 64
    %v4033 = vpop.permute.xlu0 %4032
    %4034 = vrot.lane.b32.xlu0 %v4023, 64
    %v4035 = vpop.permute.xlu0 %4034
    %v4036 = vsel %vm112, %v4025, %v4027
    %v4037 = vsel %vm112, %v4027, %v4029
    %v4038 = vsel %vm112, %v4031, %v4033
    %v4039 = vsel %vm112, %v4033, %v4035
    %v4046 = vrot.slane %v3982, 2
    %v4047 = vrot.slane %v3988, 2
    %v4048 = vsel %vm48, %v4046, %v4047
    %v4049 = vrot.slane %v3983, 2
    %v4050 = vrot.slane %v3989, 2
    %v4051 = vsel %vm48, %v4049, %v4050
    %v4052 = vrot.slane %v3984, 2
    %v4053 = vrot.slane %v3990, 2
    %v4054 = vsel %vm48, %v4052, %v4053
    %v4055 = vrot.slane %v3985, 2
    %v4056 = vrot.slane %v3991, 2
    %v4057 = vsel %vm48, %v4055, %v4056
    %v4058 = vrot.slane %v3986, 2
    %v4059 = vrot.slane %v3992, 2
    %v4060 = vsel %vm48, %v4058, %v4059
    %v4061 = vrot.slane %v3987, 2
    %v4062 = vrot.slane %v3993, 2
    %v4063 = vsel %vm48, %v4061, %v4062
    %v4068 = vsel %vm112, %v3984, %v4025
    %v4069 = vsel %vm112, %v3987, %v4031
    %v4070 = vld [vmem:[%s5] sm:$0xff]
    %v4071 = vld [vmem:[%s5 + $0x8] sm:$0xff]
    %v4072 = vld [vmem:[%s5 + $0x10] sm:$0xff]
    %v4073 = vld [vmem:[%s5 + $0x18] sm:$0xff]
    %v4074 = vld [vmem:[%s5 + $0x20] sm:$0xff]
    %v4075 = vld [vmem:[%s5 + $0x28] sm:$0xff]
    %v4076 = vld [vmem:[%s5 + $0x30] sm:$0xff]
    %v4077 = vld [vmem:[%s5 + $0x38] sm:$0xff]
    %v4078 = vld [vmem:[%s5 + $0x40] sm:$0xff]
    %v4079 = vld [vmem:[%s5 + $0x48] sm:$0xff]
    %v4080 = vld [vmem:[%s5 + $0x50] sm:$0xff]
    %v4081 = vld [vmem:[%s5 + $0x58] sm:$0xff]
    %v4082 = vld [vmem:[%s5 + $0x60] sm:$0xff]
    %v4083 = vld [vmem:[%s5 + $0x68] sm:$0xff]
    %v4084 = vld [vmem:[%s5 + $0x70] sm:$0xff]
    %v4085 = vld [vmem:[%s5 + $0x78] sm:$0xff]
    %v4086 = vld [vmem:[%s5 + $0x80] sm:$0xff]
    %v4087 = vld [vmem:[%s5 + $0x88] sm:$0xff]
    %v4088 = vld [vmem:[%s5 + $0x90] sm:$0xff]
    %v4089 = vld [vmem:[%s5 + $0x98] sm:$0xff]
    %v4090 = vld [vmem:[%s5 + $0xa0] sm:$0xff]
    %v4091 = vld [vmem:[%s5 + $0xa8] sm:$0xff]
    %v4092 = vld [vmem:[%s5 + $0xb0] sm:$0xff]
    %v4093 = vld [vmem:[%s5 + $0xb8] sm:$0xff]
    %v4094 = vld [vmem:[%s5 + $0xc0] sm:$0xff]
    %v4095 = vld [vmem:[%s5 + $0xc8] sm:$0xff]
    %v4096 = vld [vmem:[%s5 + $0xd0] sm:$0xff]
    %v4097 = vld [vmem:[%s5 + $0xd8] sm:$0xff]
    %v4098 = vld [vmem:[%s5 + $0xe0] sm:$0xff]
    %v4099 = vld [vmem:[%s5 + $0xe8] sm:$0xff]
    %v4100 = vld [vmem:[%s5 + $0xf0] sm:$0xff]
    %v4101 = vld [vmem:[%s5 + $0xf8] sm:$0xff]
    %v4102 = vld [vmem:[%s5 + $0x100] sm:$0xff]
    %v4103 = vld [vmem:[%s5 + $0x108] sm:$0xff]
    %v4104 = vld [vmem:[%s5 + $0x110] sm:$0xff]
    %v4105 = vld [vmem:[%s5 + $0x118] sm:$0xff]
    %v4106 = vld [vmem:[%s5 + $0x120] sm:$0xff]
    %v4107 = vld [vmem:[%s5 + $0x128] sm:$0xff]
    %v4108 = vld [vmem:[%s5 + $0x130] sm:$0xff]
    %v4109 = vld [vmem:[%s5 + $0x138] sm:$0xff]
    %v4110 = vld [vmem:[%s5 + $0x140] sm:$0xff]
    %v4111 = vld [vmem:[%s5 + $0x148] sm:$0xff]
    %v4112 = vld [vmem:[%s5 + $0x150] sm:$0xff]
    %v4113 = vld [vmem:[%s5 + $0x158] sm:$0xff]
    %v4114 = vld [vmem:[%s5 + $0x160] sm:$0xff]
    %v4115 = vld [vmem:[%s5 + $0x168] sm:$0xff]
    %v4116 = vld [vmem:[%s5 + $0x170] sm:$0xff]
    %v4117 = vld [vmem:[%s5 + $0x178] sm:$0xff]
    %v4118 = vld [vmem:[%s5 + $0x180] sm:$0xff]
    %v4119 = vld [vmem:[%s5 + $0x188] sm:$0xff]
    %v4120 = vld [vmem:[%s5 + $0x190] sm:$0xff]
    %v4121 = vld [vmem:[%s5 + $0x198] sm:$0xff]
    %v4122 = vld [vmem:[%s5 + $0x1a0] sm:$0xff]
    %v4123 = vld [vmem:[%s5 + $0x1a8] sm:$0xff]
    %v4124 = vld [vmem:[%s5 + $0x1b0] sm:$0xff]
    %v4125 = vld [vmem:[%s5 + $0x1b8] sm:$0xff]
    %v4126 = vld [vmem:[%s5 + $0x1c0] sm:$0xff]
    %v4127 = vld [vmem:[%s5 + $0x1c8] sm:$0xff]
    %v4128 = vld [vmem:[%s5 + $0x1d0] sm:$0xff]
    %v4129 = vld [vmem:[%s5 + $0x1d8] sm:$0xff]
    %v4130 = vld [vmem:[%s5 + $0x1e0] sm:$0xff]
    %v4131 = vld [vmem:[%s5 + $0x1e8] sm:$0xff]
    %v4132 = vld [vmem:[%s5 + $0x1f0] sm:$0xff]
    %v4133 = vld [vmem:[%s5 + $0x1f8] sm:$0xff]
    %v4134 = vld [vmem:[%s5 + $0x200] sm:$0xff]
    %v4135 = vld [vmem:[%s5 + $0x208] sm:$0xff]
    %v4136 = vld [vmem:[%s5 + $0x210] sm:$0xff]
    %v4137 = vld [vmem:[%s5 + $0x218] sm:$0xff]
    %v4138 = vld [vmem:[%s5 + $0x220] sm:$0xff]
    %v4139 = vld [vmem:[%s5 + $0x228] sm:$0xff]
    %v4140 = vld [vmem:[%s5 + $0x230] sm:$0xff]
    %v4141 = vld [vmem:[%s5 + $0x238] sm:$0xff]
    %v4142 = vld [vmem:[%s5 + $0x240] sm:$0xff]
    %v4143 = vld [vmem:[%s5 + $0x248] sm:$0xff]
    %v4144 = vld [vmem:[%s5 + $0x250] sm:$0xff]
    %v4145 = vld [vmem:[%s5 + $0x258] sm:$0xff]
    %v4146 = vld [vmem:[%s5 + $0x260] sm:$0xff]
    %v4147 = vld [vmem:[%s5 + $0x268] sm:$0xff]
    %v4148 = vld [vmem:[%s5 + $0x270] sm:$0xff]
    %v4149 = vld [vmem:[%s5 + $0x278] sm:$0xff]
    %v4150 = vld [vmem:[%s5 + $0x280] sm:$0xff]
    %v4151 = vld [vmem:[%s5 + $0x288] sm:$0xff]
    %v4152 = vld [vmem:[%s5 + $0x290] sm:$0xff]
    %v4153 = vld [vmem:[%s5 + $0x298] sm:$0xff]
    %v4154 = vld [vmem:[%s5 + $0x2a0] sm:$0xff]
    %v4155 = vld [vmem:[%s5 + $0x2a8] sm:$0xff]
    %v4156 = vld [vmem:[%s5 + $0x2b0] sm:$0xff]
    %v4157 = vld [vmem:[%s5 + $0x2b8] sm:$0xff]
    %v4158 = vld [vmem:[%s5 + $0x2c0] sm:$0xff]
    %v4159 = vld [vmem:[%s5 + $0x2c8] sm:$0xff]
    %v4160 = vld [vmem:[%s5 + $0x2d0] sm:$0xff]
    %v4161 = vld [vmem:[%s5 + $0x2d8] sm:$0xff]
    %v4162 = vld [vmem:[%s5 + $0x2e0] sm:$0xff]
    %v4163 = vld [vmem:[%s5 + $0x2e8] sm:$0xff]
    %v4164 = vld [vmem:[%s5 + $0x2f0] sm:$0xff]
    %v4165 = vld [vmem:[%s5 + $0x2f8] sm:$0xff]
    %v4166 = vld [vmem:[%s5 + $0x300] sm:$0xff]
    %v4167 = vld [vmem:[%s5 + $0x308] sm:$0xff]
    %v4168 = vld [vmem:[%s5 + $0x310] sm:$0xff]
    %v4169 = vld [vmem:[%s5 + $0x318] sm:$0xff]
    %v4170 = vld [vmem:[%s5 + $0x320] sm:$0xff]
    %v4171 = vld [vmem:[%s5 + $0x328] sm:$0xff]
    %v4172 = vld [vmem:[%s5 + $0x330] sm:$0xff]
    %v4173 = vld [vmem:[%s5 + $0x338] sm:$0xff]
    %v4174 = vld [vmem:[%s5 + $0x340] sm:$0xff]
    %v4175 = vld [vmem:[%s5 + $0x348] sm:$0xff]
    %v4176 = vld [vmem:[%s5 + $0x350] sm:$0xff]
    %v4177 = vld [vmem:[%s5 + $0x358] sm:$0xff]
    %v4178 = vld [vmem:[%s5 + $0x360] sm:$0xff]
    %v4179 = vld [vmem:[%s5 + $0x368] sm:$0xff]
    %v4180 = vld [vmem:[%s5 + $0x370] sm:$0xff]
    %v4181 = vld [vmem:[%s5 + $0x378] sm:$0xff]
    %v4182 = vld [vmem:[%s5 + $0x380] sm:$0xff]
    %v4183 = vld [vmem:[%s5 + $0x388] sm:$0xff]
    %v4184 = vld [vmem:[%s5 + $0x390] sm:$0xff]
    %v4185 = vld [vmem:[%s5 + $0x398] sm:$0xff]
    %v4186 = vld [vmem:[%s5 + $0x3a0] sm:$0xff]
    %v4187 = vld [vmem:[%s5 + $0x3a8] sm:$0xff]
    %v4188 = vld [vmem:[%s5 + $0x3b0] sm:$0xff]
    %v4189 = vld [vmem:[%s5 + $0x3b8] sm:$0xff]
    %v4190 = vld [vmem:[%s6] sm:$0x1]
    %v4192 = vlaneseq
    %v4193 = vshrl.u32 %v4192, 7
    %v4194 = vsub.s32 0, %v4193
    %v4195 = vrot.slane %v4190, %v4194
    %v4197 = vsel %vm112, %v4054, 0
    %v4199 = vsel %vm112, %v4063, 0
    %4201 = vmatprep.subr.mxu0 0.0
    %4202 = vmatpush1.msra.mxu0 %v4070
    %4203 = vmatprep.subr.mxu0 0.0
    %4204 = vmatpush1.msra.mxu0 %v4071
    %4205 = vmatprep.subr.mxu0 0.0
    %4206 = vmatpush1.msra.mxu0 %v4072
    %4207 = vmatprep.subr.mxu0 0.0
    %4208 = vmatpush1.msra.mxu0 %v4073
    %4209 = vmatprep.subr.mxu0 0.0
    %4210 = vmatpush1.msra.mxu0 %v4074
    %4211 = vmatprep.subr.mxu0 0.0
    %4212 = vmatpush1.msra.mxu0 %v4075
    %4213 = vmatprep.subr.mxu0 0.0
    %4214 = vmatpush1.msra.mxu0 %v4076
    %4215 = vmatprep.subr.mxu0 0.0
    %4216 = vmatpush1.msra.mxu0 %v4077
    %4217 = vmatprep.subr.mxu0 0.0
    %4218 = vmatpush1.msra.mxu0 %v4078
    %4219 = vmatprep.subr.mxu0 0.0
    %4220 = vmatpush1.msra.mxu0 %v4079
    %4221 = vmatprep.subr.mxu0 0.0
    %4222 = vmatpush1.msra.mxu0 %v4080
    %4223 = vmatprep.subr.mxu0 0.0
    %4224 = vmatpush1.msra.mxu0 %v4081
    %4225 = vmatprep.subr.mxu0 0.0
    %4226 = vmatpush1.msra.mxu0 %v4082
    %4227 = vmatprep.subr.mxu0 0.0
    %4228 = vmatpush1.msra.mxu0 %v4083
    %4229 = vmatprep.subr.mxu0 0.0
    %4230 = vmatpush1.msra.mxu0 %v4084
    %4231 = vmatprep.subr.mxu0 0.0
    %4232 = vmatpush1.msra.mxu0 %v4085
    %4233 = vmatprep.subr.mxu0 0.0
    %4234 = vmatpush1.msra.mxu0 %v4086
    %4235 = vmatprep.subr.mxu0 0.0
    %4236 = vmatpush1.msra.mxu0 %v4087
    %4237 = vmatprep.subr.mxu0 0.0
    %4238 = vmatpush1.msra.mxu0 %v4088
    %4239 = vmatprep.subr.mxu0 0.0
    %4240 = vmatpush1.msra.mxu0 %v4089
    %4241 = vmatprep.subr.mxu0 0.0
    %4242 = vmatpush1.msra.mxu0 %v4090
    %4243 = vmatprep.subr.mxu0 0.0
    %4244 = vmatpush1.msra.mxu0 %v4091
    %4245 = vmatprep.subr.mxu0 0.0
    %4246 = vmatpush1.msra.mxu0 %v4092
    %4247 = vmatprep.subr.mxu0 0.0
    %4248 = vmatpush1.msra.mxu0 %v4093
    %4249 = vmatprep.subr.mxu0 0.0
    %4250 = vmatpush1.msra.mxu0 %v4094
    %4251 = vmatprep.subr.mxu0 0.0
    %4252 = vmatpush1.msra.mxu0 %v4095
    %4253 = vmatprep.subr.mxu0 0.0
    %4254 = vmatpush1.msra.mxu0 %v4096
    %4255 = vmatprep.subr.mxu0 0.0
    %4256 = vmatpush1.msra.mxu0 %v4097
    %4257 = vmatprep.subr.mxu0 0.0
    %4258 = vmatpush1.msra.mxu0 %v4098
    %4259 = vmatprep.subr.mxu0 0.0
    %4260 = vmatpush1.msra.mxu0 %v4099
    %4261 = vmatprep.subr.mxu0 0.0
    %4262 = vmatpush1.msra.mxu0 %v4100
    %4263 = vmatprep.subr.mxu0 0.0
    %4264 = vmatpush1.msra.mxu0 %v4101
    %4265 = vmatprep.mubr.f32.mxu0 %v3983
    %4266 = vmatmul.mubr.f32.gmra.mrb[0].mxu0 %v3982
    %v4267 = vpop.f32.mrb[0].mxu0
    %v4268 = vadd.f32 %v4195, %v4267
    %v4269 = vpop.f32.mrb[0].mxu0
    %4270 = vmatprep.mubr.f32.mxu0 %v3986
    %4271 = vmatmul.mubr.f32.gmra.mrb[0].mxu0 %v3985
    %v4272 = vpop.f32.mrb[0].mxu0
    %v4273 = vadd.f32 %v4195, %v4272
    %v4274 = vpop.f32.mrb[0].mxu0
    %4275 = vdwg.mxu0
    %4276 = vmatprep.subr.mxu0 0.0
    %4277 = vmatpush1.msra.mxu0 %v4102
    %4278 = vmatprep.subr.mxu0 0.0
    %4279 = vmatpush1.msra.mxu0 %v4103
    %4280 = vmatprep.subr.mxu0 0.0
    %4281 = vmatpush1.msra.mxu0 %v4104
    %4282 = vmatprep.subr.mxu0 0.0
    %4283 = vmatpush1.msra.mxu0 %v4105
    %4284 = vmatprep.subr.mxu0 0.0
    %4285 = vmatpush1.msra.mxu0 %v4106
    %4286 = vmatprep.subr.mxu0 0.0
    %4287 = vmatpush1.msra.mxu0 %v4107
    %4288 = vmatprep.subr.mxu0 0.0
    %4289 = vmatpush1.msra.mxu0 %v4108
    %4290 = vmatprep.subr.mxu0 0.0
    %4291 = vmatpush1.msra.mxu0 %v4109
    %4292 = vmatprep.subr.mxu0 0.0
    %4293 = vmatpush1.msra.mxu0 %v4110
    %4294 = vmatprep.subr.mxu0 0.0
    %4295 = vmatpush1.msra.mxu0 %v4111
    %4296 = vmatprep.subr.mxu0 0.0
    %4297 = vmatpush1.msra.mxu0 %v4112
    %4298 = vmatprep.subr.mxu0 0.0
    %4299 = vmatpush1.msra.mxu0 %v4113
    %4300 = vmatprep.subr.mxu0 0.0
    %4301 = vmatpush1.msra.mxu0 %v4114
    %4302 = vmatprep.subr.mxu0 0.0
    %4303 = vmatpush1.msra.mxu0 %v4115
    %4304 = vmatprep.subr.mxu0 0.0
    %4305 = vmatpush1.msra.mxu0 %v4116
    %4306 = vmatprep.subr.mxu0 0.0
    %4307 = vmatpush1.msra.mxu0 %v4117
    %4308 = vmatprep.subr.mxu0 0.0
    %4309 = vmatpush1.msra.mxu0 %v4118
    %4310 = vmatprep.subr.mxu0 0.0
    %4311 = vmatpush1.msra.mxu0 %v4119
    %4312 = vmatprep.subr.mxu0 0.0
    %4313 = vmatpush1.msra.mxu0 %v4120
    %4314 = vmatprep.subr.mxu0 0.0
    %4315 = vmatpush1.msra.mxu0 %v4121
    %4316 = vmatprep.subr.mxu0 0.0
    %4317 = vmatpush1.msra.mxu0 %v4122
    %4318 = vmatprep.subr.mxu0 0.0
    %4319 = vmatpush1.msra.mxu0 %v4123
    %4320 = vmatprep.subr.mxu0 0.0
    %4321 = vmatpush1.msra.mxu0 %v4124
    %4322 = vmatprep.subr.mxu0 0.0
    %4323 = vmatpush1.msra.mxu0 %v4125
    %4324 = vmatprep.subr.mxu0 0.0
    %4325 = vmatpush1.msra.mxu0 %v4126
    %4326 = vmatprep.subr.mxu0 0.0
    %4327 = vmatpush1.msra.mxu0 %v4127
    %4328 = vmatprep.subr.mxu0 0.0
    %4329 = vmatpush1.msra.mxu0 %v4128
    %4330 = vmatprep.subr.mxu0 0.0
    %4331 = vmatpush1.msra.mxu0 %v4129
    %4332 = vmatprep.subr.mxu0 0.0
    %4333 = vmatpush1.msra.mxu0 %v4130
    %4334 = vmatprep.subr.mxu0 0.0
    %4335 = vmatpush1.msra.mxu0 %v4131
    %4336 = vmatprep.subr.mxu0 0.0
    %4337 = vmatpush1.msra.mxu0 %v4132
    %4338 = vmatprep.subr.mxu0 0.0
    %4339 = vmatpush1.msra.mxu0 %v4133
    %4340 = vmatprep.mubr.f32.mxu0 %v4036
    %4341 = vmatmul.mubr.f32.gmra.mrb[0].mxu0 %v4068
    %v4342 = vpop.f32.mrb[0].mxu0
    %v4343 = vadd.f32 %v4268, %v4342
    %v4344 = vpop.f32.mrb[0].mxu0
    %4345 = vmatprep.mubr.f32.mxu0 %v4038
    %4346 = vmatmul.mubr.f32.gmra.mrb[0].mxu0 %v4069
    %v4347 = vpop.f32.mrb[0].mxu0
    %v4348 = vadd.f32 %v4273, %v4347
    %v4349 = vpop.f32.mrb[0].mxu0
    %4350 = vdwg.mxu0
    %4351 = vmatprep.subr.mxu0 0.0
    %4352 = vmatpush1.msra.mxu0 %v4134
    %4353 = vmatprep.subr.mxu0 0.0
    %4354 = vmatpush1.msra.mxu0 %v4135
    %4355 = vmatprep.subr.mxu0 0.0
    %4356 = vmatpush1.msra.mxu0 %v4136
    %4357 = vmatprep.subr.mxu0 0.0
    %4358 = vmatpush1.msra.mxu0 %v4137
    %4359 = vmatprep.subr.mxu0 0.0
    %4360 = vmatpush1.msra.mxu0 %v4138
    %4361 = vmatprep.subr.mxu0 0.0
    %4362 = vmatpush1.msra.mxu0 %v4139
    %4363 = vmatprep.subr.mxu0 0.0
    %4364 = vmatpush1.msra.mxu0 %v4140
    %4365 = vmatprep.subr.mxu0 0.0
    %4366 = vmatpush1.msra.mxu0 %v4141
    %4367 = vmatprep.subr.mxu0 0.0
    %4368 = vmatpush1.msra.mxu0 %v4142
    %4369 = vmatprep.subr.mxu0 0.0
    %4370 = vmatpush1.msra.mxu0 %v4143
    %4371 = vmatprep.subr.mxu0 0.0
    %4372 = vmatpush1.msra.mxu0 %v4144
    %4373 = vmatprep.subr.mxu0 0.0
    %4374 = vmatpush1.msra.mxu0 %v4145
    %4375 = vmatprep.subr.mxu0 0.0
    %4376 = vmatpush1.msra.mxu0 %v4146
    %4377 = vmatprep.subr.mxu0 0.0
    %4378 = vmatpush1.msra.mxu0 %v4147
    %4379 = vmatprep.subr.mxu0 0.0
    %4380 = vmatpush1.msra.mxu0 %v4148
    %4381 = vmatprep.subr.mxu0 0.0
    %4382 = vmatpush1.msra.mxu0 %v4149
    %4383 = vmatprep.subr.mxu0 0.0
    %4384 = vmatpush1.msra.mxu0 %v4150
    %4385 = vmatprep.subr.mxu0 0.0
    %4386 = vmatpush1.msra.mxu0 %v4151
    %4387 = vmatprep.subr.mxu0 0.0
    %4388 = vmatpush1.msra.mxu0 %v4152
    %4389 = vmatprep.subr.mxu0 0.0
    %4390 = vmatpush1.msra.mxu0 %v4153
    %4391 = vmatprep.subr.mxu0 0.0
    %4392 = vmatpush1.msra.mxu0 %v4154
    %4393 = vmatprep.subr.mxu0 0.0
    %4394 = vmatpush1.msra.mxu0 %v4155
    %4395 = vmatprep.subr.mxu0 0.0
    %4396 = vmatpush1.msra.mxu0 %v4156
    %4397 = vmatprep.subr.mxu0 0.0
    %4398 = vmatpush1.msra.mxu0 %v4157
    %4399 = vmatprep.subr.mxu0 0.0
    %4400 = vmatpush1.msra.mxu0 %v4158
    %4401 = vmatprep.subr.mxu0 0.0
    %4402 = vmatpush1.msra.mxu0 %v4159
    %4403 = vmatprep.subr.mxu0 0.0
    %4404 = vmatpush1.msra.mxu0 %v4160
    %4405 = vmatprep.subr.mxu0 0.0
    %4406 = vmatpush1.msra.mxu0 %v4161
    %4407 = vmatprep.subr.mxu0 0.0
    %4408 = vmatpush1.msra.mxu0 %v4162
    %4409 = vmatprep.subr.mxu0 0.0
    %4410 = vmatpush1.msra.mxu0 %v4163
    %4411 = vmatprep.subr.mxu0 0.0
    %4412 = vmatpush1.msra.mxu0 %v4164
    %4413 = vmatprep.subr.mxu0 0.0
    %4414 = vmatpush1.msra.mxu0 %v4165
    %4415 = vmatprep.mubr.f32.mxu0 %v4048
    %4416 = vmatmul.mubr.f32.gmra.mrb[0].mxu0 %v4037
    %v4417 = vpop.f32.mrb[0].mxu0
    %v4418 = vadd.f32 %v4343, %v4417
    %v4419 = vpop.f32.mrb[0].mxu0
    %4420 = vmatprep.mubr.f32.mxu0 %v4057
    %4421 = vmatmul.mubr.f32.gmra.mrb[0].mxu0 %v4039
    %v4422 = vpop.f32.mrb[0].mxu0
    %v4423 = vadd.f32 %v4348, %v4422
    %v4424 = vpop.f32.mrb[0].mxu0
    %4425 = vdwg.mxu0
    %4426 = vmatprep.subr.mxu0 0.0
    %4427 = vmatpush1.msra.mxu0 %v4166
    %4428 = vmatprep.subr.mxu0 0.0
    %4429 = vmatpush1.msra.mxu0 %v4167
    %4430 = vmatprep.subr.mxu0 0.0
    %4431 = vmatpush1.msra.mxu0 %v4168
    %4432 = vmatprep.subr.mxu0 0.0
    %4433 = vmatpush1.msra.mxu0 %v4169
    %4434 = vmatprep.subr.mxu0 0.0
    %4435 = vmatpush1.msra.mxu0 %v4170
    %4436 = vmatprep.subr.mxu0 0.0
    %4437 = vmatpush1.msra.mxu0 %v4171
    %4438 = vmatprep.subr.mxu0 0.0
    %4439 = vmatpush1.msra.mxu0 %v4172
    %4440 = vmatprep.subr.mxu0 0.0
    %4441 = vmatpush1.msra.mxu0 %v4173
    %4442 = vmatprep.subr.mxu0 0.0
    %4443 = vmatpush1.msra.mxu0 %v4174
    %4444 = vmatprep.subr.mxu0 0.0
    %4445 = vmatpush1.msra.mxu0 %v4175
    %4446 = vmatprep.subr.mxu0 0.0
    %4447 = vmatpush1.msra.mxu0 %v4176
    %4448 = vmatprep.subr.mxu0 0.0
    %4449 = vmatpush1.msra.mxu0 %v4177
    %4450 = vmatprep.subr.mxu0 0.0
    %4451 = vmatpush1.msra.mxu0 %v4178
    %4452 = vmatprep.subr.mxu0 0.0
    %4453 = vmatpush1.msra.mxu0 %v4179
    %4454 = vmatprep.subr.mxu0 0.0
    %4455 = vmatpush1.msra.mxu0 %v4180
    %4456 = vmatprep.subr.mxu0 0.0
    %4457 = vmatpush1.msra.mxu0 %v4181
    %4458 = vmatprep.subr.mxu0 0.0
    %4459 = vmatpush1.msra.mxu0 %v4182
    %4460 = vmatprep.subr.mxu0 0.0
    %4461 = vmatpush1.msra.mxu0 %v4183
    %4462 = vmatprep.subr.mxu0 0.0
    %4463 = vmatpush1.msra.mxu0 %v4184
    %4464 = vmatprep.subr.mxu0 0.0
    %4465 = vmatpush1.msra.mxu0 %v4185
    %4466 = vmatprep.subr.mxu0 0.0
    %4467 = vmatpush1.msra.mxu0 %v4186
    %4468 = vmatprep.subr.mxu0 0.0
    %4469 = vmatpush1.msra.mxu0 %v4187
    %4470 = vmatprep.subr.mxu0 0.0
    %4471 = vmatpush1.msra.mxu0 %v4188
    %4472 = vmatprep.subr.mxu0 0.0
    %4473 = vmatpush1.msra.mxu0 %v4189
    %4474 = vmatprep.subr.mxu0 0.0
    %4475 = vmatpush1.msra.mxu0 0.0
    %4476 = vmatprep.subr.mxu0 0.0
    %4477 = vmatpush1.msra.mxu0 0.0
    %4478 = vmatprep.subr.mxu0 0.0
    %4479 = vmatpush1.msra.mxu0 0.0
    %4480 = vmatprep.subr.mxu0 0.0
    %4481 = vmatpush1.msra.mxu0 0.0
    %4482 = vmatprep.subr.mxu0 0.0
    %4483 = vmatpush1.msra.mxu0 0.0
    %4484 = vmatprep.subr.mxu0 0.0
    %4485 = vmatpush1.msra.mxu0 0.0
    %4486 = vmatprep.subr.mxu0 0.0
    %4487 = vmatpush1.msra.mxu0 0.0
    %4488 = vmatprep.subr.mxu0 0.0
    %4489 = vmatpush1.msra.mxu0 0.0
    %4490 = vmatprep.mubr.f32.mxu0 %v4197
    %4491 = vmatmul.mubr.f32.gmra.mrb[0].mxu0 %v4051
    %v4492 = vpop.f32.mrb[0].mxu0
    %v4493 = vadd.f32 %v4418, %v4492
    %v4494 = vpop.f32.mrb[0].mxu0
    %4495 = vmatprep.mubr.f32.mxu0 %v4199
    %4496 = vmatmul.mubr.f32.gmra.mrb[0].mxu0 %v4060
    %v4497 = vpop.f32.mrb[0].mxu0
    %v4498 = vadd.f32 %v4423, %v4497
    %v4499 = vpop.f32.mrb[0].mxu0
    %4500 = vdwg.mxu0
    %v4501 = vxor.u32 %v4493, 2147483648
    %v4502 = vxor.u32 %v4498, 2147483648
    %v4503 = vmul.f32 %v4501, 1.442695
    %v4504 = vpow.pop %v4503
    %v4505 = vmul.f32 %v4502, 1.442695
    %v4506 = vpow.pop %v4505
    %v4507 = vadd.f32 %v4504, 1.0
    %v4508 = vadd.f32 %v4506, 1.0
    %v4509 = vrcp.pop %v4507
    %v4510 = vmul.f32 1.0, %v4509
    %v4511 = vrcp.pop %v4508
    %v4512 = vmul.f32 1.0, %v4511
    %vm4513 = vcmask 80896
    %4514 = vst.msk [vmem:[#allocation2] sm:$0xff] %vm4513, %v4510
    %4515 = vst.msk [vmem:[#allocation2 + $0x8] sm:$0xff] %vm4513, %v4512
    // Predicated region
    $region30: #{tpu_custom_call.1} parent=1 // pred_check
      _
    $region31: #{tpu_custom_call.1} parent=1 // pred_check_branch
      %4517 = sbr.rel (0) target = $region33
    $region32: #{tpu_custom_call.1} parent=1 // pred_region
      %s4519 = ssub.s32 256, 256
      %4520 = vsyncadd [#allocation3], %s4519
      %s4521 = sshll.u32 [#allocation2], 4
      %s4522 = int_to_ptr.vmem [resolvable:$true] %s4521
      %4527 = dma.vmem_to_hbm [thread:$0]  %s4522, 256, %s7, [#allocation3], 128, 128, 8
    $region33: #{tpu_custom_call.1} parent=1 // pred_fallthru
      _
    // Predicated region
    $region34: #{tpu_custom_call.1} parent=1 // pred_check
      _
    $region35: #{tpu_custom_call.1} parent=1 // pred_check_branch
      %4529 = sbr.rel (0) target = $region37
    $region36: #{tpu_custom_call.1} parent=1 // pred_region
      %4530 = dma.done [#allocation3], 256
    $region37: #{tpu_custom_call.1} parent=1 // pred_fallthru
      _
    %4531 = vsyncpa [#allocation3], 1

</llo_original>
